<compile_context>
chip_gen: v5e
topology: v5e:2x2
jax: 0.10.0
libtpu: 0.0.40
codegen_flags: <defaults>
</compile_context>

<pallas_src>
import jax
import jax.numpy as jnp
import numpy as np
from jax.experimental import pallas as pl
from jax.experimental.pallas import tpu as pltpu

WORD_LEN = 16  # hard-coded in the PyTorch module (word_length = 16)


def _round_up(x, m):
    return ((x + m - 1) // m) * m


# ---------------------------------------------------------------------------
# Fused kernel: 3x (Conv1d -> ReLU -> MaxPool) + Linear(no bias) + 2x Highway
# ---------------------------------------------------------------------------
def _make_fused_kernel(window_sizes):
    """window_sizes: static tuple of the three conv window widths (3, 5, 7).

    Conv taps are pre-folded pairwise along the contraction in the wrapper:
    each conv weight ref has shape (ceil(k/2), 2*Dc, Fp) and each char row is
    [emb(pos l) ; emb(pos l+1)] so every matmul has K = 2*Dc."""

    def kernel(x_ref, we_ref,
               w1_ref, b1_ref, p1_ref,
               w2_ref, b2_ref, p2_ref,
               w3_ref, b3_ref, p3_ref,
               pw_ref,
               wg1_ref, bg1_ref, wt1_ref, bt1_ref,
               wg2_ref, bg2_ref, wt2_ref, bt2_ref,
               o_ref):
        TN = we_ref.shape[0]              # words in this tile
        L = x_ref.shape[0] // TN          # word length (16); row = pos*TN + word

        # word-embedding part of the row-split projection: (TN, Hp) f32 acc
        h = jnp.dot(we_ref[...], pw_ref[...], preferred_element_type=jnp.float32)

        banks = ((w1_ref, b1_ref, p1_ref),
                 (w2_ref, b2_ref, p2_ref),
                 (w3_ref, b3_ref, p3_ref))
        for (w_ref, b_ref, p_ref), k in zip(banks, window_sizes):
            n_grp = w_ref.shape[0]        # ceil(k/2) folded tap pairs
            L_out = L - k + 1
            rows = L_out * TN
            # One K=2*Dc matmul per folded tap pair, covering ALL conv output
            # positions at once (M = L_out*TN).  Slice starts are multiples of
            # TN (>=16) -> sublane-aligned for bf16.
            acc = jnp.dot(x_ref[pl.ds(0, rows), :], w_ref[0],
                          preferred_element_type=jnp.float32)
            for g in range(1, n_grp):
                acc = acc + jnp.dot(x_ref[pl.ds(2 * g * TN, rows), :], w_ref[g],
                                    preferred_element_type=jnp.float32)
            # Max-pool over conv positions via running max on aligned static
            # slices; bias + ReLU applied ONCE after the max
            # (max_t(x+b) = max_t(x)+b and relu(max) = max(relu)).
            m = acc[0:TN]
            for t in range(1, L_out):
                m = jnp.maximum(m, acc[t * TN:(t + 1) * TN])
            feat = jnp.maximum(m + b_ref[...], 0.0)
            # char-CNN part of the row-split projection
            h = h + jnp.dot(feat.astype(p_ref.dtype), p_ref[...],
                            preferred_element_type=jnp.float32)

        # --- 2-layer highway (f32 activations, bf16 weights) ----------------
        for (wg_ref, bg_ref, wt_ref, bt_ref) in (
                (wg1_ref, bg1_ref, wt1_ref, bt1_ref),
                (wg2_ref, bg2_ref, wt2_ref, bt2_ref)):
            hb = h.astype(wg_ref.dtype)
            zg = jnp.dot(hb, wg_ref[...],
                         preferred_element_type=jnp.float32) + bg_ref[...]
            g = 0.5 * (jnp.tanh(0.5 * zg) + 1.0)          # sigmoid on the EUP
            tt = jnp.maximum(
                jnp.dot(hb, wt_ref[...],
                        preferred_element_type=jnp.float32) + bt_ref[...],
                0.0)
            h = h + g * (tt - h)                           # g*t + (1-g)*h

        o_ref[...] = h.astype(o_ref.dtype)

    return kernel


# ---------------------------------------------------------------------------
# Wrapper: layout plumbing (index-permuted embedding gathers, tap folding,
# lane padding, bf16 casts, tiling)
# ---------------------------------------------------------------------------
def char_embedding_forward(w, c, params, *, tile_n=512):
    """Forward pass of Char_Embedding (wide=True, training=False)."""
    convs = params["convs"]
    assert len(convs) == 3, "wide path has exactly 3 conv banks"
    window_sizes = tuple(int(W.shape[0]) for (W, _) in convs)

    char_tab = params["char_vectors"]
    word_tab = params["word_vectors"]
    B, S, L = c.shape
    Dc = char_tab.shape[1]
    Dw = word_tab.shape[1]
    H = params["hwy"][0][0].shape[0]
    Hp = _round_up(H, 128)                 # lane-dense output stores
    N = B * S

    # Tile over words; keep >=2 tiles whenever N allows so both v7x
    # TensorCores get work under dimension_semantics=("parallel",).
    if N >= 2 * tile_n:
        TN = tile_n
    elif N > 16:
        TN = _round_up((N + 1) // 2, 16)
    else:
        TN = 16
    Np = _round_up(N, TN)
    n_tiles = Np // TN

    # --- char embeddings: position-major, tap-pair-folded rows --------------
    # row (tile i, pos l, word n) = [emb(c[word, l]) ; emb(c[word, l+1])]
    # Built by permuting the tiny int32 index tensor BEFORE the gather, so the
    # embedded tensor is never transposed/copied through HBM.
    cpad = jnp.pad(c.reshape(N, L).astype(jnp.int32), ((0, Np - N), (0, 0)))
    nxt = jnp.minimum(jnp.arange(L) + 1, L - 1)       # last pos duplicates
    idx = jnp.stack([cpad, cpad[:, nxt]], axis=-1)    # (Np, L, 2)
    idx = idx.reshape(n_tiles, TN, L, 2).transpose(0, 2, 1, 3)
    idx = idx.reshape(n_tiles * L * TN, 2)
    x = jnp.take(char_tab.astype(jnp.bfloat16), idx, axis=0)
    x = x.reshape(n_tiles * L * TN, 2 * Dc)           # 128-lane rows for Dc=64

    wpad = jnp.pad(w.reshape(N).astype(jnp.int32), (0, Np - N))
    we = jnp.take(word_tab.astype(jnp.bfloat16), wpad, axis=0)   # (Np, Dw)

    # --- weights: fold conv taps pairwise, pad F and H to lane multiples ----
    Wp = params["Wp"]
    conv_w, conv_b, conv_p = [], [], []
    off = 0
    for (W, b) in convs:                   # W: (k, Dc, F), b: (1, F)
        k, _, F = W.shape
        Fp = _round_up(F, 128)
        n_grp = (k + 1) // 2
        blocks = []
        for g in range(n_grp):
            w_lo = W[2 * g]
            # odd tail tap: second half of the fold is exactly zero, so the
            # (finite) duplicated last-position data contributes nothing.
            w_hi = W[2 * g + 1] if (2 * g + 1) < k else jnp.zeros_like(W[0])
            blocks.append(jnp.concatenate([w_lo, w_hi], axis=0))   # (2*Dc, F)
        Wf = jnp.stack(blocks, axis=0)                              # (n_grp, 2*Dc, F)
        conv_w.append(jnp.pad(Wf, ((0, 0), (0, 0), (0, Fp - F))).astype(jnp.bfloat16))
        conv_b.append(jnp.pad(b, ((0, 0), (0, Fp - F))).astype(jnp.float32))
        conv_p.append(jnp.pad(Wp[off:off + F],
                              ((0, Fp - F), (0, Hp - H))).astype(jnp.bfloat16))
        off += F
    Wp_word = jnp.pad(Wp[off:off + Dw], ((0, 0), (0, Hp - H))).astype(jnp.bfloat16)

    hwy_flat = []
    for (wg, bg, wt, bt) in params["hwy"]:
        hwy_flat += [
            jnp.pad(wg, ((0, Hp - H), (0, Hp - H))).astype(jnp.bfloat16),
            jnp.pad(bg, ((0, 0), (0, Hp - H))).astype(jnp.float32),
            jnp.pad(wt, ((0, Hp - H), (0, Hp - H))).astype(jnp.bfloat16),
            jnp.pad(bt, ((0, 0), (0, Hp - H))).astype(jnp.float32),
        ]

    def const2(i):
        return (0, 0)

    def const3(i):
        return (0, 0, 0)

    in_specs = [
        pl.BlockSpec((L * TN, 2 * Dc), lambda i: (i, 0)),   # char tile (streamed)
        pl.BlockSpec((TN, Dw), lambda i: (i, 0)),           # word tile (streamed)
    ]
    args = [x, we]
    for Wf, bf, Pf in zip(conv_w, conv_b, conv_p):          # VMEM-resident weights
        in_specs += [pl.BlockSpec(Wf.shape, const3),
                     pl.BlockSpec(bf.shape, const2),
                     pl.BlockSpec(Pf.shape, const2)]
        args += [Wf, bf, Pf]
    in_specs.append(pl.BlockSpec(Wp_word.shape, const2))
    args.append(Wp_word)
    for A in hwy_flat:
        in_specs.append(pl.BlockSpec(A.shape, const2))
        args.append(A)

    out = pl.pallas_call(
        _make_fused_kernel(window_sizes),
        out_shape=jax.ShapeDtypeStruct((Np, Hp), jnp.bfloat16),   # bf16 writeback
        grid=(n_tiles,),
        in_specs=in_specs,
        out_specs=pl.BlockSpec((TN, Hp), lambda i: (i, 0)),
        compiler_params=pltpu.CompilerParams(
            dimension_semantics=("parallel",),      # shard N across TCs (v7x)
            # 32 MiB fits the f32 conv temporaries at TN<=512 and stays inside
            # v7x's 64 MiB physical VMEM; lower tile_n before raising this.
            vmem_limit_bytes=32 * 1024 * 1024,
        ),
    )(*args)

    return out[:N, :H].astype(jnp.float32).reshape(B, S, H)


# ---------------------------------------------------------------------------
# Pure-JAX reference (f32) for correctness check
# ---------------------------------------------------------------------------
def reference_forward(w, c, params):
    w_emb = params["word_vectors"][w]
    c_emb = params["char_vectors"][c]
    B, S, L, Dc = c_emb.shape
    x = c_emb.reshape(B * S, L, Dc)
    outs = []
    for (W, b) in params["convs"]:
        k = W.shape[0]
        L_out = L - k + 1
        acc = jnp.zeros((B * S, L_out, W.shape[-1]), jnp.float32)
        for dk in range(k):
            acc += jnp.einsum("ntd,df->ntf", x[:, dk:dk + L_out, :], W[dk])
        acc = jnp.maximum(acc + b[0], 0.0)
        outs.append(jnp.max(acc, axis=1).reshape(B, S, -1))
    outs.append(w_emb)
    xh = jnp.concatenate(outs, axis=2).reshape(B * S, -1)
    xh = xh @ params["Wp"]
    for (wg, bg, wt, bt) in params["hwy"]:
        g = jax.nn.sigmoid(xh @ wg + bg[0])
        t = jnp.maximum(xh @ wt + bt[0], 0.0)
        xh = g * t + (1.0 - g) * xh
    return xh.reshape(B, S, -1)


# ---------------------------------------------------------------------------
# Deterministic parameter construction + run
# ---------------------------------------------------------------------------
def make_params(key, *, word_vocab, char_vocab, Dw, Dc, hidden,
                filters_windows=((100, 3), (150, 5), (200, 7))):
    n_keys = 2 + 2 * len(filters_windows) + 1 + 2 * 4
    keys = jax.random.split(key, n_keys)
    ki = iter(keys)
    params = {}
    params["word_vectors"] = 0.1 * jax.random.normal(next(ki), (word_vocab, Dw), jnp.float32)
    params["char_vectors"] = 0.1 * jax.random.normal(next(ki), (char_vocab, Dc), jnp.float32)
    convs = []
    for (F, k) in filters_windows:
        W = 0.05 * jax.random.normal(next(ki), (k, Dc, F), jnp.float32)
        b = 0.01 * jax.random.normal(next(ki), (1, F), jnp.float32)
        convs.append((W, b))
    params["convs"] = convs
    char_filters = sum(f for f, _ in filters_windows)
    Din = char_filters + Dw                # conv features first, then word
    params["Wp"] = 0.05 * jax.random.normal(next(ki), (Din, hidden), jnp.float32)
    hwy = []
    for _ in range(2):
        wg = 0.05 * jax.random.normal(next(ki), (hidden, hidden), jnp.float32)
        bg = 0.01 * jax.random.normal(next(ki), (1, hidden), jnp.float32)
        wt = 0.05 * jax.random.normal(next(ki), (hidden, hidden), jnp.float32)
        bt = 0.01 * jax.random.normal(next(ki), (1, hidden), jnp.float32)
        hwy.append((wg, bg, wt, bt))
    params["hwy"] = hwy
    return params


if __name__ == "__main__":
    key = jax.random.PRNGKey(0)
    B, S, L = 2, 8, WORD_LEN
    Dw, Dc, hidden = 64, 64, 32
    word_vocab, char_vocab = 50, 30

    kp, kw, kc = jax.random.split(key, 3)
    params = make_params(kp, word_vocab=word_vocab, char_vocab=char_vocab,
                         Dw=Dw, Dc=Dc, hidden=hidden)
    w = jax.random.randint(kw, (B, S), 0, word_vocab, dtype=jnp.int32)
    c = jax.random.randint(kc, (B, S, L), 0, char_vocab, dtype=jnp.int32)

    out = jax.block_until_ready(char_embedding_forward(w, c, params))
    ref = jax.block_until_ready(reference_forward(w, c, params))

    assert out.shape == (B, S, hidden)
    # bf16 weights/activations/output with f32 accumulation -> loosened tolerance
    np.testing.assert_allclose(np.asarray(out), np.asarray(ref), rtol=3e-2, atol=3e-2)

    print("KERNEL_OK")
</pallas_src>

<mosaic_0001>
module attributes {stable_mosaic.version = 11 : i64} {
  func.func @kernel(%arg0: i32, %arg1: memref<256x128xbf16, #tpu.memory_space<vmem>>, %arg2: memref<16x64xbf16, #tpu.memory_space<vmem>>, %arg3: memref<2x128x128xbf16, #tpu.memory_space<vmem>>, %arg4: memref<1x128xf32, #tpu.memory_space<vmem>>, %arg5: memref<128x128xbf16, #tpu.memory_space<vmem>>, %arg6: memref<3x128x256xbf16, #tpu.memory_space<vmem>>, %arg7: memref<1x256xf32, #tpu.memory_space<vmem>>, %arg8: memref<256x128xbf16, #tpu.memory_space<vmem>>, %arg9: memref<4x128x256xbf16, #tpu.memory_space<vmem>>, %arg10: memref<1x256xf32, #tpu.memory_space<vmem>>, %arg11: memref<256x128xbf16, #tpu.memory_space<vmem>>, %arg12: memref<64x128xbf16, #tpu.memory_space<vmem>>, %arg13: memref<128x128xbf16, #tpu.memory_space<vmem>>, %arg14: memref<1x128xf32, #tpu.memory_space<vmem>>, %arg15: memref<128x128xbf16, #tpu.memory_space<vmem>>, %arg16: memref<1x128xf32, #tpu.memory_space<vmem>>, %arg17: memref<128x128xbf16, #tpu.memory_space<vmem>>, %arg18: memref<1x128xf32, #tpu.memory_space<vmem>>, %arg19: memref<128x128xbf16, #tpu.memory_space<vmem>>, %arg20: memref<1x128xf32, #tpu.memory_space<vmem>>, %arg21: memref<16x128xbf16, #tpu.memory_space<vmem>>) attributes {dimension_semantics = [#tpu.dimension_semantics<parallel>], iteration_bounds = array<i64: 1>, scalar_prefetch = 0 : i64, scratch_operands = 0 : i64, tpu.core_type = #tpu.core_type<tc>, window_params = [{transform_indices = @transform_0, window_bounds = array<i64: 256, 128>}, {transform_indices = @transform_1, window_bounds = array<i64: 16, 64>}, {pipeline_mode = #tpu.pipeline_mode<synchronous>, transform_indices = @transform_2, window_bounds = array<i64: 2, 128, 128>}, {pipeline_mode = #tpu.pipeline_mode<synchronous>, transform_indices = @transform_3, window_bounds = array<i64: 1, 128>}, {pipeline_mode = #tpu.pipeline_mode<synchronous>, transform_indices = @transform_4, window_bounds = array<i64: 128, 128>}, {pipeline_mode = #tpu.pipeline_mode<synchronous>, transform_indices = @transform_5, window_bounds = array<i64: 3, 128, 256>}, {pipeline_mode = #tpu.pipeline_mode<synchronous>, transform_indices = @transform_6, window_bounds = array<i64: 1, 256>}, {pipeline_mode = #tpu.pipeline_mode<synchronous>, transform_indices = @transform_7, window_bounds = array<i64: 256, 128>}, {pipeline_mode = #tpu.pipeline_mode<synchronous>, transform_indices = @transform_8, window_bounds = array<i64: 4, 128, 256>}, {pipeline_mode = #tpu.pipeline_mode<synchronous>, transform_indices = @transform_9, window_bounds = array<i64: 1, 256>}, {pipeline_mode = #tpu.pipeline_mode<synchronous>, transform_indices = @transform_10, window_bounds = array<i64: 256, 128>}, {pipeline_mode = #tpu.pipeline_mode<synchronous>, transform_indices = @transform_11, window_bounds = array<i64: 64, 128>}, {pipeline_mode = #tpu.pipeline_mode<synchronous>, transform_indices = @transform_12, window_bounds = array<i64: 128, 128>}, {pipeline_mode = #tpu.pipeline_mode<synchronous>, transform_indices = @transform_13, window_bounds = array<i64: 1, 128>}, {pipeline_mode = #tpu.pipeline_mode<synchronous>, transform_indices = @transform_14, window_bounds = array<i64: 128, 128>}, {pipeline_mode = #tpu.pipeline_mode<synchronous>, transform_indices = @transform_15, window_bounds = array<i64: 1, 128>}, {pipeline_mode = #tpu.pipeline_mode<synchronous>, transform_indices = @transform_16, window_bounds = array<i64: 128, 128>}, {pipeline_mode = #tpu.pipeline_mode<synchronous>, transform_indices = @transform_17, window_bounds = array<i64: 1, 128>}, {pipeline_mode = #tpu.pipeline_mode<synchronous>, transform_indices = @transform_18, window_bounds = array<i64: 128, 128>}, {pipeline_mode = #tpu.pipeline_mode<synchronous>, transform_indices = @transform_19, window_bounds = array<i64: 1, 128>}, {transform_indices = @transform_20, window_bounds = array<i64: 16, 128>}]} {
    %c0 = arith.constant 0 : index
    %c0_0 = arith.constant 0 : index
    %0 = vector.load %arg2[%c0, %c0_0] : memref<16x64xbf16, #tpu.memory_space<vmem>>, vector<16x64xbf16>
    %c0_1 = arith.constant 0 : index
    %c0_2 = arith.constant 0 : index
    %1 = vector.load %arg12[%c0_1, %c0_2] : memref<64x128xbf16, #tpu.memory_space<vmem>>, vector<64x128xbf16>
    %cst = arith.constant dense<0.000000e+00> : vector<16x128xf32>
    %2 = tpu.matmul %0, %1, %cst {dimension_numbers = #tpu.dot_dimension_numbers<[1], [0], [0], [1], [0, 0, 1, 1], [], []>} : vector<16x64xbf16>, vector<64x128xbf16>, vector<16x128xf32> -> vector<16x128xf32>
    %c0_3 = arith.constant 0 : index
    %c0_4 = arith.constant 0 : index
    %3 = vector.load %arg1[%c0_3, %c0_4] : memref<256x128xbf16, #tpu.memory_space<vmem>>, vector<224x128xbf16>
    %c0_5 = arith.constant 0 : index
    %c0_6 = arith.constant 0 : index
    %c0_7 = arith.constant 0 : index
    %4 = vector.load %arg3[%c0_5, %c0_6, %c0_7] : memref<2x128x128xbf16, #tpu.memory_space<vmem>>, vector<1x128x128xbf16>
    %5 = vector.shape_cast %4 : vector<1x128x128xbf16> to vector<128x128xbf16>
    %cst_8 = arith.constant dense<0.000000e+00> : vector<224x128xf32>
    %6 = tpu.matmul %3, %5, %cst_8 {dimension_numbers = #tpu.dot_dimension_numbers<[1], [0], [0], [1], [0, 0, 1, 1], [], []>} : vector<224x128xbf16>, vector<128x128xbf16>, vector<224x128xf32> -> vector<224x128xf32>
    %c32 = arith.constant 32 : index
    %c0_9 = arith.constant 0 : index
    %7 = vector.load %arg1[%c32, %c0_9] : memref<256x128xbf16, #tpu.memory_space<vmem>>, vector<224x128xbf16>
    %c1 = arith.constant 1 : index
    %c0_10 = arith.constant 0 : index
    %c0_11 = arith.constant 0 : index
    %8 = vector.load %arg3[%c1, %c0_10, %c0_11] : memref<2x128x128xbf16, #tpu.memory_space<vmem>>, vector<1x128x128xbf16>
    %9 = vector.shape_cast %8 : vector<1x128x128xbf16> to vector<128x128xbf16>
    %cst_12 = arith.constant dense<0.000000e+00> : vector<224x128xf32>
    %10 = tpu.matmul %7, %9, %cst_12 {dimension_numbers = #tpu.dot_dimension_numbers<[1], [0], [0], [1], [0, 0, 1, 1], [], []>} : vector<224x128xbf16>, vector<128x128xbf16>, vector<224x128xf32> -> vector<224x128xf32>
    %11 = arith.addf %6, %10 : vector<224x128xf32>
    %12 = vector.extract_strided_slice %11 {offsets = [0, 0], sizes = [16, 128], strides = [1, 1]} : vector<224x128xf32> to vector<16x128xf32>
    %13 = vector.extract_strided_slice %11 {offsets = [16, 0], sizes = [16, 128], strides = [1, 1]} : vector<224x128xf32> to vector<16x128xf32>
    %14 = arith.maximumf %12, %13 : vector<16x128xf32>
    %15 = vector.extract_strided_slice %11 {offsets = [32, 0], sizes = [16, 128], strides = [1, 1]} : vector<224x128xf32> to vector<16x128xf32>
    %16 = arith.maximumf %14, %15 : vector<16x128xf32>
    %17 = vector.extract_strided_slice %11 {offsets = [48, 0], sizes = [16, 128], strides = [1, 1]} : vector<224x128xf32> to vector<16x128xf32>
    %18 = arith.maximumf %16, %17 : vector<16x128xf32>
    %19 = vector.extract_strided_slice %11 {offsets = [64, 0], sizes = [16, 128], strides = [1, 1]} : vector<224x128xf32> to vector<16x128xf32>
    %20 = arith.maximumf %18, %19 : vector<16x128xf32>
    %21 = vector.extract_strided_slice %11 {offsets = [80, 0], sizes = [16, 128], strides = [1, 1]} : vector<224x128xf32> to vector<16x128xf32>
    %22 = arith.maximumf %20, %21 : vector<16x128xf32>
    %23 = vector.extract_strided_slice %11 {offsets = [96, 0], sizes = [16, 128], strides = [1, 1]} : vector<224x128xf32> to vector<16x128xf32>
    %24 = arith.maximumf %22, %23 : vector<16x128xf32>
    %25 = vector.extract_strided_slice %11 {offsets = [112, 0], sizes = [16, 128], strides = [1, 1]} : vector<224x128xf32> to vector<16x128xf32>
    %26 = arith.maximumf %24, %25 : vector<16x128xf32>
    %27 = vector.extract_strided_slice %11 {offsets = [128, 0], sizes = [16, 128], strides = [1, 1]} : vector<224x128xf32> to vector<16x128xf32>
    %28 = arith.maximumf %26, %27 : vector<16x128xf32>
    %29 = vector.extract_strided_slice %11 {offsets = [144, 0], sizes = [16, 128], strides = [1, 1]} : vector<224x128xf32> to vector<16x128xf32>
    %30 = arith.maximumf %28, %29 : vector<16x128xf32>
    %31 = vector.extract_strided_slice %11 {offsets = [160, 0], sizes = [16, 128], strides = [1, 1]} : vector<224x128xf32> to vector<16x128xf32>
    %32 = arith.maximumf %30, %31 : vector<16x128xf32>
    %33 = vector.extract_strided_slice %11 {offsets = [176, 0], sizes = [16, 128], strides = [1, 1]} : vector<224x128xf32> to vector<16x128xf32>
    %34 = arith.maximumf %32, %33 : vector<16x128xf32>
    %35 = vector.extract_strided_slice %11 {offsets = [192, 0], sizes = [16, 128], strides = [1, 1]} : vector<224x128xf32> to vector<16x128xf32>
    %36 = arith.maximumf %34, %35 : vector<16x128xf32>
    %37 = vector.extract_strided_slice %11 {offsets = [208, 0], sizes = [16, 128], strides = [1, 1]} : vector<224x128xf32> to vector<16x128xf32>
    %38 = arith.maximumf %36, %37 : vector<16x128xf32>
    %c0_13 = arith.constant 0 : index
    %c0_14 = arith.constant 0 : index
    %39 = vector.load %arg4[%c0_13, %c0_14] : memref<1x128xf32, #tpu.memory_space<vmem>>, vector<1x128xf32>
    %40 = vector.broadcast %39 : vector<1x128xf32> to vector<16x128xf32>
    %41 = arith.addf %38, %40 : vector<16x128xf32>
    %cst_15 = arith.constant 0.000000e+00 : f32
    %42 = vector.broadcast %cst_15 : f32 to vector<16x128xf32>
    %43 = arith.maximumf %41, %42 : vector<16x128xf32>
    %44 = arith.truncf %43 : vector<16x128xf32> to vector<16x128xbf16>
    %c0_16 = arith.constant 0 : index
    %c0_17 = arith.constant 0 : index
    %45 = vector.load %arg5[%c0_16, %c0_17] : memref<128x128xbf16, #tpu.memory_space<vmem>>, vector<128x128xbf16>
    %cst_18 = arith.constant dense<0.000000e+00> : vector<16x128xf32>
    %46 = tpu.matmul %44, %45, %cst_18 {dimension_numbers = #tpu.dot_dimension_numbers<[1], [0], [0], [1], [0, 0, 1, 1], [], []>} : vector<16x128xbf16>, vector<128x128xbf16>, vector<16x128xf32> -> vector<16x128xf32>
    %47 = arith.addf %2, %46 : vector<16x128xf32>
    %c0_19 = arith.constant 0 : index
    %c0_20 = arith.constant 0 : index
    %48 = vector.load %arg1[%c0_19, %c0_20] : memref<256x128xbf16, #tpu.memory_space<vmem>>, vector<192x128xbf16>
    %c0_21 = arith.constant 0 : index
    %c0_22 = arith.constant 0 : index
    %c0_23 = arith.constant 0 : index
    %49 = vector.load %arg6[%c0_21, %c0_22, %c0_23] : memref<3x128x256xbf16, #tpu.memory_space<vmem>>, vector<1x128x256xbf16>
    %50 = vector.shape_cast %49 : vector<1x128x256xbf16> to vector<128x256xbf16>
    %cst_24 = arith.constant dense<0.000000e+00> : vector<192x256xf32>
    %51 = tpu.matmul %48, %50, %cst_24 {dimension_numbers = #tpu.dot_dimension_numbers<[1], [0], [0], [1], [0, 0, 1, 1], [], []>} : vector<192x128xbf16>, vector<128x256xbf16>, vector<192x256xf32> -> vector<192x256xf32>
    %c32_25 = arith.constant 32 : index
    %c0_26 = arith.constant 0 : index
    %52 = vector.load %arg1[%c32_25, %c0_26] : memref<256x128xbf16, #tpu.memory_space<vmem>>, vector<192x128xbf16>
    %c1_27 = arith.constant 1 : index
    %c0_28 = arith.constant 0 : index
    %c0_29 = arith.constant 0 : index
    %53 = vector.load %arg6[%c1_27, %c0_28, %c0_29] : memref<3x128x256xbf16, #tpu.memory_space<vmem>>, vector<1x128x256xbf16>
    %54 = vector.shape_cast %53 : vector<1x128x256xbf16> to vector<128x256xbf16>
    %cst_30 = arith.constant dense<0.000000e+00> : vector<192x256xf32>
    %55 = tpu.matmul %52, %54, %cst_30 {dimension_numbers = #tpu.dot_dimension_numbers<[1], [0], [0], [1], [0, 0, 1, 1], [], []>} : vector<192x128xbf16>, vector<128x256xbf16>, vector<192x256xf32> -> vector<192x256xf32>
    %56 = arith.addf %51, %55 : vector<192x256xf32>
    %c64 = arith.constant 64 : index
    %c0_31 = arith.constant 0 : index
    %57 = vector.load %arg1[%c64, %c0_31] : memref<256x128xbf16, #tpu.memory_space<vmem>>, vector<192x128xbf16>
    %c2 = arith.constant 2 : index
    %c0_32 = arith.constant 0 : index
    %c0_33 = arith.constant 0 : index
    %58 = vector.load %arg6[%c2, %c0_32, %c0_33] : memref<3x128x256xbf16, #tpu.memory_space<vmem>>, vector<1x128x256xbf16>
    %59 = vector.shape_cast %58 : vector<1x128x256xbf16> to vector<128x256xbf16>
    %cst_34 = arith.constant dense<0.000000e+00> : vector<192x256xf32>
    %60 = tpu.matmul %57, %59, %cst_34 {dimension_numbers = #tpu.dot_dimension_numbers<[1], [0], [0], [1], [0, 0, 1, 1], [], []>} : vector<192x128xbf16>, vector<128x256xbf16>, vector<192x256xf32> -> vector<192x256xf32>
    %61 = arith.addf %56, %60 : vector<192x256xf32>
    %62 = vector.extract_strided_slice %61 {offsets = [0, 0], sizes = [16, 256], strides = [1, 1]} : vector<192x256xf32> to vector<16x256xf32>
    %63 = vector.extract_strided_slice %61 {offsets = [16, 0], sizes = [16, 256], strides = [1, 1]} : vector<192x256xf32> to vector<16x256xf32>
    %64 = arith.maximumf %62, %63 : vector<16x256xf32>
    %65 = vector.extract_strided_slice %61 {offsets = [32, 0], sizes = [16, 256], strides = [1, 1]} : vector<192x256xf32> to vector<16x256xf32>
    %66 = arith.maximumf %64, %65 : vector<16x256xf32>
    %67 = vector.extract_strided_slice %61 {offsets = [48, 0], sizes = [16, 256], strides = [1, 1]} : vector<192x256xf32> to vector<16x256xf32>
    %68 = arith.maximumf %66, %67 : vector<16x256xf32>
    %69 = vector.extract_strided_slice %61 {offsets = [64, 0], sizes = [16, 256], strides = [1, 1]} : vector<192x256xf32> to vector<16x256xf32>
    %70 = arith.maximumf %68, %69 : vector<16x256xf32>
    %71 = vector.extract_strided_slice %61 {offsets = [80, 0], sizes = [16, 256], strides = [1, 1]} : vector<192x256xf32> to vector<16x256xf32>
    %72 = arith.maximumf %70, %71 : vector<16x256xf32>
    %73 = vector.extract_strided_slice %61 {offsets = [96, 0], sizes = [16, 256], strides = [1, 1]} : vector<192x256xf32> to vector<16x256xf32>
    %74 = arith.maximumf %72, %73 : vector<16x256xf32>
    %75 = vector.extract_strided_slice %61 {offsets = [112, 0], sizes = [16, 256], strides = [1, 1]} : vector<192x256xf32> to vector<16x256xf32>
    %76 = arith.maximumf %74, %75 : vector<16x256xf32>
    %77 = vector.extract_strided_slice %61 {offsets = [128, 0], sizes = [16, 256], strides = [1, 1]} : vector<192x256xf32> to vector<16x256xf32>
    %78 = arith.maximumf %76, %77 : vector<16x256xf32>
    %79 = vector.extract_strided_slice %61 {offsets = [144, 0], sizes = [16, 256], strides = [1, 1]} : vector<192x256xf32> to vector<16x256xf32>
    %80 = arith.maximumf %78, %79 : vector<16x256xf32>
    %81 = vector.extract_strided_slice %61 {offsets = [160, 0], sizes = [16, 256], strides = [1, 1]} : vector<192x256xf32> to vector<16x256xf32>
    %82 = arith.maximumf %80, %81 : vector<16x256xf32>
    %83 = vector.extract_strided_slice %61 {offsets = [176, 0], sizes = [16, 256], strides = [1, 1]} : vector<192x256xf32> to vector<16x256xf32>
    %84 = arith.maximumf %82, %83 : vector<16x256xf32>
    %c0_35 = arith.constant 0 : index
    %c0_36 = arith.constant 0 : index
    %85 = vector.load %arg7[%c0_35, %c0_36] : memref<1x256xf32, #tpu.memory_space<vmem>>, vector<1x256xf32>
    %86 = vector.broadcast %85 : vector<1x256xf32> to vector<16x256xf32>
    %87 = arith.addf %84, %86 : vector<16x256xf32>
    %cst_37 = arith.constant 0.000000e+00 : f32
    %88 = vector.broadcast %cst_37 : f32 to vector<16x256xf32>
    %89 = arith.maximumf %87, %88 : vector<16x256xf32>
    %90 = arith.truncf %89 : vector<16x256xf32> to vector<16x256xbf16>
    %c0_38 = arith.constant 0 : index
    %c0_39 = arith.constant 0 : index
    %91 = vector.load %arg8[%c0_38, %c0_39] : memref<256x128xbf16, #tpu.memory_space<vmem>>, vector<256x128xbf16>
    %cst_40 = arith.constant dense<0.000000e+00> : vector<16x128xf32>
    %92 = tpu.matmul %90, %91, %cst_40 {dimension_numbers = #tpu.dot_dimension_numbers<[1], [0], [0], [1], [0, 0, 1, 1], [], []>} : vector<16x256xbf16>, vector<256x128xbf16>, vector<16x128xf32> -> vector<16x128xf32>
    %93 = arith.addf %47, %92 : vector<16x128xf32>
    %c0_41 = arith.constant 0 : index
    %c0_42 = arith.constant 0 : index
    %94 = vector.load %arg1[%c0_41, %c0_42] : memref<256x128xbf16, #tpu.memory_space<vmem>>, vector<160x128xbf16>
    %c0_43 = arith.constant 0 : index
    %c0_44 = arith.constant 0 : index
    %c0_45 = arith.constant 0 : index
    %95 = vector.load %arg9[%c0_43, %c0_44, %c0_45] : memref<4x128x256xbf16, #tpu.memory_space<vmem>>, vector<1x128x256xbf16>
    %96 = vector.shape_cast %95 : vector<1x128x256xbf16> to vector<128x256xbf16>
    %cst_46 = arith.constant dense<0.000000e+00> : vector<160x256xf32>
    %97 = tpu.matmul %94, %96, %cst_46 {dimension_numbers = #tpu.dot_dimension_numbers<[1], [0], [0], [1], [0, 0, 1, 1], [], []>} : vector<160x128xbf16>, vector<128x256xbf16>, vector<160x256xf32> -> vector<160x256xf32>
    %c32_47 = arith.constant 32 : index
    %c0_48 = arith.constant 0 : index
    %98 = vector.load %arg1[%c32_47, %c0_48] : memref<256x128xbf16, #tpu.memory_space<vmem>>, vector<160x128xbf16>
    %c1_49 = arith.constant 1 : index
    %c0_50 = arith.constant 0 : index
    %c0_51 = arith.constant 0 : index
    %99 = vector.load %arg9[%c1_49, %c0_50, %c0_51] : memref<4x128x256xbf16, #tpu.memory_space<vmem>>, vector<1x128x256xbf16>
    %100 = vector.shape_cast %99 : vector<1x128x256xbf16> to vector<128x256xbf16>
    %cst_52 = arith.constant dense<0.000000e+00> : vector<160x256xf32>
    %101 = tpu.matmul %98, %100, %cst_52 {dimension_numbers = #tpu.dot_dimension_numbers<[1], [0], [0], [1], [0, 0, 1, 1], [], []>} : vector<160x128xbf16>, vector<128x256xbf16>, vector<160x256xf32> -> vector<160x256xf32>
    %102 = arith.addf %97, %101 : vector<160x256xf32>
    %c64_53 = arith.constant 64 : index
    %c0_54 = arith.constant 0 : index
    %103 = vector.load %arg1[%c64_53, %c0_54] : memref<256x128xbf16, #tpu.memory_space<vmem>>, vector<160x128xbf16>
    %c2_55 = arith.constant 2 : index
    %c0_56 = arith.constant 0 : index
    %c0_57 = arith.constant 0 : index
    %104 = vector.load %arg9[%c2_55, %c0_56, %c0_57] : memref<4x128x256xbf16, #tpu.memory_space<vmem>>, vector<1x128x256xbf16>
    %105 = vector.shape_cast %104 : vector<1x128x256xbf16> to vector<128x256xbf16>
    %cst_58 = arith.constant dense<0.000000e+00> : vector<160x256xf32>
    %106 = tpu.matmul %103, %105, %cst_58 {dimension_numbers = #tpu.dot_dimension_numbers<[1], [0], [0], [1], [0, 0, 1, 1], [], []>} : vector<160x128xbf16>, vector<128x256xbf16>, vector<160x256xf32> -> vector<160x256xf32>
    %107 = arith.addf %102, %106 : vector<160x256xf32>
    %c96 = arith.constant 96 : index
    %c0_59 = arith.constant 0 : index
    %108 = vector.load %arg1[%c96, %c0_59] : memref<256x128xbf16, #tpu.memory_space<vmem>>, vector<160x128xbf16>
    %c3 = arith.constant 3 : index
    %c0_60 = arith.constant 0 : index
    %c0_61 = arith.constant 0 : index
    %109 = vector.load %arg9[%c3, %c0_60, %c0_61] : memref<4x128x256xbf16, #tpu.memory_space<vmem>>, vector<1x128x256xbf16>
    %110 = vector.shape_cast %109 : vector<1x128x256xbf16> to vector<128x256xbf16>
    %cst_62 = arith.constant dense<0.000000e+00> : vector<160x256xf32>
    %111 = tpu.matmul %108, %110, %cst_62 {dimension_numbers = #tpu.dot_dimension_numbers<[1], [0], [0], [1], [0, 0, 1, 1], [], []>} : vector<160x128xbf16>, vector<128x256xbf16>, vector<160x256xf32> -> vector<160x256xf32>
    %112 = arith.addf %107, %111 : vector<160x256xf32>
    %113 = vector.extract_strided_slice %112 {offsets = [0, 0], sizes = [16, 256], strides = [1, 1]} : vector<160x256xf32> to vector<16x256xf32>
    %114 = vector.extract_strided_slice %112 {offsets = [16, 0], sizes = [16, 256], strides = [1, 1]} : vector<160x256xf32> to vector<16x256xf32>
    %115 = arith.maximumf %113, %114 : vector<16x256xf32>
    %116 = vector.extract_strided_slice %112 {offsets = [32, 0], sizes = [16, 256], strides = [1, 1]} : vector<160x256xf32> to vector<16x256xf32>
    %117 = arith.maximumf %115, %116 : vector<16x256xf32>
    %118 = vector.extract_strided_slice %112 {offsets = [48, 0], sizes = [16, 256], strides = [1, 1]} : vector<160x256xf32> to vector<16x256xf32>
    %119 = arith.maximumf %117, %118 : vector<16x256xf32>
    %120 = vector.extract_strided_slice %112 {offsets = [64, 0], sizes = [16, 256], strides = [1, 1]} : vector<160x256xf32> to vector<16x256xf32>
    %121 = arith.maximumf %119, %120 : vector<16x256xf32>
    %122 = vector.extract_strided_slice %112 {offsets = [80, 0], sizes = [16, 256], strides = [1, 1]} : vector<160x256xf32> to vector<16x256xf32>
    %123 = arith.maximumf %121, %122 : vector<16x256xf32>
    %124 = vector.extract_strided_slice %112 {offsets = [96, 0], sizes = [16, 256], strides = [1, 1]} : vector<160x256xf32> to vector<16x256xf32>
    %125 = arith.maximumf %123, %124 : vector<16x256xf32>
    %126 = vector.extract_strided_slice %112 {offsets = [112, 0], sizes = [16, 256], strides = [1, 1]} : vector<160x256xf32> to vector<16x256xf32>
    %127 = arith.maximumf %125, %126 : vector<16x256xf32>
    %128 = vector.extract_strided_slice %112 {offsets = [128, 0], sizes = [16, 256], strides = [1, 1]} : vector<160x256xf32> to vector<16x256xf32>
    %129 = arith.maximumf %127, %128 : vector<16x256xf32>
    %130 = vector.extract_strided_slice %112 {offsets = [144, 0], sizes = [16, 256], strides = [1, 1]} : vector<160x256xf32> to vector<16x256xf32>
    %131 = arith.maximumf %129, %130 : vector<16x256xf32>
    %c0_63 = arith.constant 0 : index
    %c0_64 = arith.constant 0 : index
    %132 = vector.load %arg10[%c0_63, %c0_64] : memref<1x256xf32, #tpu.memory_space<vmem>>, vector<1x256xf32>
    %133 = vector.broadcast %132 : vector<1x256xf32> to vector<16x256xf32>
    %134 = arith.addf %131, %133 : vector<16x256xf32>
    %cst_65 = arith.constant 0.000000e+00 : f32
    %135 = vector.broadcast %cst_65 : f32 to vector<16x256xf32>
    %136 = arith.maximumf %134, %135 : vector<16x256xf32>
    %137 = arith.truncf %136 : vector<16x256xf32> to vector<16x256xbf16>
    %c0_66 = arith.constant 0 : index
    %c0_67 = arith.constant 0 : index
    %138 = vector.load %arg11[%c0_66, %c0_67] : memref<256x128xbf16, #tpu.memory_space<vmem>>, vector<256x128xbf16>
    %cst_68 = arith.constant dense<0.000000e+00> : vector<16x128xf32>
    %139 = tpu.matmul %137, %138, %cst_68 {dimension_numbers = #tpu.dot_dimension_numbers<[1], [0], [0], [1], [0, 0, 1, 1], [], []>} : vector<16x256xbf16>, vector<256x128xbf16>, vector<16x128xf32> -> vector<16x128xf32>
    %140 = arith.addf %93, %139 : vector<16x128xf32>
    %141 = arith.truncf %140 : vector<16x128xf32> to vector<16x128xbf16>
    %c0_69 = arith.constant 0 : index
    %c0_70 = arith.constant 0 : index
    %142 = vector.load %arg13[%c0_69, %c0_70] : memref<128x128xbf16, #tpu.memory_space<vmem>>, vector<128x128xbf16>
    %cst_71 = arith.constant dense<0.000000e+00> : vector<16x128xf32>
    %143 = tpu.matmul %141, %142, %cst_71 {dimension_numbers = #tpu.dot_dimension_numbers<[1], [0], [0], [1], [0, 0, 1, 1], [], []>} : vector<16x128xbf16>, vector<128x128xbf16>, vector<16x128xf32> -> vector<16x128xf32>
    %c0_72 = arith.constant 0 : index
    %c0_73 = arith.constant 0 : index
    %144 = vector.load %arg14[%c0_72, %c0_73] : memref<1x128xf32, #tpu.memory_space<vmem>>, vector<1x128xf32>
    %145 = vector.broadcast %144 : vector<1x128xf32> to vector<16x128xf32>
    %146 = arith.addf %143, %145 : vector<16x128xf32>
    %cst_74 = arith.constant 5.000000e-01 : f32
    %147 = vector.broadcast %cst_74 : f32 to vector<16x128xf32>
    %148 = arith.mulf %147, %146 : vector<16x128xf32>
    %149 = math.tanh %148 : vector<16x128xf32>
    %cst_75 = arith.constant 1.000000e+00 : f32
    %150 = vector.broadcast %cst_75 : f32 to vector<16x128xf32>
    %151 = arith.addf %149, %150 : vector<16x128xf32>
    %cst_76 = arith.constant 5.000000e-01 : f32
    %152 = vector.broadcast %cst_76 : f32 to vector<16x128xf32>
    %153 = arith.mulf %152, %151 : vector<16x128xf32>
    %c0_77 = arith.constant 0 : index
    %c0_78 = arith.constant 0 : index
    %154 = vector.load %arg15[%c0_77, %c0_78] : memref<128x128xbf16, #tpu.memory_space<vmem>>, vector<128x128xbf16>
    %cst_79 = arith.constant dense<0.000000e+00> : vector<16x128xf32>
    %155 = tpu.matmul %141, %154, %cst_79 {dimension_numbers = #tpu.dot_dimension_numbers<[1], [0], [0], [1], [0, 0, 1, 1], [], []>} : vector<16x128xbf16>, vector<128x128xbf16>, vector<16x128xf32> -> vector<16x128xf32>
    %c0_80 = arith.constant 0 : index
    %c0_81 = arith.constant 0 : index
    %156 = vector.load %arg16[%c0_80, %c0_81] : memref<1x128xf32, #tpu.memory_space<vmem>>, vector<1x128xf32>
    %157 = vector.broadcast %156 : vector<1x128xf32> to vector<16x128xf32>
    %158 = arith.addf %155, %157 : vector<16x128xf32>
    %cst_82 = arith.constant 0.000000e+00 : f32
    %159 = vector.broadcast %cst_82 : f32 to vector<16x128xf32>
    %160 = arith.maximumf %158, %159 : vector<16x128xf32>
    %161 = arith.subf %160, %140 : vector<16x128xf32>
    %162 = arith.mulf %153, %161 : vector<16x128xf32>
    %163 = arith.addf %140, %162 : vector<16x128xf32>
    %164 = arith.truncf %163 : vector<16x128xf32> to vector<16x128xbf16>
    %c0_83 = arith.constant 0 : index
    %c0_84 = arith.constant 0 : index
    %165 = vector.load %arg17[%c0_83, %c0_84] : memref<128x128xbf16, #tpu.memory_space<vmem>>, vector<128x128xbf16>
    %cst_85 = arith.constant dense<0.000000e+00> : vector<16x128xf32>
    %166 = tpu.matmul %164, %165, %cst_85 {dimension_numbers = #tpu.dot_dimension_numbers<[1], [0], [0], [1], [0, 0, 1, 1], [], []>} : vector<16x128xbf16>, vector<128x128xbf16>, vector<16x128xf32> -> vector<16x128xf32>
    %c0_86 = arith.constant 0 : index
    %c0_87 = arith.constant 0 : index
    %167 = vector.load %arg18[%c0_86, %c0_87] : memref<1x128xf32, #tpu.memory_space<vmem>>, vector<1x128xf32>
    %168 = vector.broadcast %167 : vector<1x128xf32> to vector<16x128xf32>
    %169 = arith.addf %166, %168 : vector<16x128xf32>
    %cst_88 = arith.constant 5.000000e-01 : f32
    %170 = vector.broadcast %cst_88 : f32 to vector<16x128xf32>
    %171 = arith.mulf %170, %169 : vector<16x128xf32>
    %172 = math.tanh %171 : vector<16x128xf32>
    %cst_89 = arith.constant 1.000000e+00 : f32
    %173 = vector.broadcast %cst_89 : f32 to vector<16x128xf32>
    %174 = arith.addf %172, %173 : vector<16x128xf32>
    %cst_90 = arith.constant 5.000000e-01 : f32
    %175 = vector.broadcast %cst_90 : f32 to vector<16x128xf32>
    %176 = arith.mulf %175, %174 : vector<16x128xf32>
    %c0_91 = arith.constant 0 : index
    %c0_92 = arith.constant 0 : index
    %177 = vector.load %arg19[%c0_91, %c0_92] : memref<128x128xbf16, #tpu.memory_space<vmem>>, vector<128x128xbf16>
    %cst_93 = arith.constant dense<0.000000e+00> : vector<16x128xf32>
    %178 = tpu.matmul %164, %177, %cst_93 {dimension_numbers = #tpu.dot_dimension_numbers<[1], [0], [0], [1], [0, 0, 1, 1], [], []>} : vector<16x128xbf16>, vector<128x128xbf16>, vector<16x128xf32> -> vector<16x128xf32>
    %c0_94 = arith.constant 0 : index
    %c0_95 = arith.constant 0 : index
    %179 = vector.load %arg20[%c0_94, %c0_95] : memref<1x128xf32, #tpu.memory_space<vmem>>, vector<1x128xf32>
    %180 = vector.broadcast %179 : vector<1x128xf32> to vector<16x128xf32>
    %181 = arith.addf %178, %180 : vector<16x128xf32>
    %cst_96 = arith.constant 0.000000e+00 : f32
    %182 = vector.broadcast %cst_96 : f32 to vector<16x128xf32>
    %183 = arith.maximumf %181, %182 : vector<16x128xf32>
    %184 = arith.subf %183, %163 : vector<16x128xf32>
    %185 = arith.mulf %176, %184 : vector<16x128xf32>
    %186 = arith.addf %163, %185 : vector<16x128xf32>
    %187 = arith.truncf %186 : vector<16x128xf32> to vector<16x128xbf16>
    %c0_97 = arith.constant 0 : index
    %c0_98 = arith.constant 0 : index
    %188 = vector.load %arg21[%c0_97, %c0_98] : memref<16x128xbf16, #tpu.memory_space<vmem>>, vector<16x128xbf16>
    tpu.vector_store %arg21[%c0_97, %c0_98], %187 {strides = array<i32>} : memref<16x128xbf16, #tpu.memory_space<vmem>>, vector<16x128xbf16>,
    return
  }
  func.func @transform_0(%arg0: i32) -> (i32, i32) {
    %c0_i32 = arith.constant 0 : i32
    %c0_i32_0 = arith.constant 0 : i32
    return %arg0, %c0_i32 : i32, i32
  }
  func.func @transform_1(%arg0: i32) -> (i32, i32) {
    %c0_i32 = arith.constant 0 : i32
    %c0_i32_0 = arith.constant 0 : i32
    return %arg0, %c0_i32 : i32, i32
  }
  func.func @transform_2(%arg0: i32) -> (i32, i32, i32) {
    %c0_i32 = arith.constant 0 : i32
    %c0_i32_0 = arith.constant 0 : i32
    %c0_i32_1 = arith.constant 0 : i32
    %c0_i32_2 = arith.constant 0 : i32
    return %c0_i32, %c0_i32_0, %c0_i32_1 : i32, i32, i32
  }
  func.func @transform_3(%arg0: i32) -> (i32, i32) {
    %c0_i32 = arith.constant 0 : i32
    %c0_i32_0 = arith.constant 0 : i32
    %c0_i32_1 = arith.constant 0 : i32
    return %c0_i32, %c0_i32_0 : i32, i32
  }
  func.func @transform_4(%arg0: i32) -> (i32, i32) {
    %c0_i32 = arith.constant 0 : i32
    %c0_i32_0 = arith.constant 0 : i32
    %c0_i32_1 = arith.constant 0 : i32
    return %c0_i32, %c0_i32_0 : i32, i32
  }
  func.func @transform_5(%arg0: i32) -> (i32, i32, i32) {
    %c0_i32 = arith.constant 0 : i32
    %c0_i32_0 = arith.constant 0 : i32
    %c0_i32_1 = arith.constant 0 : i32
    %c0_i32_2 = arith.constant 0 : i32
    return %c0_i32, %c0_i32_0, %c0_i32_1 : i32, i32, i32
  }
  func.func @transform_6(%arg0: i32) -> (i32, i32) {
    %c0_i32 = arith.constant 0 : i32
    %c0_i32_0 = arith.constant 0 : i32
    %c0_i32_1 = arith.constant 0 : i32
    return %c0_i32, %c0_i32_0 : i32, i32
  }
  func.func @transform_7(%arg0: i32) -> (i32, i32) {
    %c0_i32 = arith.constant 0 : i32
    %c0_i32_0 = arith.constant 0 : i32
    %c0_i32_1 = arith.constant 0 : i32
    return %c0_i32, %c0_i32_0 : i32, i32
  }
  func.func @transform_8(%arg0: i32) -> (i32, i32, i32) {
    %c0_i32 = arith.constant 0 : i32
    %c0_i32_0 = arith.constant 0 : i32
    %c0_i32_1 = arith.constant 0 : i32
    %c0_i32_2 = arith.constant 0 : i32
    return %c0_i32, %c0_i32_0, %c0_i32_1 : i32, i32, i32
  }
  func.func @transform_9(%arg0: i32) -> (i32, i32) {
    %c0_i32 = arith.constant 0 : i32
    %c0_i32_0 = arith.constant 0 : i32
    %c0_i32_1 = arith.constant 0 : i32
    return %c0_i32, %c0_i32_0 : i32, i32
  }
  func.func @transform_10(%arg0: i32) -> (i32, i32) {
    %c0_i32 = arith.constant 0 : i32
    %c0_i32_0 = arith.constant 0 : i32
    %c0_i32_1 = arith.constant 0 : i32
    return %c0_i32, %c0_i32_0 : i32, i32
  }
  func.func @transform_11(%arg0: i32) -> (i32, i32) {
    %c0_i32 = arith.constant 0 : i32
    %c0_i32_0 = arith.constant 0 : i32
    %c0_i32_1 = arith.constant 0 : i32
    return %c0_i32, %c0_i32_0 : i32, i32
  }
  func.func @transform_12(%arg0: i32) -> (i32, i32) {
    %c0_i32 = arith.constant 0 : i32
    %c0_i32_0 = arith.constant 0 : i32
    %c0_i32_1 = arith.constant 0 : i32
    return %c0_i32, %c0_i32_0 : i32, i32
  }
  func.func @transform_13(%arg0: i32) -> (i32, i32) {
    %c0_i32 = arith.constant 0 : i32
    %c0_i32_0 = arith.constant 0 : i32
    %c0_i32_1 = arith.constant 0 : i32
    return %c0_i32, %c0_i32_0 : i32, i32
  }
  func.func @transform_14(%arg0: i32) -> (i32, i32) {
    %c0_i32 = arith.constant 0 : i32
    %c0_i32_0 = arith.constant 0 : i32
    %c0_i32_1 = arith.constant 0 : i32
    return %c0_i32, %c0_i32_0 : i32, i32
  }
  func.func @transform_15(%arg0: i32) -> (i32, i32) {
    %c0_i32 = arith.constant 0 : i32
    %c0_i32_0 = arith.constant 0 : i32
    %c0_i32_1 = arith.constant 0 : i32
    return %c0_i32, %c0_i32_0 : i32, i32
  }
  func.func @transform_16(%arg0: i32) -> (i32, i32) {
    %c0_i32 = arith.constant 0 : i32
    %c0_i32_0 = arith.constant 0 : i32
    %c0_i32_1 = arith.constant 0 : i32
    return %c0_i32, %c0_i32_0 : i32, i32
  }
  func.func @transform_17(%arg0: i32) -> (i32, i32) {
    %c0_i32 = arith.constant 0 : i32
    %c0_i32_0 = arith.constant 0 : i32
    %c0_i32_1 = arith.constant 0 : i32
    return %c0_i32, %c0_i32_0 : i32, i32
  }
  func.func @transform_18(%arg0: i32) -> (i32, i32) {
    %c0_i32 = arith.constant 0 : i32
    %c0_i32_0 = arith.constant 0 : i32
    %c0_i32_1 = arith.constant 0 : i32
    return %c0_i32, %c0_i32_0 : i32, i32
  }
  func.func @transform_19(%arg0: i32) -> (i32, i32) {
    %c0_i32 = arith.constant 0 : i32
    %c0_i32_0 = arith.constant 0 : i32
    %c0_i32_1 = arith.constant 0 : i32
    return %c0_i32, %c0_i32_0 : i32, i32
  }
  func.func @transform_20(%arg0: i32) -> (i32, i32) {
    %c0_i32 = arith.constant 0 : i32
    %c0_i32_0 = arith.constant 0 : i32
    return %arg0, %c0_i32 : i32, i32
  }
}

</mosaic_0001>

<llo_original>
// kernel: tpu_custom_call.1
$region0: #{tpu_custom_call.1}
  #allocation0 [shape = 'u32[]', space=smem, size = 0x4, offset = 0x4, fixed_abs, tag = 'smem constant byte address 0x4 - core index']
  #allocation1 [shape = 'u32[72,128]{1,0:T(1,128)}', space=vmem, size = 0x9000, scoped, tag = 'internal scratch']
  %s0 = inlined_call_operand.hbm [shape: bf16[256,128], index: 0, kind: input, shape index: {}]
  %s1 = inlined_call_operand.hbm [shape: bf16[16,64], index: 1, kind: input, shape index: {}]
  %s2 = inlined_call_operand.hbm [shape: bf16[2,128,128], index: 2, kind: input, shape index: {}]
  %s3 = inlined_call_operand.hbm [shape: f32[1,128], index: 3, kind: input, shape index: {}]
  %s4 = inlined_call_operand.hbm [shape: bf16[128,128], index: 4, kind: input, shape index: {}]
  %s5 = inlined_call_operand.hbm [shape: bf16[3,128,256], index: 5, kind: input, shape index: {}]
  %s6 = inlined_call_operand.vmem [shape: f32[1,256], index: 6, kind: input, shape index: {}]
  %s7 = inlined_call_operand.hbm [shape: bf16[256,128], index: 7, kind: input, shape index: {}]
  %s8 = inlined_call_operand.hbm [shape: bf16[4,128,256], index: 8, kind: input, shape index: {}]
  %s9 = inlined_call_operand.vmem [shape: f32[1,256], index: 9, kind: input, shape index: {}]
  %s10 = inlined_call_operand.hbm [shape: bf16[256,128], index: 10, kind: input, shape index: {}]
  %s11 = inlined_call_operand.hbm [shape: bf16[64,128], index: 11, kind: input, shape index: {}]
  %s12 = inlined_call_operand.hbm [shape: bf16[128,128], index: 12, kind: input, shape index: {}]
  %s13 = inlined_call_operand.vmem [shape: f32[1,128], index: 13, kind: input, shape index: {}]
  %s14 = inlined_call_operand.hbm [shape: bf16[128,128], index: 14, kind: input, shape index: {}]
  %s15 = inlined_call_operand.vmem [shape: f32[1,128], index: 15, kind: input, shape index: {}]
  %s16 = inlined_call_operand.hbm [shape: bf16[128,128], index: 16, kind: input, shape index: {}]
  %s17 = inlined_call_operand.vmem [shape: f32[1,128], index: 17, kind: input, shape index: {}]
  %s18 = inlined_call_operand.hbm [shape: bf16[128,128], index: 18, kind: input, shape index: {}]
  %s19 = inlined_call_operand.vmem [shape: f32[1,128], index: 19, kind: input, shape index: {}]
  %s20 = inlined_call_operand.hbm [shape: bf16[16,128], index: 20, kind: output, shape index: {}]
  %s21 = sld [smem:[#allocation0]]
  $region146: #{tpu_custom_call.1} parent=0
    _
  %s23 = ssub.s32 1, %s21
  %s24 = scalar_select 0, %s23, %s21
  $region1: #{tpu_custom_call.1} parent=0
    #allocation2 [shape = 'u8[65536]{0}', space=vmem, size = 0x10000, scoped, tag = 'input window, operand 0, single buffered']
    #allocation3 [shape = 's32[1]{0}', space=sflag, size = 0x4, scoped, tag = 'scoped memory for tpu_custom_call.1']
    #allocation4 [shape = 's32[1]{0}', space=sflag, size = 0x4, scoped, tag = 'scoped memory for tpu_custom_call.1']
    #allocation5 [shape = 'u8[4096]{0}', space=vmem, size = 0x1000, scoped, tag = 'input window, operand 1, single buffered']
    #allocation6 [shape = 's32[1]{0}', space=sflag, size = 0x4, scoped, tag = 'scoped memory for tpu_custom_call.1']
    #allocation7 [shape = 'u8[65536]{0}', space=vmem, size = 0x10000, scoped, tag = 'input window, operand 2, single buffered']
    #allocation8 [shape = 'u8[512]{0}', space=vmem, size = 0x400, scoped, tag = 'input window, operand 3, single buffered']
    #allocation9 [shape = 's32[1]{0}', space=sflag, size = 0x4, scoped, tag = 'scoped memory for tpu_custom_call.1']
    #allocation10 [shape = 'u8[32768]{0}', space=vmem, size = 0x8000, scoped, tag = 'input window, operand 4, single buffered']
    #allocation11 [shape = 'u8[196608]{0}', space=vmem, size = 0x30000, scoped, tag = 'input window, operand 5, single buffered']
    #allocation12 [shape = 's32[1]{0}', space=sflag, size = 0x4, scoped, tag = 'scoped memory for tpu_custom_call.1']
    #allocation13 [shape = 'u8[65536]{0}', space=vmem, size = 0x10000, scoped, tag = 'input window, operand 7, single buffered']
    #allocation14 [shape = 'u8[262144]{0}', space=vmem, size = 0x40000, scoped, tag = 'input window, operand 8, single buffered']
    #allocation15 [shape = 's32[1]{0}', space=sflag, size = 0x4, scoped, tag = 'scoped memory for tpu_custom_call.1']
    #allocation16 [shape = 'u8[65536]{0}', space=vmem, size = 0x10000, scoped, tag = 'input window, operand 10, single buffered']
    #allocation17 [shape = 'u8[16384]{0}', space=vmem, size = 0x4000, scoped, tag = 'input window, operand 11, single buffered']
    #allocation18 [shape = 's32[1]{0}', space=sflag, size = 0x4, scoped, tag = 'scoped memory for tpu_custom_call.1']
    #allocation19 [shape = 'u8[32768]{0}', space=vmem, size = 0x8000, scoped, tag = 'input window, operand 12, single buffered']
    #allocation20 [shape = 'u8[32768]{0}', space=vmem, size = 0x8000, scoped, tag = 'input window, operand 14, single buffered']
    #allocation21 [shape = 's32[1]{0}', space=sflag, size = 0x4, scoped, tag = 'scoped memory for tpu_custom_call.1']
    #allocation22 [shape = 'u8[32768]{0}', space=vmem, size = 0x8000, scoped, tag = 'input window, operand 16, single buffered']
    #allocation23 [shape = 'u8[32768]{0}', space=vmem, size = 0x8000, scoped, tag = 'input window, operand 18, single buffered']
    #allocation24 [shape = 's32[1]{0}', space=sflag, size = 0x4, scoped, tag = 'scoped memory for tpu_custom_call.1']
    #allocation25 [shape = 'u8[4096]{0}', space=vmem, size = 0x1000, scoped, tag = 'output window, operand 0, single buffered']
    %25 = vsyncpa [#allocation3], 0
    %26 = vsyncpa [#allocation6], 0
    %27 = vsyncpa [#allocation9], 0
    %28 = vsyncpa [#allocation12], 0
    %29 = vsyncpa [#allocation15], 0
    %30 = vsyncpa [#allocation18], 0
    %31 = vsyncpa [#allocation21], 0
    %32 = vsyncpa [#allocation24], 0
    %33 = vsyncpa [#allocation4], 0
    // Predicated region
    $region2: #{tpu_custom_call.1} parent=1 // pred_check
      _
    $region3: #{tpu_custom_call.1} parent=1 // pred_check_branch
      %35 = sbr.rel (0) target = $region5
    $region4: #{tpu_custom_call.1} parent=1 // pred_region
      %37 = vsyncadd [#allocation3], 0
      %s38 = sshll.u32 %s0, 4
      %s39 = int_to_ptr.hbm [resolvable:$true] %s38
      %s40 = sshll.u32 [#allocation2], 4
      %s41 = int_to_ptr.vmem [resolvable:$true] %s40
      %46 = dma.hbm_to_vmem [thread:$0]  %s39, 2048, %s41, [#allocation3], 64, 64, 4
    $region5: #{tpu_custom_call.1} parent=1 // pred_fallthru
      _
    // Predicated region
    $region6: #{tpu_custom_call.1} parent=1 // pred_check
      _
    $region7: #{tpu_custom_call.1} parent=1 // pred_check_branch
      %48 = sbr.rel (0) target = $region9
    $region8: #{tpu_custom_call.1} parent=1 // pred_region
      %50 = vsyncadd [#allocation6], 0
      %s51 = sshll.u32 %s1, 4
      %s52 = int_to_ptr.hbm [resolvable:$true] %s51
      %s53 = sshll.u32 [#allocation5], 4
      %s54 = int_to_ptr.vmem [resolvable:$true] %s53
      %59 = dma.hbm_to_vmem [thread:$0]  %s52, 128, %s54, [#allocation6], 64, 64, 4
    $region9: #{tpu_custom_call.1} parent=1 // pred_fallthru
      _
    // Predicated region
    $region10: #{tpu_custom_call.1} parent=1 // pred_check
      _
    $region11: #{tpu_custom_call.1} parent=1 // pred_check_branch
      %61 = sbr.rel (0) target = $region13
    $region12: #{tpu_custom_call.1} parent=1 // pred_region
      %63 = vsyncadd [#allocation6], 0
      %s64 = sshll.u32 %s2, 4
      %s65 = int_to_ptr.hbm [resolvable:$true] %s64
      %s66 = sshll.u32 [#allocation7], 4
      %s67 = int_to_ptr.vmem [resolvable:$true] %s66
      %72 = dma.hbm_to_vmem [thread:$0]  %s65, 2048, %s67, [#allocation6], 64, 64, 4
    $region13: #{tpu_custom_call.1} parent=1 // pred_fallthru
      _
    // Predicated region
    $region14: #{tpu_custom_call.1} parent=1 // pred_check
      _
    $region15: #{tpu_custom_call.1} parent=1 // pred_check_branch
      %74 = sbr.rel (0) target = $region17
    $region16: #{tpu_custom_call.1} parent=1 // pred_region
      %76 = vsyncadd [#allocation9], 0
      %s78 = sshll.u32 %s3, 4
      %s79 = int_to_ptr.hbm [resolvable:$true] %s78
      %s80 = sshll.u32 [#allocation8], 4
      %s81 = int_to_ptr.vmem [resolvable:$true] %s80
      %83 = dma.hbm_to_vmem [thread:$0]  %s79, 16, %s81, [#allocation9]
    $region17: #{tpu_custom_call.1} parent=1 // pred_fallthru
      _
    // Predicated region
    $region18: #{tpu_custom_call.1} parent=1 // pred_check
      _
    $region19: #{tpu_custom_call.1} parent=1 // pred_check_branch
      %85 = sbr.rel (0) target = $region21
    $region20: #{tpu_custom_call.1} parent=1 // pred_region
      %87 = vsyncadd [#allocation9], 0
      %s88 = sshll.u32 %s4, 4
      %s89 = int_to_ptr.hbm [resolvable:$true] %s88
      %s90 = sshll.u32 [#allocation10], 4
      %s91 = int_to_ptr.vmem [resolvable:$true] %s90
      %96 = dma.hbm_to_vmem [thread:$0]  %s89, 1024, %s91, [#allocation9], 64, 64, 4
    $region21: #{tpu_custom_call.1} parent=1 // pred_fallthru
      _
    // Predicated region
    $region22: #{tpu_custom_call.1} parent=1 // pred_check
      _
    $region23: #{tpu_custom_call.1} parent=1 // pred_check_branch
      %98 = sbr.rel (0) target = $region25
    $region24: #{tpu_custom_call.1} parent=1 // pred_region
      %100 = vsyncadd [#allocation12], 0
      %s101 = sshll.u32 %s5, 4
      %s102 = int_to_ptr.hbm [resolvable:$true] %s101
      %s103 = sshll.u32 [#allocation11], 4
      %s104 = int_to_ptr.vmem [resolvable:$true] %s103
      %109 = dma.hbm_to_vmem [thread:$0]  %s102, 6144, %s104, [#allocation12], 128, 128, 8
    $region25: #{tpu_custom_call.1} parent=1 // pred_fallthru
      _
    // Predicated region
    $region26: #{tpu_custom_call.1} parent=1 // pred_check
      _
    $region27: #{tpu_custom_call.1} parent=1 // pred_check_branch
      %111 = sbr.rel (0) target = $region29
    $region28: #{tpu_custom_call.1} parent=1 // pred_region
      _
    $region29: #{tpu_custom_call.1} parent=1 // pred_fallthru
      _
    // Predicated region
    $region30: #{tpu_custom_call.1} parent=1 // pred_check
      _
    $region31: #{tpu_custom_call.1} parent=1 // pred_check_branch
      %113 = sbr.rel (0) target = $region33
    $region32: #{tpu_custom_call.1} parent=1 // pred_region
      %115 = vsyncadd [#allocation12], 0
      %s116 = sshll.u32 %s7, 4
      %s117 = int_to_ptr.hbm [resolvable:$true] %s116
      %s118 = sshll.u32 [#allocation13], 4
      %s119 = int_to_ptr.vmem [resolvable:$true] %s118
      %124 = dma.hbm_to_vmem [thread:$0]  %s117, 2048, %s119, [#allocation12], 64, 64, 4
    $region33: #{tpu_custom_call.1} parent=1 // pred_fallthru
      _
    // Predicated region
    $region34: #{tpu_custom_call.1} parent=1 // pred_check
      _
    $region35: #{tpu_custom_call.1} parent=1 // pred_check_branch
      %126 = sbr.rel (0) target = $region37
    $region36: #{tpu_custom_call.1} parent=1 // pred_region
      %128 = vsyncadd [#allocation15], 0
      %s129 = sshll.u32 %s8, 4
      %s130 = int_to_ptr.hbm [resolvable:$true] %s129
      %s131 = sshll.u32 [#allocation14], 4
      %s132 = int_to_ptr.vmem [resolvable:$true] %s131
      %137 = dma.hbm_to_vmem [thread:$0]  %s130, 8192, %s132, [#allocation15], 128, 128, 8
    $region37: #{tpu_custom_call.1} parent=1 // pred_fallthru
      _
    // Predicated region
    $region38: #{tpu_custom_call.1} parent=1 // pred_check
      _
    $region39: #{tpu_custom_call.1} parent=1 // pred_check_branch
      %139 = sbr.rel (0) target = $region41
    $region40: #{tpu_custom_call.1} parent=1 // pred_region
      _
    $region41: #{tpu_custom_call.1} parent=1 // pred_fallthru
      _
    // Predicated region
    $region42: #{tpu_custom_call.1} parent=1 // pred_check
      _
    $region43: #{tpu_custom_call.1} parent=1 // pred_check_branch
      %141 = sbr.rel (0) target = $region45
    $region44: #{tpu_custom_call.1} parent=1 // pred_region
      %143 = vsyncadd [#allocation15], 0
      %s144 = sshll.u32 %s10, 4
      %s145 = int_to_ptr.hbm [resolvable:$true] %s144
      %s146 = sshll.u32 [#allocation16], 4
      %s147 = int_to_ptr.vmem [resolvable:$true] %s146
      %152 = dma.hbm_to_vmem [thread:$0]  %s145, 2048, %s147, [#allocation15], 64, 64, 4
    $region45: #{tpu_custom_call.1} parent=1 // pred_fallthru
      _
    // Predicated region
    $region46: #{tpu_custom_call.1} parent=1 // pred_check
      _
    $region47: #{tpu_custom_call.1} parent=1 // pred_check_branch
      %154 = sbr.rel (0) target = $region49
    $region48: #{tpu_custom_call.1} parent=1 // pred_region
      %156 = vsyncadd [#allocation18], 0
      %s157 = sshll.u32 %s11, 4
      %s158 = int_to_ptr.hbm [resolvable:$true] %s157
      %s159 = sshll.u32 [#allocation17], 4
      %s160 = int_to_ptr.vmem [resolvable:$true] %s159
      %165 = dma.hbm_to_vmem [thread:$0]  %s158, 512, %s160, [#allocation18], 64, 64, 4
    $region49: #{tpu_custom_call.1} parent=1 // pred_fallthru
      _
    // Predicated region
    $region50: #{tpu_custom_call.1} parent=1 // pred_check
      _
    $region51: #{tpu_custom_call.1} parent=1 // pred_check_branch
      %167 = sbr.rel (0) target = $region53
    $region52: #{tpu_custom_call.1} parent=1 // pred_region
      %169 = vsyncadd [#allocation18], 0
      %s170 = sshll.u32 %s12, 4
      %s171 = int_to_ptr.hbm [resolvable:$true] %s170
      %s172 = sshll.u32 [#allocation19], 4
      %s173 = int_to_ptr.vmem [resolvable:$true] %s172
      %178 = dma.hbm_to_vmem [thread:$0]  %s171, 1024, %s173, [#allocation18], 64, 64, 4
    $region53: #{tpu_custom_call.1} parent=1 // pred_fallthru
      _
    // Predicated region
    $region54: #{tpu_custom_call.1} parent=1 // pred_check
      _
    $region55: #{tpu_custom_call.1} parent=1 // pred_check_branch
      %180 = sbr.rel (0) target = $region57
    $region56: #{tpu_custom_call.1} parent=1 // pred_region
      _
    $region57: #{tpu_custom_call.1} parent=1 // pred_fallthru
      _
    // Predicated region
    $region58: #{tpu_custom_call.1} parent=1 // pred_check
      _
    $region59: #{tpu_custom_call.1} parent=1 // pred_check_branch
      %182 = sbr.rel (0) target = $region61
    $region60: #{tpu_custom_call.1} parent=1 // pred_region
      %184 = vsyncadd [#allocation21], 0
      %s185 = sshll.u32 %s14, 4
      %s186 = int_to_ptr.hbm [resolvable:$true] %s185
      %s187 = sshll.u32 [#allocation20], 4
      %s188 = int_to_ptr.vmem [resolvable:$true] %s187
      %193 = dma.hbm_to_vmem [thread:$0]  %s186, 1024, %s188, [#allocation21], 64, 64, 4
    $region61: #{tpu_custom_call.1} parent=1 // pred_fallthru
      _
    // Predicated region
    $region62: #{tpu_custom_call.1} parent=1 // pred_check
      _
    $region63: #{tpu_custom_call.1} parent=1 // pred_check_branch
      %195 = sbr.rel (0) target = $region65
    $region64: #{tpu_custom_call.1} parent=1 // pred_region
      _
    $region65: #{tpu_custom_call.1} parent=1 // pred_fallthru
      _
    // Predicated region
    $region66: #{tpu_custom_call.1} parent=1 // pred_check
      _
    $region67: #{tpu_custom_call.1} parent=1 // pred_check_branch
      %197 = sbr.rel (0) target = $region69
    $region68: #{tpu_custom_call.1} parent=1 // pred_region
      %199 = vsyncadd [#allocation21], 0
      %s200 = sshll.u32 %s16, 4
      %s201 = int_to_ptr.hbm [resolvable:$true] %s200
      %s202 = sshll.u32 [#allocation22], 4
      %s203 = int_to_ptr.vmem [resolvable:$true] %s202
      %208 = dma.hbm_to_vmem [thread:$0]  %s201, 1024, %s203, [#allocation21], 64, 64, 4
    $region69: #{tpu_custom_call.1} parent=1 // pred_fallthru
      _
    // Predicated region
    $region70: #{tpu_custom_call.1} parent=1 // pred_check
      _
    $region71: #{tpu_custom_call.1} parent=1 // pred_check_branch
      %210 = sbr.rel (0) target = $region73
    $region72: #{tpu_custom_call.1} parent=1 // pred_region
      _
    $region73: #{tpu_custom_call.1} parent=1 // pred_fallthru
      _
    // Predicated region
    $region74: #{tpu_custom_call.1} parent=1 // pred_check
      _
    $region75: #{tpu_custom_call.1} parent=1 // pred_check_branch
      %212 = sbr.rel (0) target = $region77
    $region76: #{tpu_custom_call.1} parent=1 // pred_region
      %214 = vsyncadd [#allocation24], 0
      %s215 = sshll.u32 %s18, 4
      %s216 = int_to_ptr.hbm [resolvable:$true] %s215
      %s217 = sshll.u32 [#allocation23], 4
      %s218 = int_to_ptr.vmem [resolvable:$true] %s217
      %223 = dma.hbm_to_vmem [thread:$0]  %s216, 1024, %s218, [#allocation24], 64, 64, 4
    $region77: #{tpu_custom_call.1} parent=1 // pred_fallthru
      _
    // Predicated region
    $region78: #{tpu_custom_call.1} parent=1 // pred_check
      _
    $region79: #{tpu_custom_call.1} parent=1 // pred_check_branch
      %225 = sbr.rel (0) target = $region81
    $region80: #{tpu_custom_call.1} parent=1 // pred_region
      _
    $region81: #{tpu_custom_call.1} parent=1 // pred_fallthru
      _
    // Predicated region
    $region82: #{tpu_custom_call.1} parent=1 // pred_check
      _
    $region83: #{tpu_custom_call.1} parent=1 // pred_check_branch
      %227 = sbr.rel (0) target = $region85
    $region84: #{tpu_custom_call.1} parent=1 // pred_region
      %229 = dma.done [#allocation3], 2048
    $region85: #{tpu_custom_call.1} parent=1 // pred_fallthru
      _
    // Predicated region
    $region86: #{tpu_custom_call.1} parent=1 // pred_check
      _
    $region87: #{tpu_custom_call.1} parent=1 // pred_check_branch
      %231 = sbr.rel (0) target = $region89
    $region88: #{tpu_custom_call.1} parent=1 // pred_region
      %233 = dma.done [#allocation6], 128
    $region89: #{tpu_custom_call.1} parent=1 // pred_fallthru
      _
    // Predicated region
    $region90: #{tpu_custom_call.1} parent=1 // pred_check
      _
    $region91: #{tpu_custom_call.1} parent=1 // pred_check_branch
      %235 = sbr.rel (0) target = $region93
    $region92: #{tpu_custom_call.1} parent=1 // pred_region
      %237 = dma.done [#allocation6], 2048
    $region93: #{tpu_custom_call.1} parent=1 // pred_fallthru
      _
    // Predicated region
    $region94: #{tpu_custom_call.1} parent=1 // pred_check
      _
    $region95: #{tpu_custom_call.1} parent=1 // pred_check_branch
      %239 = sbr.rel (0) target = $region97
    $region96: #{tpu_custom_call.1} parent=1 // pred_region
      %241 = dma.done [#allocation9], 16
    $region97: #{tpu_custom_call.1} parent=1 // pred_fallthru
      _
    // Predicated region
    $region98: #{tpu_custom_call.1} parent=1 // pred_check
      _
    $region99: #{tpu_custom_call.1} parent=1 // pred_check_branch
      %243 = sbr.rel (0) target = $region101
    $region100: #{tpu_custom_call.1} parent=1 // pred_region
      %245 = dma.done [#allocation9], 1024
    $region101: #{tpu_custom_call.1} parent=1 // pred_fallthru
      _
    // Predicated region
    $region102: #{tpu_custom_call.1} parent=1 // pred_check
      _
    $region103: #{tpu_custom_call.1} parent=1 // pred_check_branch
      %247 = sbr.rel (0) target = $region105
    $region104: #{tpu_custom_call.1} parent=1 // pred_region
      %249 = dma.done [#allocation12], 6144
    $region105: #{tpu_custom_call.1} parent=1 // pred_fallthru
      _
    // Predicated region
    $region106: #{tpu_custom_call.1} parent=1 // pred_check
      _
    $region107: #{tpu_custom_call.1} parent=1 // pred_check_branch
      %251 = sbr.rel (0) target = $region109
    $region108: #{tpu_custom_call.1} parent=1 // pred_region
      %253 = dma.done [#allocation12], 2048
    $region109: #{tpu_custom_call.1} parent=1 // pred_fallthru
      _
    // Predicated region
    $region110: #{tpu_custom_call.1} parent=1 // pred_check
      _
    $region111: #{tpu_custom_call.1} parent=1 // pred_check_branch
      %255 = sbr.rel (0) target = $region113
    $region112: #{tpu_custom_call.1} parent=1 // pred_region
      %257 = dma.done [#allocation15], 8192
    $region113: #{tpu_custom_call.1} parent=1 // pred_fallthru
      _
    // Predicated region
    $region114: #{tpu_custom_call.1} parent=1 // pred_check
      _
    $region115: #{tpu_custom_call.1} parent=1 // pred_check_branch
      %259 = sbr.rel (0) target = $region117
    $region116: #{tpu_custom_call.1} parent=1 // pred_region
      %261 = dma.done [#allocation15], 2048
    $region117: #{tpu_custom_call.1} parent=1 // pred_fallthru
      _
    // Predicated region
    $region118: #{tpu_custom_call.1} parent=1 // pred_check
      _
    $region119: #{tpu_custom_call.1} parent=1 // pred_check_branch
      %263 = sbr.rel (0) target = $region121
    $region120: #{tpu_custom_call.1} parent=1 // pred_region
      %265 = dma.done [#allocation18], 512
    $region121: #{tpu_custom_call.1} parent=1 // pred_fallthru
      _
    // Predicated region
    $region122: #{tpu_custom_call.1} parent=1 // pred_check
      _
    $region123: #{tpu_custom_call.1} parent=1 // pred_check_branch
      %267 = sbr.rel (0) target = $region125
    $region124: #{tpu_custom_call.1} parent=1 // pred_region
      %269 = dma.done [#allocation18], 1024
    $region125: #{tpu_custom_call.1} parent=1 // pred_fallthru
      _
    // Predicated region
    $region126: #{tpu_custom_call.1} parent=1 // pred_check
      _
    $region127: #{tpu_custom_call.1} parent=1 // pred_check_branch
      %271 = sbr.rel (0) target = $region129
    $region128: #{tpu_custom_call.1} parent=1 // pred_region
      %273 = dma.done [#allocation21], 1024
    $region129: #{tpu_custom_call.1} parent=1 // pred_fallthru
      _
    // Predicated region
    $region130: #{tpu_custom_call.1} parent=1 // pred_check
      _
    $region131: #{tpu_custom_call.1} parent=1 // pred_check_branch
      %275 = sbr.rel (0) target = $region133
    $region132: #{tpu_custom_call.1} parent=1 // pred_region
      %277 = dma.done [#allocation21], 1024
    $region133: #{tpu_custom_call.1} parent=1 // pred_fallthru
      _
    // Predicated region
    $region134: #{tpu_custom_call.1} parent=1 // pred_check
      _
    $region135: #{tpu_custom_call.1} parent=1 // pred_check_branch
      %279 = sbr.rel (0) target = $region137
    $region136: #{tpu_custom_call.1} parent=1 // pred_region
      %281 = dma.done [#allocation24], 1024
    $region137: #{tpu_custom_call.1} parent=1 // pred_fallthru
      _
    %v283 = vld [vmem:[#allocation5] sm:$0xf]
    %v284 = vld [vmem:[#allocation5 + $0x4] sm:$0xf]
    %v285 = vld [vmem:[#allocation17] sm:$0xf]
    %v286 = vld [vmem:[#allocation17 + $0x4] sm:$0xf]
    %v287 = vld [vmem:[#allocation17 + $0x8] sm:$0xf]
    %v288 = vld [vmem:[#allocation17 + $0xc] sm:$0xf]
    %v289 = vld [vmem:[#allocation17 + $0x10] sm:$0xf]
    %v290 = vld [vmem:[#allocation17 + $0x14] sm:$0xf]
    %v291 = vld [vmem:[#allocation17 + $0x18] sm:$0xf]
    %v292 = vld [vmem:[#allocation17 + $0x1c] sm:$0xf]
    %v293 = vld [vmem:[#allocation2] sm:$0xf]
    %v294 = vld [vmem:[#allocation2 + $0x4] sm:$0xf]
    %v295 = vld [vmem:[#allocation2 + $0x8] sm:$0xf]
    %v296 = vld [vmem:[#allocation2 + $0xc] sm:$0xf]
    %v297 = vld [vmem:[#allocation2 + $0x10] sm:$0xf]
    %v298 = vld [vmem:[#allocation2 + $0x14] sm:$0xf]
    %v299 = vld [vmem:[#allocation2 + $0x18] sm:$0xf]
    %v300 = vld [vmem:[#allocation2 + $0x1c] sm:$0xf]
    %v301 = vld [vmem:[#allocation2 + $0x20] sm:$0xf]
    %v302 = vld [vmem:[#allocation2 + $0x24] sm:$0xf]
    %v303 = vld [vmem:[#allocation2 + $0x28] sm:$0xf]
    %v304 = vld [vmem:[#allocation2 + $0x2c] sm:$0xf]
    %v305 = vld [vmem:[#allocation2 + $0x30] sm:$0xf]
    %v306 = vld [vmem:[#allocation2 + $0x34] sm:$0xf]
    %v307 = vld [vmem:[#allocation2 + $0x38] sm:$0xf]
    %v308 = vld [vmem:[#allocation2 + $0x3c] sm:$0xf]
    %v309 = vld [vmem:[#allocation2 + $0x40] sm:$0xf]
    %v310 = vld [vmem:[#allocation2 + $0x44] sm:$0xf]
    %v311 = vld [vmem:[#allocation2 + $0x48] sm:$0xf]
    %v312 = vld [vmem:[#allocation2 + $0x4c] sm:$0xf]
    %v313 = vld [vmem:[#allocation2 + $0x50] sm:$0xf]
    %v314 = vld [vmem:[#allocation2 + $0x54] sm:$0xf]
    %v315 = vld [vmem:[#allocation2 + $0x58] sm:$0xf]
    %v316 = vld [vmem:[#allocation2 + $0x5c] sm:$0xf]
    %v317 = vld [vmem:[#allocation2 + $0x60] sm:$0xf]
    %v318 = vld [vmem:[#allocation2 + $0x64] sm:$0xf]
    %v319 = vld [vmem:[#allocation2 + $0x68] sm:$0xf]
    %v320 = vld [vmem:[#allocation2 + $0x6c] sm:$0xf]
    %v321 = vld [vmem:[#allocation7] sm:$0xf]
    %v322 = vld [vmem:[#allocation7 + $0x4] sm:$0xf]
    %v323 = vld [vmem:[#allocation7 + $0x8] sm:$0xf]
    %v324 = vld [vmem:[#allocation7 + $0xc] sm:$0xf]
    %v325 = vld [vmem:[#allocation7 + $0x10] sm:$0xf]
    %v326 = vld [vmem:[#allocation7 + $0x14] sm:$0xf]
    %v327 = vld [vmem:[#allocation7 + $0x18] sm:$0xf]
    %v328 = vld [vmem:[#allocation7 + $0x1c] sm:$0xf]
    %v329 = vld [vmem:[#allocation7 + $0x20] sm:$0xf]
    %v330 = vld [vmem:[#allocation7 + $0x24] sm:$0xf]
    %v331 = vld [vmem:[#allocation7 + $0x28] sm:$0xf]
    %v332 = vld [vmem:[#allocation7 + $0x2c] sm:$0xf]
    %v333 = vld [vmem:[#allocation7 + $0x30] sm:$0xf]
    %v334 = vld [vmem:[#allocation7 + $0x34] sm:$0xf]
    %v335 = vld [vmem:[#allocation7 + $0x38] sm:$0xf]
    %v336 = vld [vmem:[#allocation7 + $0x3c] sm:$0xf]
    %v337 = vld [vmem:[#allocation2 + $0x10] sm:$0xf]
    %v338 = vld [vmem:[#allocation2 + $0x14] sm:$0xf]
    %v339 = vld [vmem:[#allocation2 + $0x18] sm:$0xf]
    %v340 = vld [vmem:[#allocation2 + $0x1c] sm:$0xf]
    %v341 = vld [vmem:[#allocation2 + $0x20] sm:$0xf]
    %v342 = vld [vmem:[#allocation2 + $0x24] sm:$0xf]
    %v343 = vld [vmem:[#allocation2 + $0x28] sm:$0xf]
    %v344 = vld [vmem:[#allocation2 + $0x2c] sm:$0xf]
    %v345 = vld [vmem:[#allocation2 + $0x30] sm:$0xf]
    %v346 = vld [vmem:[#allocation2 + $0x34] sm:$0xf]
    %v347 = vld [vmem:[#allocation2 + $0x38] sm:$0xf]
    %v348 = vld [vmem:[#allocation2 + $0x3c] sm:$0xf]
    %v349 = vld [vmem:[#allocation2 + $0x40] sm:$0xf]
    %v350 = vld [vmem:[#allocation2 + $0x44] sm:$0xf]
    %v351 = vld [vmem:[#allocation2 + $0x48] sm:$0xf]
    %v352 = vld [vmem:[#allocation2 + $0x4c] sm:$0xf]
    %v353 = vld [vmem:[#allocation2 + $0x50] sm:$0xf]
    %v354 = vld [vmem:[#allocation2 + $0x54] sm:$0xf]
    %v355 = vld [vmem:[#allocation2 + $0x58] sm:$0xf]
    %v356 = vld [vmem:[#allocation2 + $0x5c] sm:$0xf]
    %v357 = vld [vmem:[#allocation2 + $0x60] sm:$0xf]
    %v358 = vld [vmem:[#allocation2 + $0x64] sm:$0xf]
    %v359 = vld [vmem:[#allocation2 + $0x68] sm:$0xf]
    %v360 = vld [vmem:[#allocation2 + $0x6c] sm:$0xf]
    %v361 = vld [vmem:[#allocation2 + $0x70] sm:$0xf]
    %v362 = vld [vmem:[#allocation2 + $0x74] sm:$0xf]
    %v363 = vld [vmem:[#allocation2 + $0x78] sm:$0xf]
    %v364 = vld [vmem:[#allocation2 + $0x7c] sm:$0xf]
    %s365 = scalar_lea.vmem [#allocation7], 64
    %v366 = vld [vmem:[%s365] sm:$0xf]
    %v367 = vld [vmem:[%s365 + $0x4] sm:$0xf]
    %v368 = vld [vmem:[%s365 + $0x8] sm:$0xf]
    %v369 = vld [vmem:[%s365 + $0xc] sm:$0xf]
    %v370 = vld [vmem:[%s365 + $0x10] sm:$0xf]
    %v371 = vld [vmem:[%s365 + $0x14] sm:$0xf]
    %v372 = vld [vmem:[%s365 + $0x18] sm:$0xf]
    %v373 = vld [vmem:[%s365 + $0x1c] sm:$0xf]
    %v374 = vld [vmem:[%s365 + $0x20] sm:$0xf]
    %v375 = vld [vmem:[%s365 + $0x24] sm:$0xf]
    %v376 = vld [vmem:[%s365 + $0x28] sm:$0xf]
    %v377 = vld [vmem:[%s365 + $0x2c] sm:$0xf]
    %v378 = vld [vmem:[%s365 + $0x30] sm:$0xf]
    %v379 = vld [vmem:[%s365 + $0x34] sm:$0xf]
    %v380 = vld [vmem:[%s365 + $0x38] sm:$0xf]
    %v381 = vld [vmem:[%s365 + $0x3c] sm:$0xf]
    %v410 = vunpack.c.l.b16 %v337
    %v411 = vunpack.c.l.b16 %v338
    %v412 = vunpack.c.l.b16 %v339
    %v413 = vunpack.c.l.b16 %v340
    %v414 = vunpack.c.l.b16 %v341
    %v415 = vunpack.c.l.b16 %v342
    %v416 = vunpack.c.l.b16 %v343
    %v417 = vunpack.c.l.b16 %v344
    %v418 = vunpack.c.l.b16 %v345
    %v419 = vunpack.c.l.b16 %v346
    %v420 = vunpack.c.l.b16 %v347
    %v421 = vunpack.c.l.b16 %v348
    %v422 = vunpack.c.l.b16 %v349
    %v423 = vunpack.c.l.b16 %v350
    %v424 = vunpack.c.l.b16 %v351
    %v425 = vunpack.c.l.b16 %v352
    %v426 = vunpack.c.l.b16 %v353
    %v427 = vunpack.c.l.b16 %v354
    %v428 = vunpack.c.l.b16 %v355
    %v429 = vunpack.c.l.b16 %v356
    %v430 = vunpack.c.l.b16 %v357
    %v431 = vunpack.c.l.b16 %v358
    %v432 = vunpack.c.l.b16 %v359
    %v433 = vunpack.c.l.b16 %v360
    %v434 = vunpack.c.l.b16 %v361
    %v435 = vunpack.c.l.b16 %v362
    %v436 = vunpack.c.l.b16 %v363
    %v437 = vunpack.c.l.b16 %v364
    %v438 = vpack.c.b16 %v411, %v410
    %v439 = vpack.c.b16 %v413, %v412
    %v440 = vpack.c.b16 %v415, %v414
    %v441 = vpack.c.b16 %v417, %v416
    %v442 = vpack.c.b16 %v419, %v418
    %v443 = vpack.c.b16 %v421, %v420
    %v444 = vpack.c.b16 %v423, %v422
    %v445 = vpack.c.b16 %v425, %v424
    %v446 = vpack.c.b16 %v427, %v426
    %v447 = vpack.c.b16 %v429, %v428
    %v448 = vpack.c.b16 %v431, %v430
    %v449 = vpack.c.b16 %v433, %v432
    %v450 = vpack.c.b16 %v435, %v434
    %v451 = vpack.c.b16 %v437, %v436
    %v482 = vunpack.c.l.b16 %v366
    %v483 = vunpack.c.l.b16 %v367
    %v484 = vunpack.c.l.b16 %v368
    %v485 = vunpack.c.l.b16 %v369
    %v486 = vunpack.c.l.b16 %v370
    %v487 = vunpack.c.l.b16 %v371
    %v488 = vunpack.c.l.b16 %v372
    %v489 = vunpack.c.l.b16 %v373
    %v490 = vunpack.c.l.b16 %v374
    %v491 = vunpack.c.l.b16 %v375
    %v492 = vunpack.c.l.b16 %v376
    %v493 = vunpack.c.l.b16 %v377
    %v494 = vunpack.c.l.b16 %v378
    %v495 = vunpack.c.l.b16 %v379
    %v496 = vunpack.c.l.b16 %v380
    %v497 = vunpack.c.l.b16 %v381
    %v498 = vpack.c.b16 %v483, %v482
    %v499 = vpack.c.b16 %v485, %v484
    %v500 = vpack.c.b16 %v487, %v486
    %v501 = vpack.c.b16 %v489, %v488
    %v502 = vpack.c.b16 %v491, %v490
    %v503 = vpack.c.b16 %v493, %v492
    %v504 = vpack.c.b16 %v495, %v494
    %v505 = vpack.c.b16 %v497, %v496
    %514 = vmatpush.bf16.msra.mxu0 %v505
    %515 = vmatpush.bf16.msra.mxu0 %v504
    %516 = vmatpush.bf16.msra.mxu0 %v503
    %517 = vmatpush.bf16.msra.mxu0 %v502
    %518 = vmatpush.bf16.msra.mxu0 %v501
    %519 = vmatpush.bf16.msra.mxu0 %v500
    %520 = vmatpush.bf16.msra.mxu0 %v499
    %521 = vmatpush.bf16.msra.mxu0 %v498
    %522 = vmatmul.bf16.gmra.mxu0 %v438
    %v523 = vpop.f32.mrf.mxu0
    %v524 = vadd.f32 0.0, %v523
    %v525 = vpop.f32.mrf.mxu0
    %v526 = vadd.f32 0.0, %v525
    %527 = vmatmul.bf16.gmra.mxu0 %v439
    %v528 = vpop.f32.mrf.mxu0
    %v529 = vadd.f32 0.0, %v528
    %v530 = vpop.f32.mrf.mxu0
    %v531 = vadd.f32 0.0, %v530
    %532 = vmatmul.bf16.gmra.mxu0 %v440
    %v533 = vpop.f32.mrf.mxu0
    %v534 = vadd.f32 0.0, %v533
    %v535 = vpop.f32.mrf.mxu0
    %v536 = vadd.f32 0.0, %v535
    %537 = vmatmul.bf16.gmra.mxu0 %v441
    %v538 = vpop.f32.mrf.mxu0
    %v539 = vadd.f32 0.0, %v538
    %v540 = vpop.f32.mrf.mxu0
    %v541 = vadd.f32 0.0, %v540
    %542 = vmatmul.bf16.gmra.mxu0 %v442
    %v543 = vpop.f32.mrf.mxu0
    %v544 = vadd.f32 0.0, %v543
    %v545 = vpop.f32.mrf.mxu0
    %v546 = vadd.f32 0.0, %v545
    %547 = vmatmul.bf16.gmra.mxu0 %v443
    %v548 = vpop.f32.mrf.mxu0
    %v549 = vadd.f32 0.0, %v548
    %v550 = vpop.f32.mrf.mxu0
    %v551 = vadd.f32 0.0, %v550
    %552 = vmatmul.bf16.gmra.mxu0 %v444
    %v553 = vpop.f32.mrf.mxu0
    %v554 = vadd.f32 0.0, %v553
    %v555 = vpop.f32.mrf.mxu0
    %v556 = vadd.f32 0.0, %v555
    %557 = vmatmul.bf16.gmra.mxu0 %v445
    %v558 = vpop.f32.mrf.mxu0
    %v559 = vadd.f32 0.0, %v558
    %v560 = vpop.f32.mrf.mxu0
    %v561 = vadd.f32 0.0, %v560
    %562 = vmatmul.bf16.gmra.mxu0 %v446
    %v563 = vpop.f32.mrf.mxu0
    %v564 = vadd.f32 0.0, %v563
    %v565 = vpop.f32.mrf.mxu0
    %v566 = vadd.f32 0.0, %v565
    %567 = vmatmul.bf16.gmra.mxu0 %v447
    %v568 = vpop.f32.mrf.mxu0
    %v569 = vadd.f32 0.0, %v568
    %v570 = vpop.f32.mrf.mxu0
    %v571 = vadd.f32 0.0, %v570
    %572 = vmatmul.bf16.gmra.mxu0 %v448
    %v573 = vpop.f32.mrf.mxu0
    %v574 = vadd.f32 0.0, %v573
    %v575 = vpop.f32.mrf.mxu0
    %v576 = vadd.f32 0.0, %v575
    %577 = vmatmul.bf16.gmra.mxu0 %v449
    %v578 = vpop.f32.mrf.mxu0
    %v579 = vadd.f32 0.0, %v578
    %v580 = vpop.f32.mrf.mxu0
    %v581 = vadd.f32 0.0, %v580
    %582 = vmatmul.bf16.gmra.mxu0 %v450
    %v583 = vpop.f32.mrf.mxu0
    %v584 = vadd.f32 0.0, %v583
    %v585 = vpop.f32.mrf.mxu0
    %v586 = vadd.f32 0.0, %v585
    %587 = vmatmul.bf16.gmra.mxu0 %v451
    %v588 = vpop.f32.mrf.mxu0
    %v589 = vadd.f32 0.0, %v588
    %v590 = vpop.f32.mrf.mxu0
    %v591 = vadd.f32 0.0, %v590
    %592 = vdwg.mxu0
    %v621 = vunpack.c.l.b16 %v293
    %v622 = vunpack.c.l.b16 %v294
    %v623 = vunpack.c.l.b16 %v295
    %v624 = vunpack.c.l.b16 %v296
    %v625 = vunpack.c.l.b16 %v297
    %v626 = vunpack.c.l.b16 %v298
    %v627 = vunpack.c.l.b16 %v299
    %v628 = vunpack.c.l.b16 %v300
    %v629 = vunpack.c.l.b16 %v301
    %v630 = vunpack.c.l.b16 %v302
    %v631 = vunpack.c.l.b16 %v303
    %v632 = vunpack.c.l.b16 %v304
    %v633 = vunpack.c.l.b16 %v305
    %v634 = vunpack.c.l.b16 %v306
    %v635 = vunpack.c.l.b16 %v307
    %v636 = vunpack.c.l.b16 %v308
    %v637 = vunpack.c.l.b16 %v309
    %v638 = vunpack.c.l.b16 %v310
    %v639 = vunpack.c.l.b16 %v311
    %v640 = vunpack.c.l.b16 %v312
    %v641 = vunpack.c.l.b16 %v313
    %v642 = vunpack.c.l.b16 %v314
    %v643 = vunpack.c.l.b16 %v315
    %v644 = vunpack.c.l.b16 %v316
    %v645 = vunpack.c.l.b16 %v317
    %v646 = vunpack.c.l.b16 %v318
    %v647 = vunpack.c.l.b16 %v319
    %v648 = vunpack.c.l.b16 %v320
    %v649 = vpack.c.b16 %v622, %v621
    %v650 = vpack.c.b16 %v624, %v623
    %v651 = vpack.c.b16 %v626, %v625
    %v652 = vpack.c.b16 %v628, %v627
    %v653 = vpack.c.b16 %v630, %v629
    %v654 = vpack.c.b16 %v632, %v631
    %v655 = vpack.c.b16 %v634, %v633
    %v656 = vpack.c.b16 %v636, %v635
    %v657 = vpack.c.b16 %v638, %v637
    %v658 = vpack.c.b16 %v640, %v639
    %v659 = vpack.c.b16 %v642, %v641
    %v660 = vpack.c.b16 %v644, %v643
    %v661 = vpack.c.b16 %v646, %v645
    %v662 = vpack.c.b16 %v648, %v647
    %v693 = vunpack.c.l.b16 %v321
    %v694 = vunpack.c.l.b16 %v322
    %v695 = vunpack.c.l.b16 %v323
    %v696 = vunpack.c.l.b16 %v324
    %v697 = vunpack.c.l.b16 %v325
    %v698 = vunpack.c.l.b16 %v326
    %v699 = vunpack.c.l.b16 %v327
    %v700 = vunpack.c.l.b16 %v328
    %v701 = vunpack.c.l.b16 %v329
    %v702 = vunpack.c.l.b16 %v330
    %v703 = vunpack.c.l.b16 %v331
    %v704 = vunpack.c.l.b16 %v332
    %v705 = vunpack.c.l.b16 %v333
    %v706 = vunpack.c.l.b16 %v334
    %v707 = vunpack.c.l.b16 %v335
    %v708 = vunpack.c.l.b16 %v336
    %v709 = vpack.c.b16 %v694, %v693
    %v710 = vpack.c.b16 %v696, %v695
    %v711 = vpack.c.b16 %v698, %v697
    %v712 = vpack.c.b16 %v700, %v699
    %v713 = vpack.c.b16 %v702, %v701
    %v714 = vpack.c.b16 %v704, %v703
    %v715 = vpack.c.b16 %v706, %v705
    %v716 = vpack.c.b16 %v708, %v707
    %725 = vmatpush.bf16.msra.mxu0 %v716
    %726 = vmatpush.bf16.msra.mxu0 %v715
    %727 = vmatpush.bf16.msra.mxu0 %v714
    %728 = vmatpush.bf16.msra.mxu0 %v713
    %729 = vmatpush.bf16.msra.mxu0 %v712
    %730 = vmatpush.bf16.msra.mxu0 %v711
    %731 = vmatpush.bf16.msra.mxu0 %v710
    %732 = vmatpush.bf16.msra.mxu0 %v709
    %733 = vmatmul.bf16.gmra.mxu0 %v649
    %v734 = vpop.f32.mrf.mxu0
    %v735 = vadd.f32 %v524, %v734
    %v736 = vpop.f32.mrf.mxu0
    %v737 = vadd.f32 %v526, %v736
    %738 = vmatmul.bf16.gmra.mxu0 %v650
    %v739 = vpop.f32.mrf.mxu0
    %v740 = vadd.f32 %v529, %v739
    %v741 = vpop.f32.mrf.mxu0
    %v742 = vadd.f32 %v531, %v741
    %743 = vmatmul.bf16.gmra.mxu0 %v651
    %v744 = vpop.f32.mrf.mxu0
    %v745 = vadd.f32 %v534, %v744
    %v746 = vpop.f32.mrf.mxu0
    %v747 = vadd.f32 %v536, %v746
    %748 = vmatmul.bf16.gmra.mxu0 %v652
    %v749 = vpop.f32.mrf.mxu0
    %v750 = vadd.f32 %v539, %v749
    %v751 = vpop.f32.mrf.mxu0
    %v752 = vadd.f32 %v541, %v751
    %753 = vmatmul.bf16.gmra.mxu0 %v653
    %v754 = vpop.f32.mrf.mxu0
    %v755 = vadd.f32 %v544, %v754
    %v756 = vpop.f32.mrf.mxu0
    %v757 = vadd.f32 %v546, %v756
    %758 = vmatmul.bf16.gmra.mxu0 %v654
    %v759 = vpop.f32.mrf.mxu0
    %v760 = vadd.f32 %v549, %v759
    %v761 = vpop.f32.mrf.mxu0
    %v762 = vadd.f32 %v551, %v761
    %763 = vmatmul.bf16.gmra.mxu0 %v655
    %v764 = vpop.f32.mrf.mxu0
    %v765 = vadd.f32 %v554, %v764
    %v766 = vpop.f32.mrf.mxu0
    %v767 = vadd.f32 %v556, %v766
    %768 = vmatmul.bf16.gmra.mxu0 %v656
    %v769 = vpop.f32.mrf.mxu0
    %v770 = vadd.f32 %v559, %v769
    %v771 = vpop.f32.mrf.mxu0
    %v772 = vadd.f32 %v561, %v771
    %773 = vmatmul.bf16.gmra.mxu0 %v657
    %v774 = vpop.f32.mrf.mxu0
    %v775 = vadd.f32 %v564, %v774
    %v776 = vpop.f32.mrf.mxu0
    %v777 = vadd.f32 %v566, %v776
    %778 = vmatmul.bf16.gmra.mxu0 %v658
    %v779 = vpop.f32.mrf.mxu0
    %v780 = vadd.f32 %v569, %v779
    %v781 = vpop.f32.mrf.mxu0
    %v782 = vadd.f32 %v571, %v781
    %783 = vmatmul.bf16.gmra.mxu0 %v659
    %v784 = vpop.f32.mrf.mxu0
    %v785 = vadd.f32 %v574, %v784
    %v786 = vpop.f32.mrf.mxu0
    %v787 = vadd.f32 %v576, %v786
    %788 = vmatmul.bf16.gmra.mxu0 %v660
    %v789 = vpop.f32.mrf.mxu0
    %v790 = vadd.f32 %v579, %v789
    %v791 = vpop.f32.mrf.mxu0
    %v792 = vadd.f32 %v581, %v791
    %793 = vmatmul.bf16.gmra.mxu0 %v661
    %v794 = vpop.f32.mrf.mxu0
    %v795 = vadd.f32 %v584, %v794
    %v796 = vpop.f32.mrf.mxu0
    %v797 = vadd.f32 %v586, %v796
    %798 = vmatmul.bf16.gmra.mxu0 %v662
    %v799 = vpop.f32.mrf.mxu0
    %v800 = vadd.f32 %v589, %v799
    %v801 = vpop.f32.mrf.mxu0
    %v802 = vadd.f32 %v591, %v801
    %803 = vdwg.mxu0
    %v804 = vmax.f32 %v735, %v740
    %v805 = vmax.f32 %v737, %v742
    %v806 = vmax.f32 %v804, %v745
    %v807 = vmax.f32 %v805, %v747
    %v808 = vmax.f32 %v806, %v750
    %v809 = vmax.f32 %v807, %v752
    %v810 = vmax.f32 %v808, %v755
    %v811 = vmax.f32 %v809, %v757
    %v812 = vmax.f32 %v810, %v760
    %v813 = vmax.f32 %v811, %v762
    %v814 = vmax.f32 %v812, %v765
    %v815 = vmax.f32 %v813, %v767
    %v816 = vmax.f32 %v814, %v770
    %v817 = vmax.f32 %v815, %v772
    %v818 = vmax.f32 %v816, %v775
    %v819 = vmax.f32 %v817, %v777
    %v820 = vmax.f32 %v818, %v780
    %v821 = vmax.f32 %v819, %v782
    %v822 = vmax.f32 %v820, %v785
    %v823 = vmax.f32 %v821, %v787
    %v824 = vmax.f32 %v822, %v790
    %v825 = vmax.f32 %v823, %v792
    %v826 = vmax.f32 %v824, %v795
    %v827 = vmax.f32 %v825, %v797
    %v828 = vmax.f32 %v826, %v800
    %v829 = vmax.f32 %v827, %v802
    %v830 = vld [vmem:[#allocation8] sm:$0x1]
    %v832 = vperm.slane %v830, 0
    %v834 = vadd.f32 %v828, %v832
    %v835 = vadd.f32 %v829, %v832
    %v836 = vmax.f32 %v834, 0.0
    %v837 = vmax.f32 %v835, 0.0
    %v838 = vpack.c.bf16 %v837, %v836
    %v839 = vld [vmem:[#allocation10] sm:$0xf]
    %v840 = vld [vmem:[#allocation10 + $0x4] sm:$0xf]
    %v841 = vld [vmem:[#allocation10 + $0x8] sm:$0xf]
    %v842 = vld [vmem:[#allocation10 + $0xc] sm:$0xf]
    %v843 = vld [vmem:[#allocation10 + $0x10] sm:$0xf]
    %v844 = vld [vmem:[#allocation10 + $0x14] sm:$0xf]
    %v845 = vld [vmem:[#allocation10 + $0x18] sm:$0xf]
    %v846 = vld [vmem:[#allocation10 + $0x1c] sm:$0xf]
    %v847 = vld [vmem:[#allocation10 + $0x20] sm:$0xf]
    %v848 = vld [vmem:[#allocation10 + $0x24] sm:$0xf]
    %v849 = vld [vmem:[#allocation10 + $0x28] sm:$0xf]
    %v850 = vld [vmem:[#allocation10 + $0x2c] sm:$0xf]
    %v851 = vld [vmem:[#allocation10 + $0x30] sm:$0xf]
    %v852 = vld [vmem:[#allocation10 + $0x34] sm:$0xf]
    %v853 = vld [vmem:[#allocation10 + $0x38] sm:$0xf]
    %v854 = vld [vmem:[#allocation10 + $0x3c] sm:$0xf]
    %v871 = vunpack.c.l.b16 %v839
    %v872 = vunpack.c.l.b16 %v840
    %v873 = vunpack.c.l.b16 %v841
    %v874 = vunpack.c.l.b16 %v842
    %v875 = vunpack.c.l.b16 %v843
    %v876 = vunpack.c.l.b16 %v844
    %v877 = vunpack.c.l.b16 %v845
    %v878 = vunpack.c.l.b16 %v846
    %v879 = vunpack.c.l.b16 %v847
    %v880 = vunpack.c.l.b16 %v848
    %v881 = vunpack.c.l.b16 %v849
    %v882 = vunpack.c.l.b16 %v850
    %v883 = vunpack.c.l.b16 %v851
    %v884 = vunpack.c.l.b16 %v852
    %v885 = vunpack.c.l.b16 %v853
    %v886 = vunpack.c.l.b16 %v854
    %v887 = vpack.c.b16 %v872, %v871
    %v888 = vpack.c.b16 %v874, %v873
    %v889 = vpack.c.b16 %v876, %v875
    %v890 = vpack.c.b16 %v878, %v877
    %v891 = vpack.c.b16 %v880, %v879
    %v892 = vpack.c.b16 %v882, %v881
    %v893 = vpack.c.b16 %v884, %v883
    %v894 = vpack.c.b16 %v886, %v885
    %903 = vmatpush.bf16.msra.mxu0 %v894
    %904 = vmatpush.bf16.msra.mxu0 %v893
    %905 = vmatpush.bf16.msra.mxu0 %v892
    %906 = vmatpush.bf16.msra.mxu0 %v891
    %907 = vmatpush.bf16.msra.mxu0 %v890
    %908 = vmatpush.bf16.msra.mxu0 %v889
    %909 = vmatpush.bf16.msra.mxu0 %v888
    %910 = vmatpush.bf16.msra.mxu0 %v887
    %911 = vmatmul.bf16.gmra.mxu0 %v838
    %v912 = vpop.f32.mrf.mxu0
    %v913 = vadd.f32 0.0, %v912
    %v914 = vpop.f32.mrf.mxu0
    %v915 = vadd.f32 0.0, %v914
    %916 = vdwg.mxu0
    %v919 = vunpack.c.l.b16 %v283
    %v920 = vunpack.c.l.b16 %v284
    %v921 = vpack.c.b16 %v920, %v919
    %v930 = vunpack.c.l.b16 %v285
    %v931 = vunpack.c.l.b16 %v286
    %v932 = vunpack.c.l.b16 %v287
    %v933 = vunpack.c.l.b16 %v288
    %v934 = vunpack.c.l.b16 %v289
    %v935 = vunpack.c.l.b16 %v290
    %v936 = vunpack.c.l.b16 %v291
    %v937 = vunpack.c.l.b16 %v292
    %v938 = vpack.c.b16 %v931, %v930
    %v939 = vpack.c.b16 %v933, %v932
    %v940 = vpack.c.b16 %v935, %v934
    %v941 = vpack.c.b16 %v937, %v936
    %vm946 = vcmask 523264
    %v948 = vsel %vm946, %v921, 0
    %950 = vmatpush.bf16.msra.mxu0 0
    %951 = vmatpush.bf16.msra.mxu0 0
    %952 = vmatpush.bf16.msra.mxu0 0
    %953 = vmatpush.bf16.msra.mxu0 0
    %954 = vmatpush.bf16.msra.mxu0 %v941
    %955 = vmatpush.bf16.msra.mxu0 %v940
    %956 = vmatpush.bf16.msra.mxu0 %v939
    %957 = vmatpush.bf16.msra.mxu0 %v938
    %958 = vmatmul.bf16.gmra.mxu0 %v948
    %v959 = vpop.f32.mrf.mxu0
    %v960 = vadd.f32 %v913, %v959
    %v961 = vpop.f32.mrf.mxu0
    %v962 = vadd.f32 %v915, %v961
    %963 = vdwg.mxu0
    %v964 = vld [vmem:[#allocation2] sm:$0xf]
    %v965 = vld [vmem:[#allocation2 + $0x4] sm:$0xf]
    %v966 = vld [vmem:[#allocation2 + $0x8] sm:$0xf]
    %v967 = vld [vmem:[#allocation2 + $0xc] sm:$0xf]
    %v968 = vld [vmem:[#allocation2 + $0x10] sm:$0xf]
    %v969 = vld [vmem:[#allocation2 + $0x14] sm:$0xf]
    %v970 = vld [vmem:[#allocation2 + $0x18] sm:$0xf]
    %v971 = vld [vmem:[#allocation2 + $0x1c] sm:$0xf]
    %v972 = vld [vmem:[#allocation2 + $0x20] sm:$0xf]
    %v973 = vld [vmem:[#allocation2 + $0x24] sm:$0xf]
    %v974 = vld [vmem:[#allocation2 + $0x28] sm:$0xf]
    %v975 = vld [vmem:[#allocation2 + $0x2c] sm:$0xf]
    %v976 = vld [vmem:[#allocation2 + $0x30] sm:$0xf]
    %v977 = vld [vmem:[#allocation2 + $0x34] sm:$0xf]
    %v978 = vld [vmem:[#allocation2 + $0x38] sm:$0xf]
    %v979 = vld [vmem:[#allocation2 + $0x3c] sm:$0xf]
    %v980 = vld [vmem:[#allocation2 + $0x40] sm:$0xf]
    %v981 = vld [vmem:[#allocation2 + $0x44] sm:$0xf]
    %v982 = vld [vmem:[#allocation2 + $0x48] sm:$0xf]
    %v983 = vld [vmem:[#allocation2 + $0x4c] sm:$0xf]
    %v984 = vld [vmem:[#allocation2 + $0x50] sm:$0xf]
    %v985 = vld [vmem:[#allocation2 + $0x54] sm:$0xf]
    %v986 = vld [vmem:[#allocation2 + $0x58] sm:$0xf]
    %v987 = vld [vmem:[#allocation2 + $0x5c] sm:$0xf]
    %v988 = vld [vmem:[#allocation11] sm:$0xff]
    %v989 = vld [vmem:[#allocation11 + $0x8] sm:$0xff]
    %v990 = vld [vmem:[#allocation11 + $0x10] sm:$0xff]
    %v991 = vld [vmem:[#allocation11 + $0x18] sm:$0xff]
    %v992 = vld [vmem:[#allocation11 + $0x20] sm:$0xff]
    %v993 = vld [vmem:[#allocation11 + $0x28] sm:$0xff]
    %v994 = vld [vmem:[#allocation11 + $0x30] sm:$0xff]
    %v995 = vld [vmem:[#allocation11 + $0x38] sm:$0xff]
    %v996 = vld [vmem:[#allocation11 + $0x40] sm:$0xff]
    %v997 = vld [vmem:[#allocation11 + $0x48] sm:$0xff]
    %v998 = vld [vmem:[#allocation11 + $0x50] sm:$0xff]
    %v999 = vld [vmem:[#allocation11 + $0x58] sm:$0xff]
    %v1000 = vld [vmem:[#allocation11 + $0x60] sm:$0xff]
    %v1001 = vld [vmem:[#allocation11 + $0x68] sm:$0xff]
    %v1002 = vld [vmem:[#allocation11 + $0x70] sm:$0xff]
    %v1003 = vld [vmem:[#allocation11 + $0x78] sm:$0xff]
    %s1004 = scalar_lea.vmem [#allocation11], 128
    %v1005 = vld [vmem:[%s1004] sm:$0xff]
    %v1006 = vld [vmem:[%s1004 + $0x8] sm:$0xff]
    %v1007 = vld [vmem:[%s1004 + $0x10] sm:$0xff]
    %v1008 = vld [vmem:[%s1004 + $0x18] sm:$0xff]
    %v1009 = vld [vmem:[%s1004 + $0x20] sm:$0xff]
    %v1010 = vld [vmem:[%s1004 + $0x28] sm:$0xff]
    %v1011 = vld [vmem:[%s1004 + $0x30] sm:$0xff]
    %v1012 = vld [vmem:[%s1004 + $0x38] sm:$0xff]
    %v1013 = vld [vmem:[%s1004 + $0x40] sm:$0xff]
    %v1014 = vld [vmem:[%s1004 + $0x48] sm:$0xff]
    %v1015 = vld [vmem:[%s1004 + $0x50] sm:$0xff]
    %v1016 = vld [vmem:[%s1004 + $0x58] sm:$0xff]
    %v1017 = vld [vmem:[%s1004 + $0x60] sm:$0xff]
    %v1018 = vld [vmem:[%s1004 + $0x68] sm:$0xff]
    %v1019 = vld [vmem:[%s1004 + $0x70] sm:$0xff]
    %v1020 = vld [vmem:[%s1004 + $0x78] sm:$0xff]
    %v1037 = vunpack.c.l.b16 %v1005
    %v1038 = vunpack.c.h.b16 %v1005
    %v1039 = vunpack.c.l.b16 %v1006
    %v1040 = vunpack.c.h.b16 %v1006
    %v1041 = vunpack.c.l.b16 %v1007
    %v1042 = vunpack.c.h.b16 %v1007
    %v1043 = vunpack.c.l.b16 %v1008
    %v1044 = vunpack.c.h.b16 %v1008
    %v1045 = vunpack.c.l.b16 %v1009
    %v1046 = vunpack.c.h.b16 %v1009
    %v1047 = vunpack.c.l.b16 %v1010
    %v1048 = vunpack.c.h.b16 %v1010
    %v1049 = vunpack.c.l.b16 %v1011
    %v1050 = vunpack.c.h.b16 %v1011
    %v1051 = vunpack.c.l.b16 %v1012
    %v1052 = vunpack.c.h.b16 %v1012
    %v1053 = vunpack.c.l.b16 %v1013
    %v1054 = vunpack.c.h.b16 %v1013
    %v1055 = vunpack.c.l.b16 %v1014
    %v1056 = vunpack.c.h.b16 %v1014
    %v1057 = vunpack.c.l.b16 %v1015
    %v1058 = vunpack.c.h.b16 %v1015
    %v1059 = vunpack.c.l.b16 %v1016
    %v1060 = vunpack.c.h.b16 %v1016
    %v1061 = vunpack.c.l.b16 %v1017
    %v1062 = vunpack.c.h.b16 %v1017
    %v1063 = vunpack.c.l.b16 %v1018
    %v1064 = vunpack.c.h.b16 %v1018
    %v1065 = vunpack.c.l.b16 %v1019
    %v1066 = vunpack.c.h.b16 %v1019
    %v1067 = vunpack.c.l.b16 %v1020
    %v1068 = vunpack.c.h.b16 %v1020
    %v1069 = vpack.c.b16 %v1039, %v1037
    %v1070 = vpack.c.b16 %v1040, %v1038
    %v1071 = vpack.c.b16 %v1043, %v1041
    %v1072 = vpack.c.b16 %v1044, %v1042
    %v1073 = vpack.c.b16 %v1047, %v1045
    %v1074 = vpack.c.b16 %v1048, %v1046
    %v1075 = vpack.c.b16 %v1051, %v1049
    %v1076 = vpack.c.b16 %v1052, %v1050
    %v1077 = vpack.c.b16 %v1055, %v1053
    %v1078 = vpack.c.b16 %v1056, %v1054
    %v1079 = vpack.c.b16 %v1059, %v1057
    %v1080 = vpack.c.b16 %v1060, %v1058
    %v1081 = vpack.c.b16 %v1063, %v1061
    %v1082 = vpack.c.b16 %v1064, %v1062
    %v1083 = vpack.c.b16 %v1067, %v1065
    %v1084 = vpack.c.b16 %v1068, %v1066
    %1101 = vmatpush.bf16.msra.mxu0 %v1083
    %1102 = vmatpush.bf16.msra.mxu0 %v1081
    %1103 = vmatpush.bf16.msra.mxu0 %v1079
    %1104 = vmatpush.bf16.msra.mxu0 %v1077
    %1105 = vmatpush.bf16.msra.mxu0 %v1075
    %1106 = vmatpush.bf16.msra.mxu0 %v1073
    %1107 = vmatpush.bf16.msra.mxu0 %v1071
    %1108 = vmatpush.bf16.msra.mxu0 %v1069
    %1109 = vmatmul.bf16.gmra.mxu0 %v651
    %v1110 = vpop.f32.mrf.mxu0
    %v1111 = vadd.f32 0.0, %v1110
    %v1112 = vpop.f32.mrf.mxu0
    %v1113 = vadd.f32 0.0, %v1112
    %1114 = vmatmul.bf16.gmra.mxu0 %v652
    %v1115 = vpop.f32.mrf.mxu0
    %v1116 = vadd.f32 0.0, %v1115
    %v1117 = vpop.f32.mrf.mxu0
    %v1118 = vadd.f32 0.0, %v1117
    %1119 = vmatmul.bf16.gmra.mxu0 %v653
    %v1120 = vpop.f32.mrf.mxu0
    %v1121 = vadd.f32 0.0, %v1120
    %v1122 = vpop.f32.mrf.mxu0
    %v1123 = vadd.f32 0.0, %v1122
    %1124 = vmatmul.bf16.gmra.mxu0 %v654
    %v1125 = vpop.f32.mrf.mxu0
    %v1126 = vadd.f32 0.0, %v1125
    %v1127 = vpop.f32.mrf.mxu0
    %v1128 = vadd.f32 0.0, %v1127
    %1129 = vmatmul.bf16.gmra.mxu0 %v655
    %v1130 = vpop.f32.mrf.mxu0
    %v1131 = vadd.f32 0.0, %v1130
    %v1132 = vpop.f32.mrf.mxu0
    %v1133 = vadd.f32 0.0, %v1132
    %1134 = vmatmul.bf16.gmra.mxu0 %v656
    %v1135 = vpop.f32.mrf.mxu0
    %v1136 = vadd.f32 0.0, %v1135
    %v1137 = vpop.f32.mrf.mxu0
    %v1138 = vadd.f32 0.0, %v1137
    %1139 = vmatmul.bf16.gmra.mxu0 %v657
    %v1140 = vpop.f32.mrf.mxu0
    %v1141 = vadd.f32 0.0, %v1140
    %v1142 = vpop.f32.mrf.mxu0
    %v1143 = vadd.f32 0.0, %v1142
    %1144 = vmatmul.bf16.gmra.mxu0 %v658
    %v1145 = vpop.f32.mrf.mxu0
    %v1146 = vadd.f32 0.0, %v1145
    %v1147 = vpop.f32.mrf.mxu0
    %v1148 = vadd.f32 0.0, %v1147
    %1149 = vmatmul.bf16.gmra.mxu0 %v659
    %v1150 = vpop.f32.mrf.mxu0
    %v1151 = vadd.f32 0.0, %v1150
    %v1152 = vpop.f32.mrf.mxu0
    %v1153 = vadd.f32 0.0, %v1152
    %1154 = vmatmul.bf16.gmra.mxu0 %v660
    %v1155 = vpop.f32.mrf.mxu0
    %v1156 = vadd.f32 0.0, %v1155
    %v1157 = vpop.f32.mrf.mxu0
    %v1158 = vadd.f32 0.0, %v1157
    %1159 = vmatmul.bf16.gmra.mxu0 %v661
    %v1160 = vpop.f32.mrf.mxu0
    %v1161 = vadd.f32 0.0, %v1160
    %v1162 = vpop.f32.mrf.mxu0
    %v1163 = vadd.f32 0.0, %v1162
    %1164 = vmatmul.bf16.gmra.mxu0 %v662
    %v1165 = vpop.f32.mrf.mxu0
    %v1166 = vadd.f32 0.0, %v1165
    %v1167 = vpop.f32.mrf.mxu0
    %v1168 = vadd.f32 0.0, %v1167
    %1169 = vdwg.mxu0
    %1170 = vmatpush.bf16.msra.mxu0 %v1084
    %1171 = vmatpush.bf16.msra.mxu0 %v1082
    %1172 = vmatpush.bf16.msra.mxu0 %v1080
    %1173 = vmatpush.bf16.msra.mxu0 %v1078
    %1174 = vmatpush.bf16.msra.mxu0 %v1076
    %1175 = vmatpush.bf16.msra.mxu0 %v1074
    %1176 = vmatpush.bf16.msra.mxu0 %v1072
    %1177 = vmatpush.bf16.msra.mxu0 %v1070
    %1178 = vmatmul.bf16.gmra.mxu0 %v651
    %v1179 = vpop.f32.mrf.mxu0
    %v1180 = vadd.f32 0.0, %v1179
    %v1181 = vpop.f32.mrf.mxu0
    %v1182 = vadd.f32 0.0, %v1181
    %1183 = vmatmul.bf16.gmra.mxu0 %v652
    %v1184 = vpop.f32.mrf.mxu0
    %v1185 = vadd.f32 0.0, %v1184
    %v1186 = vpop.f32.mrf.mxu0
    %v1187 = vadd.f32 0.0, %v1186
    %1188 = vmatmul.bf16.gmra.mxu0 %v653
    %v1189 = vpop.f32.mrf.mxu0
    %v1190 = vadd.f32 0.0, %v1189
    %v1191 = vpop.f32.mrf.mxu0
    %v1192 = vadd.f32 0.0, %v1191
    %1193 = vmatmul.bf16.gmra.mxu0 %v654
    %v1194 = vpop.f32.mrf.mxu0
    %v1195 = vadd.f32 0.0, %v1194
    %v1196 = vpop.f32.mrf.mxu0
    %v1197 = vadd.f32 0.0, %v1196
    %1198 = vmatmul.bf16.gmra.mxu0 %v655
    %v1199 = vpop.f32.mrf.mxu0
    %v1200 = vadd.f32 0.0, %v1199
    %v1201 = vpop.f32.mrf.mxu0
    %v1202 = vadd.f32 0.0, %v1201
    %1203 = vmatmul.bf16.gmra.mxu0 %v656
    %v1204 = vpop.f32.mrf.mxu0
    %v1205 = vadd.f32 0.0, %v1204
    %v1206 = vpop.f32.mrf.mxu0
    %v1207 = vadd.f32 0.0, %v1206
    %1208 = vmatmul.bf16.gmra.mxu0 %v657
    %v1209 = vpop.f32.mrf.mxu0
    %v1210 = vadd.f32 0.0, %v1209
    %v1211 = vpop.f32.mrf.mxu0
    %v1212 = vadd.f32 0.0, %v1211
    %1213 = vmatmul.bf16.gmra.mxu0 %v658
    %v1214 = vpop.f32.mrf.mxu0
    %v1215 = vadd.f32 0.0, %v1214
    %v1216 = vpop.f32.mrf.mxu0
    %v1217 = vadd.f32 0.0, %v1216
    %1218 = vmatmul.bf16.gmra.mxu0 %v659
    %v1219 = vpop.f32.mrf.mxu0
    %v1220 = vadd.f32 0.0, %v1219
    %v1221 = vpop.f32.mrf.mxu0
    %v1222 = vadd.f32 0.0, %v1221
    %1223 = vmatmul.bf16.gmra.mxu0 %v660
    %v1224 = vpop.f32.mrf.mxu0
    %v1225 = vadd.f32 0.0, %v1224
    %v1226 = vpop.f32.mrf.mxu0
    %v1227 = vadd.f32 0.0, %v1226
    %1228 = vmatmul.bf16.gmra.mxu0 %v661
    %v1229 = vpop.f32.mrf.mxu0
    %v1230 = vadd.f32 0.0, %v1229
    %v1231 = vpop.f32.mrf.mxu0
    %v1232 = vadd.f32 0.0, %v1231
    %1233 = vmatmul.bf16.gmra.mxu0 %v662
    %v1234 = vpop.f32.mrf.mxu0
    %v1235 = vadd.f32 0.0, %v1234
    %v1236 = vpop.f32.mrf.mxu0
    %v1237 = vadd.f32 0.0, %v1236
    %1238 = vdwg.mxu0
    %v1263 = vunpack.c.l.b16 %v964
    %v1264 = vunpack.c.l.b16 %v965
    %v1265 = vunpack.c.l.b16 %v966
    %v1266 = vunpack.c.l.b16 %v967
    %v1267 = vunpack.c.l.b16 %v968
    %v1268 = vunpack.c.l.b16 %v969
    %v1269 = vunpack.c.l.b16 %v970
    %v1270 = vunpack.c.l.b16 %v971
    %v1271 = vunpack.c.l.b16 %v972
    %v1272 = vunpack.c.l.b16 %v973
    %v1273 = vunpack.c.l.b16 %v974
    %v1274 = vunpack.c.l.b16 %v975
    %v1275 = vunpack.c.l.b16 %v976
    %v1276 = vunpack.c.l.b16 %v977
    %v1277 = vunpack.c.l.b16 %v978
    %v1278 = vunpack.c.l.b16 %v979
    %v1279 = vunpack.c.l.b16 %v980
    %v1280 = vunpack.c.l.b16 %v981
    %v1281 = vunpack.c.l.b16 %v982
    %v1282 = vunpack.c.l.b16 %v983
    %v1283 = vunpack.c.l.b16 %v984
    %v1284 = vunpack.c.l.b16 %v985
    %v1285 = vunpack.c.l.b16 %v986
    %v1286 = vunpack.c.l.b16 %v987
    %v1287 = vpack.c.b16 %v1264, %v1263
    %v1288 = vpack.c.b16 %v1266, %v1265
    %v1289 = vpack.c.b16 %v1268, %v1267
    %v1290 = vpack.c.b16 %v1270, %v1269
    %v1291 = vpack.c.b16 %v1272, %v1271
    %v1292 = vpack.c.b16 %v1274, %v1273
    %v1293 = vpack.c.b16 %v1276, %v1275
    %v1294 = vpack.c.b16 %v1278, %v1277
    %v1295 = vpack.c.b16 %v1280, %v1279
    %v1296 = vpack.c.b16 %v1282, %v1281
    %v1297 = vpack.c.b16 %v1284, %v1283
    %v1298 = vpack.c.b16 %v1286, %v1285
    %v1327 = vunpack.c.l.b16 %v988
    %v1328 = vunpack.c.h.b16 %v988
    %v1329 = vunpack.c.l.b16 %v989
    %v1330 = vunpack.c.h.b16 %v989
    %v1331 = vunpack.c.l.b16 %v990
    %v1332 = vunpack.c.h.b16 %v990
    %v1333 = vunpack.c.l.b16 %v991
    %v1334 = vunpack.c.h.b16 %v991
    %v1335 = vunpack.c.l.b16 %v992
    %v1336 = vunpack.c.h.b16 %v992
    %v1337 = vunpack.c.l.b16 %v993
    %v1338 = vunpack.c.h.b16 %v993
    %v1339 = vunpack.c.l.b16 %v994
    %v1340 = vunpack.c.h.b16 %v994
    %v1341 = vunpack.c.l.b16 %v995
    %v1342 = vunpack.c.h.b16 %v995
    %v1343 = vunpack.c.l.b16 %v996
    %v1344 = vunpack.c.h.b16 %v996
    %v1345 = vunpack.c.l.b16 %v997
    %v1346 = vunpack.c.h.b16 %v997
    %v1347 = vunpack.c.l.b16 %v998
    %v1348 = vunpack.c.h.b16 %v998
    %v1349 = vunpack.c.l.b16 %v999
    %v1350 = vunpack.c.h.b16 %v999
    %v1351 = vunpack.c.l.b16 %v1000
    %v1352 = vunpack.c.h.b16 %v1000
    %v1353 = vunpack.c.l.b16 %v1001
    %v1354 = vunpack.c.h.b16 %v1001
    %v1355 = vunpack.c.l.b16 %v1002
    %v1356 = vunpack.c.h.b16 %v1002
    %v1357 = vunpack.c.l.b16 %v1003
    %v1358 = vunpack.c.h.b16 %v1003
    %v1359 = vpack.c.b16 %v1329, %v1327
    %v1360 = vpack.c.b16 %v1330, %v1328
    %v1361 = vpack.c.b16 %v1333, %v1331
    %v1362 = vpack.c.b16 %v1334, %v1332
    %v1363 = vpack.c.b16 %v1337, %v1335
    %v1364 = vpack.c.b16 %v1338, %v1336
    %v1365 = vpack.c.b16 %v1341, %v1339
    %v1366 = vpack.c.b16 %v1342, %v1340
    %v1367 = vpack.c.b16 %v1345, %v1343
    %v1368 = vpack.c.b16 %v1346, %v1344
    %v1369 = vpack.c.b16 %v1349, %v1347
    %v1370 = vpack.c.b16 %v1350, %v1348
    %v1371 = vpack.c.b16 %v1353, %v1351
    %v1372 = vpack.c.b16 %v1354, %v1352
    %v1373 = vpack.c.b16 %v1357, %v1355
    %v1374 = vpack.c.b16 %v1358, %v1356
    %1391 = vmatpush.bf16.msra.mxu0 %v1373
    %1392 = vmatpush.bf16.msra.mxu0 %v1371
    %1393 = vmatpush.bf16.msra.mxu0 %v1369
    %1394 = vmatpush.bf16.msra.mxu0 %v1367
    %1395 = vmatpush.bf16.msra.mxu0 %v1365
    %1396 = vmatpush.bf16.msra.mxu0 %v1363
    %1397 = vmatpush.bf16.msra.mxu0 %v1361
    %1398 = vmatpush.bf16.msra.mxu0 %v1359
    %1399 = vmatmul.bf16.gmra.mxu0 %v1287
    %v1400 = vpop.f32.mrf.mxu0
    %v1401 = vadd.f32 %v1111, %v1400
    %v1402 = vpop.f32.mrf.mxu0
    %v1403 = vadd.f32 %v1113, %v1402
    %1404 = vmatmul.bf16.gmra.mxu0 %v1288
    %v1405 = vpop.f32.mrf.mxu0
    %v1406 = vadd.f32 %v1116, %v1405
    %v1407 = vpop.f32.mrf.mxu0
    %v1408 = vadd.f32 %v1118, %v1407
    %1409 = vmatmul.bf16.gmra.mxu0 %v1289
    %v1410 = vpop.f32.mrf.mxu0
    %v1411 = vadd.f32 %v1121, %v1410
    %v1412 = vpop.f32.mrf.mxu0
    %v1413 = vadd.f32 %v1123, %v1412
    %1414 = vmatmul.bf16.gmra.mxu0 %v1290
    %v1415 = vpop.f32.mrf.mxu0
    %v1416 = vadd.f32 %v1126, %v1415
    %v1417 = vpop.f32.mrf.mxu0
    %v1418 = vadd.f32 %v1128, %v1417
    %1419 = vmatmul.bf16.gmra.mxu0 %v1291
    %v1420 = vpop.f32.mrf.mxu0
    %v1421 = vadd.f32 %v1131, %v1420
    %v1422 = vpop.f32.mrf.mxu0
    %v1423 = vadd.f32 %v1133, %v1422
    %1424 = vmatmul.bf16.gmra.mxu0 %v1292
    %v1425 = vpop.f32.mrf.mxu0
    %v1426 = vadd.f32 %v1136, %v1425
    %v1427 = vpop.f32.mrf.mxu0
    %v1428 = vadd.f32 %v1138, %v1427
    %1429 = vmatmul.bf16.gmra.mxu0 %v1293
    %v1430 = vpop.f32.mrf.mxu0
    %v1431 = vadd.f32 %v1141, %v1430
    %v1432 = vpop.f32.mrf.mxu0
    %v1433 = vadd.f32 %v1143, %v1432
    %1434 = vmatmul.bf16.gmra.mxu0 %v1294
    %v1435 = vpop.f32.mrf.mxu0
    %v1436 = vadd.f32 %v1146, %v1435
    %v1437 = vpop.f32.mrf.mxu0
    %v1438 = vadd.f32 %v1148, %v1437
    %1439 = vmatmul.bf16.gmra.mxu0 %v1295
    %v1440 = vpop.f32.mrf.mxu0
    %v1441 = vadd.f32 %v1151, %v1440
    %v1442 = vpop.f32.mrf.mxu0
    %v1443 = vadd.f32 %v1153, %v1442
    %1444 = vmatmul.bf16.gmra.mxu0 %v1296
    %v1445 = vpop.f32.mrf.mxu0
    %v1446 = vadd.f32 %v1156, %v1445
    %v1447 = vpop.f32.mrf.mxu0
    %v1448 = vadd.f32 %v1158, %v1447
    %1449 = vmatmul.bf16.gmra.mxu0 %v1297
    %v1450 = vpop.f32.mrf.mxu0
    %v1451 = vadd.f32 %v1161, %v1450
    %v1452 = vpop.f32.mrf.mxu0
    %v1453 = vadd.f32 %v1163, %v1452
    %1454 = vmatmul.bf16.gmra.mxu0 %v1298
    %v1455 = vpop.f32.mrf.mxu0
    %v1456 = vadd.f32 %v1166, %v1455
    %v1457 = vpop.f32.mrf.mxu0
    %v1458 = vadd.f32 %v1168, %v1457
    %1459 = vdwg.mxu0
    %1460 = vmatpush.bf16.msra.mxu0 %v1374
    %1461 = vmatpush.bf16.msra.mxu0 %v1372
    %1462 = vmatpush.bf16.msra.mxu0 %v1370
    %1463 = vmatpush.bf16.msra.mxu0 %v1368
    %1464 = vmatpush.bf16.msra.mxu0 %v1366
    %1465 = vmatpush.bf16.msra.mxu0 %v1364
    %1466 = vmatpush.bf16.msra.mxu0 %v1362
    %1467 = vmatpush.bf16.msra.mxu0 %v1360
    %1468 = vmatmul.bf16.gmra.mxu0 %v1287
    %v1469 = vpop.f32.mrf.mxu0
    %v1470 = vadd.f32 %v1180, %v1469
    %v1471 = vpop.f32.mrf.mxu0
    %v1472 = vadd.f32 %v1182, %v1471
    %1473 = vmatmul.bf16.gmra.mxu0 %v1288
    %v1474 = vpop.f32.mrf.mxu0
    %v1475 = vadd.f32 %v1185, %v1474
    %v1476 = vpop.f32.mrf.mxu0
    %v1477 = vadd.f32 %v1187, %v1476
    %1478 = vmatmul.bf16.gmra.mxu0 %v1289
    %v1479 = vpop.f32.mrf.mxu0
    %v1480 = vadd.f32 %v1190, %v1479
    %v1481 = vpop.f32.mrf.mxu0
    %v1482 = vadd.f32 %v1192, %v1481
    %1483 = vmatmul.bf16.gmra.mxu0 %v1290
    %v1484 = vpop.f32.mrf.mxu0
    %v1485 = vadd.f32 %v1195, %v1484
    %v1486 = vpop.f32.mrf.mxu0
    %v1487 = vadd.f32 %v1197, %v1486
    %1488 = vmatmul.bf16.gmra.mxu0 %v1291
    %v1489 = vpop.f32.mrf.mxu0
    %v1490 = vadd.f32 %v1200, %v1489
    %v1491 = vpop.f32.mrf.mxu0
    %v1492 = vadd.f32 %v1202, %v1491
    %1493 = vmatmul.bf16.gmra.mxu0 %v1292
    %v1494 = vpop.f32.mrf.mxu0
    %v1495 = vadd.f32 %v1205, %v1494
    %v1496 = vpop.f32.mrf.mxu0
    %v1497 = vadd.f32 %v1207, %v1496
    %1498 = vmatmul.bf16.gmra.mxu0 %v1293
    %v1499 = vpop.f32.mrf.mxu0
    %v1500 = vadd.f32 %v1210, %v1499
    %v1501 = vpop.f32.mrf.mxu0
    %v1502 = vadd.f32 %v1212, %v1501
    %1503 = vmatmul.bf16.gmra.mxu0 %v1294
    %v1504 = vpop.f32.mrf.mxu0
    %v1505 = vadd.f32 %v1215, %v1504
    %v1506 = vpop.f32.mrf.mxu0
    %v1507 = vadd.f32 %v1217, %v1506
    %1508 = vmatmul.bf16.gmra.mxu0 %v1295
    %v1509 = vpop.f32.mrf.mxu0
    %v1510 = vadd.f32 %v1220, %v1509
    %v1511 = vpop.f32.mrf.mxu0
    %v1512 = vadd.f32 %v1222, %v1511
    %1513 = vmatmul.bf16.gmra.mxu0 %v1296
    %v1514 = vpop.f32.mrf.mxu0
    %v1515 = vadd.f32 %v1225, %v1514
    %v1516 = vpop.f32.mrf.mxu0
    %v1517 = vadd.f32 %v1227, %v1516
    %1518 = vmatmul.bf16.gmra.mxu0 %v1297
    %v1519 = vpop.f32.mrf.mxu0
    %v1520 = vadd.f32 %v1230, %v1519
    %v1521 = vpop.f32.mrf.mxu0
    %v1522 = vadd.f32 %v1232, %v1521
    %1523 = vmatmul.bf16.gmra.mxu0 %v1298
    %v1524 = vpop.f32.mrf.mxu0
    %v1525 = vadd.f32 %v1235, %v1524
    %v1526 = vpop.f32.mrf.mxu0
    %v1527 = vadd.f32 %v1237, %v1526
    %1528 = vdwg.mxu0
    %s1529 = scalar_lea.vmem [#allocation11], 256
    %v1530 = vld [vmem:[%s1529] sm:$0xff]
    %v1531 = vld [vmem:[%s1529 + $0x8] sm:$0xff]
    %v1532 = vld [vmem:[%s1529 + $0x10] sm:$0xff]
    %v1533 = vld [vmem:[%s1529 + $0x18] sm:$0xff]
    %v1534 = vld [vmem:[%s1529 + $0x20] sm:$0xff]
    %v1535 = vld [vmem:[%s1529 + $0x28] sm:$0xff]
    %v1536 = vld [vmem:[%s1529 + $0x30] sm:$0xff]
    %v1537 = vld [vmem:[%s1529 + $0x38] sm:$0xff]
    %v1538 = vld [vmem:[%s1529 + $0x40] sm:$0xff]
    %v1539 = vld [vmem:[%s1529 + $0x48] sm:$0xff]
    %v1540 = vld [vmem:[%s1529 + $0x50] sm:$0xff]
    %v1541 = vld [vmem:[%s1529 + $0x58] sm:$0xff]
    %v1542 = vld [vmem:[%s1529 + $0x60] sm:$0xff]
    %v1543 = vld [vmem:[%s1529 + $0x68] sm:$0xff]
    %v1544 = vld [vmem:[%s1529 + $0x70] sm:$0xff]
    %v1545 = vld [vmem:[%s1529 + $0x78] sm:$0xff]
    %v1562 = vunpack.c.l.b16 %v1530
    %v1563 = vunpack.c.h.b16 %v1530
    %v1564 = vunpack.c.l.b16 %v1531
    %v1565 = vunpack.c.h.b16 %v1531
    %v1566 = vunpack.c.l.b16 %v1532
    %v1567 = vunpack.c.h.b16 %v1532
    %v1568 = vunpack.c.l.b16 %v1533
    %v1569 = vunpack.c.h.b16 %v1533
    %v1570 = vunpack.c.l.b16 %v1534
    %v1571 = vunpack.c.h.b16 %v1534
    %v1572 = vunpack.c.l.b16 %v1535
    %v1573 = vunpack.c.h.b16 %v1535
    %v1574 = vunpack.c.l.b16 %v1536
    %v1575 = vunpack.c.h.b16 %v1536
    %v1576 = vunpack.c.l.b16 %v1537
    %v1577 = vunpack.c.h.b16 %v1537
    %v1578 = vunpack.c.l.b16 %v1538
    %v1579 = vunpack.c.h.b16 %v1538
    %v1580 = vunpack.c.l.b16 %v1539
    %v1581 = vunpack.c.h.b16 %v1539
    %v1582 = vunpack.c.l.b16 %v1540
    %v1583 = vunpack.c.h.b16 %v1540
    %v1584 = vunpack.c.l.b16 %v1541
    %v1585 = vunpack.c.h.b16 %v1541
    %v1586 = vunpack.c.l.b16 %v1542
    %v1587 = vunpack.c.h.b16 %v1542
    %v1588 = vunpack.c.l.b16 %v1543
    %v1589 = vunpack.c.h.b16 %v1543
    %v1590 = vunpack.c.l.b16 %v1544
    %v1591 = vunpack.c.h.b16 %v1544
    %v1592 = vunpack.c.l.b16 %v1545
    %v1593 = vunpack.c.h.b16 %v1545
    %v1594 = vpack.c.b16 %v1564, %v1562
    %v1595 = vpack.c.b16 %v1565, %v1563
    %v1596 = vpack.c.b16 %v1568, %v1566
    %v1597 = vpack.c.b16 %v1569, %v1567
    %v1598 = vpack.c.b16 %v1572, %v1570
    %v1599 = vpack.c.b16 %v1573, %v1571
    %v1600 = vpack.c.b16 %v1576, %v1574
    %v1601 = vpack.c.b16 %v1577, %v1575
    %v1602 = vpack.c.b16 %v1580, %v1578
    %v1603 = vpack.c.b16 %v1581, %v1579
    %v1604 = vpack.c.b16 %v1584, %v1582
    %v1605 = vpack.c.b16 %v1585, %v1583
    %v1606 = vpack.c.b16 %v1588, %v1586
    %v1607 = vpack.c.b16 %v1589, %v1587
    %v1608 = vpack.c.b16 %v1592, %v1590
    %v1609 = vpack.c.b16 %v1593, %v1591
    %1626 = vmatpush.bf16.msra.mxu0 %v1608
    %1627 = vmatpush.bf16.msra.mxu0 %v1606
    %1628 = vmatpush.bf16.msra.mxu0 %v1604
    %1629 = vmatpush.bf16.msra.mxu0 %v1602
    %1630 = vmatpush.bf16.msra.mxu0 %v1600
    %1631 = vmatpush.bf16.msra.mxu0 %v1598
    %1632 = vmatpush.bf16.msra.mxu0 %v1596
    %1633 = vmatpush.bf16.msra.mxu0 %v1594
    %1634 = vmatmul.bf16.gmra.mxu0 %v440
    %v1635 = vpop.f32.mrf.mxu0
    %v1636 = vadd.f32 0.0, %v1635
    %v1637 = vpop.f32.mrf.mxu0
    %v1638 = vadd.f32 0.0, %v1637
    %1639 = vmatmul.bf16.gmra.mxu0 %v441
    %v1640 = vpop.f32.mrf.mxu0
    %v1641 = vadd.f32 0.0, %v1640
    %v1642 = vpop.f32.mrf.mxu0
    %v1643 = vadd.f32 0.0, %v1642
    %1644 = vmatmul.bf16.gmra.mxu0 %v442
    %v1645 = vpop.f32.mrf.mxu0
    %v1646 = vadd.f32 0.0, %v1645
    %v1647 = vpop.f32.mrf.mxu0
    %v1648 = vadd.f32 0.0, %v1647
    %1649 = vmatmul.bf16.gmra.mxu0 %v443
    %v1650 = vpop.f32.mrf.mxu0
    %v1651 = vadd.f32 0.0, %v1650
    %v1652 = vpop.f32.mrf.mxu0
    %v1653 = vadd.f32 0.0, %v1652
    %1654 = vmatmul.bf16.gmra.mxu0 %v444
    %v1655 = vpop.f32.mrf.mxu0
    %v1656 = vadd.f32 0.0, %v1655
    %v1657 = vpop.f32.mrf.mxu0
    %v1658 = vadd.f32 0.0, %v1657
    %1659 = vmatmul.bf16.gmra.mxu0 %v445
    %v1660 = vpop.f32.mrf.mxu0
    %v1661 = vadd.f32 0.0, %v1660
    %v1662 = vpop.f32.mrf.mxu0
    %v1663 = vadd.f32 0.0, %v1662
    %1664 = vmatmul.bf16.gmra.mxu0 %v446
    %v1665 = vpop.f32.mrf.mxu0
    %v1666 = vadd.f32 0.0, %v1665
    %v1667 = vpop.f32.mrf.mxu0
    %v1668 = vadd.f32 0.0, %v1667
    %1669 = vmatmul.bf16.gmra.mxu0 %v447
    %v1670 = vpop.f32.mrf.mxu0
    %v1671 = vadd.f32 0.0, %v1670
    %v1672 = vpop.f32.mrf.mxu0
    %v1673 = vadd.f32 0.0, %v1672
    %1674 = vmatmul.bf16.gmra.mxu0 %v448
    %v1675 = vpop.f32.mrf.mxu0
    %v1676 = vadd.f32 0.0, %v1675
    %v1677 = vpop.f32.mrf.mxu0
    %v1678 = vadd.f32 0.0, %v1677
    %1679 = vmatmul.bf16.gmra.mxu0 %v449
    %v1680 = vpop.f32.mrf.mxu0
    %v1681 = vadd.f32 0.0, %v1680
    %v1682 = vpop.f32.mrf.mxu0
    %v1683 = vadd.f32 0.0, %v1682
    %1684 = vmatmul.bf16.gmra.mxu0 %v450
    %v1685 = vpop.f32.mrf.mxu0
    %v1686 = vadd.f32 0.0, %v1685
    %v1687 = vpop.f32.mrf.mxu0
    %v1688 = vadd.f32 0.0, %v1687
    %1689 = vmatmul.bf16.gmra.mxu0 %v451
    %v1690 = vpop.f32.mrf.mxu0
    %v1691 = vadd.f32 0.0, %v1690
    %v1692 = vpop.f32.mrf.mxu0
    %v1693 = vadd.f32 0.0, %v1692
    %1694 = vdwg.mxu0
    %1695 = vmatpush.bf16.msra.mxu0 %v1609
    %1696 = vmatpush.bf16.msra.mxu0 %v1607
    %1697 = vmatpush.bf16.msra.mxu0 %v1605
    %1698 = vmatpush.bf16.msra.mxu0 %v1603
    %1699 = vmatpush.bf16.msra.mxu0 %v1601
    %1700 = vmatpush.bf16.msra.mxu0 %v1599
    %1701 = vmatpush.bf16.msra.mxu0 %v1597
    %1702 = vmatpush.bf16.msra.mxu0 %v1595
    %1703 = vmatmul.bf16.gmra.mxu0 %v440
    %v1704 = vpop.f32.mrf.mxu0
    %v1705 = vadd.f32 0.0, %v1704
    %v1706 = vpop.f32.mrf.mxu0
    %v1707 = vadd.f32 0.0, %v1706
    %1708 = vmatmul.bf16.gmra.mxu0 %v441
    %v1709 = vpop.f32.mrf.mxu0
    %v1710 = vadd.f32 0.0, %v1709
    %v1711 = vpop.f32.mrf.mxu0
    %v1712 = vadd.f32 0.0, %v1711
    %1713 = vmatmul.bf16.gmra.mxu0 %v442
    %v1714 = vpop.f32.mrf.mxu0
    %v1715 = vadd.f32 0.0, %v1714
    %v1716 = vpop.f32.mrf.mxu0
    %v1717 = vadd.f32 0.0, %v1716
    %1718 = vmatmul.bf16.gmra.mxu0 %v443
    %v1719 = vpop.f32.mrf.mxu0
    %v1720 = vadd.f32 0.0, %v1719
    %v1721 = vpop.f32.mrf.mxu0
    %v1722 = vadd.f32 0.0, %v1721
    %1723 = vmatmul.bf16.gmra.mxu0 %v444
    %v1724 = vpop.f32.mrf.mxu0
    %v1725 = vadd.f32 0.0, %v1724
    %v1726 = vpop.f32.mrf.mxu0
    %v1727 = vadd.f32 0.0, %v1726
    %1728 = vmatmul.bf16.gmra.mxu0 %v445
    %v1729 = vpop.f32.mrf.mxu0
    %v1730 = vadd.f32 0.0, %v1729
    %v1731 = vpop.f32.mrf.mxu0
    %v1732 = vadd.f32 0.0, %v1731
    %1733 = vmatmul.bf16.gmra.mxu0 %v446
    %v1734 = vpop.f32.mrf.mxu0
    %v1735 = vadd.f32 0.0, %v1734
    %v1736 = vpop.f32.mrf.mxu0
    %v1737 = vadd.f32 0.0, %v1736
    %1738 = vmatmul.bf16.gmra.mxu0 %v447
    %v1739 = vpop.f32.mrf.mxu0
    %v1740 = vadd.f32 0.0, %v1739
    %v1741 = vpop.f32.mrf.mxu0
    %v1742 = vadd.f32 0.0, %v1741
    %1743 = vmatmul.bf16.gmra.mxu0 %v448
    %v1744 = vpop.f32.mrf.mxu0
    %v1745 = vadd.f32 0.0, %v1744
    %v1746 = vpop.f32.mrf.mxu0
    %v1747 = vadd.f32 0.0, %v1746
    %1748 = vmatmul.bf16.gmra.mxu0 %v449
    %v1749 = vpop.f32.mrf.mxu0
    %v1750 = vadd.f32 0.0, %v1749
    %v1751 = vpop.f32.mrf.mxu0
    %v1752 = vadd.f32 0.0, %v1751
    %1753 = vmatmul.bf16.gmra.mxu0 %v450
    %v1754 = vpop.f32.mrf.mxu0
    %v1755 = vadd.f32 0.0, %v1754
    %v1756 = vpop.f32.mrf.mxu0
    %v1757 = vadd.f32 0.0, %v1756
    %1758 = vmatmul.bf16.gmra.mxu0 %v451
    %v1759 = vpop.f32.mrf.mxu0
    %v1760 = vadd.f32 0.0, %v1759
    %v1761 = vpop.f32.mrf.mxu0
    %v1762 = vadd.f32 0.0, %v1761
    %1763 = vdwg.mxu0
    %v1764 = vadd.f32 %v1401, %v1636
    %v1765 = vadd.f32 %v1470, %v1705
    %v1766 = vadd.f32 %v1403, %v1638
    %v1767 = vadd.f32 %v1472, %v1707
    %v1768 = vadd.f32 %v1406, %v1641
    %v1769 = vadd.f32 %v1475, %v1710
    %v1770 = vadd.f32 %v1408, %v1643
    %v1771 = vadd.f32 %v1477, %v1712
    %v1772 = vadd.f32 %v1411, %v1646
    %v1773 = vadd.f32 %v1480, %v1715
    %v1774 = vadd.f32 %v1413, %v1648
    %v1775 = vadd.f32 %v1482, %v1717
    %v1776 = vadd.f32 %v1416, %v1651
    %v1777 = vadd.f32 %v1485, %v1720
    %v1778 = vadd.f32 %v1418, %v1653
    %v1779 = vadd.f32 %v1487, %v1722
    %v1780 = vadd.f32 %v1421, %v1656
    %v1781 = vadd.f32 %v1490, %v1725
    %v1782 = vadd.f32 %v1423, %v1658
    %v1783 = vadd.f32 %v1492, %v1727
    %v1784 = vadd.f32 %v1426, %v1661
    %v1785 = vadd.f32 %v1495, %v1730
    %v1786 = vadd.f32 %v1428, %v1663
    %v1787 = vadd.f32 %v1497, %v1732
    %v1788 = vadd.f32 %v1431, %v1666
    %v1789 = vadd.f32 %v1500, %v1735
    %v1790 = vadd.f32 %v1433, %v1668
    %v1791 = vadd.f32 %v1502, %v1737
    %v1792 = vadd.f32 %v1436, %v1671
    %v1793 = vadd.f32 %v1505, %v1740
    %v1794 = vadd.f32 %v1438, %v1673
    %v1795 = vadd.f32 %v1507, %v1742
    %v1796 = vadd.f32 %v1441, %v1676
    %v1797 = vadd.f32 %v1510, %v1745
    %v1798 = vadd.f32 %v1443, %v1678
    %v1799 = vadd.f32 %v1512, %v1747
    %v1800 = vadd.f32 %v1446, %v1681
    %v1801 = vadd.f32 %v1515, %v1750
    %v1802 = vadd.f32 %v1448, %v1683
    %v1803 = vadd.f32 %v1517, %v1752
    %v1804 = vadd.f32 %v1451, %v1686
    %v1805 = vadd.f32 %v1520, %v1755
    %v1806 = vadd.f32 %v1453, %v1688
    %v1807 = vadd.f32 %v1522, %v1757
    %v1808 = vadd.f32 %v1456, %v1691
    %v1809 = vadd.f32 %v1525, %v1760
    %v1810 = vadd.f32 %v1458, %v1693
    %v1811 = vadd.f32 %v1527, %v1762
    %v1812 = vmax.f32 %v1764, %v1768
    %v1813 = vmax.f32 %v1765, %v1769
    %v1814 = vmax.f32 %v1766, %v1770
    %v1815 = vmax.f32 %v1767, %v1771
    %v1816 = vmax.f32 %v1812, %v1772
    %v1817 = vmax.f32 %v1813, %v1773
    %v1818 = vmax.f32 %v1814, %v1774
    %v1819 = vmax.f32 %v1815, %v1775
    %v1820 = vmax.f32 %v1816, %v1776
    %v1821 = vmax.f32 %v1817, %v1777
    %v1822 = vmax.f32 %v1818, %v1778
    %v1823 = vmax.f32 %v1819, %v1779
    %v1824 = vmax.f32 %v1820, %v1780
    %v1825 = vmax.f32 %v1821, %v1781
    %v1826 = vmax.f32 %v1822, %v1782
    %v1827 = vmax.f32 %v1823, %v1783
    %v1828 = vmax.f32 %v1824, %v1784
    %v1829 = vmax.f32 %v1825, %v1785
    %v1830 = vmax.f32 %v1826, %v1786
    %v1831 = vmax.f32 %v1827, %v1787
    %v1832 = vmax.f32 %v1828, %v1788
    %v1833 = vmax.f32 %v1829, %v1789
    %v1834 = vmax.f32 %v1830, %v1790
    %v1835 = vmax.f32 %v1831, %v1791
    %v1836 = vmax.f32 %v1832, %v1792
    %v1837 = vmax.f32 %v1833, %v1793
    %v1838 = vmax.f32 %v1834, %v1794
    %v1839 = vmax.f32 %v1835, %v1795
    %v1840 = vmax.f32 %v1836, %v1796
    %v1841 = vmax.f32 %v1837, %v1797
    %v1842 = vmax.f32 %v1838, %v1798
    %v1843 = vmax.f32 %v1839, %v1799
    %v1844 = vmax.f32 %v1840, %v1800
    %v1845 = vmax.f32 %v1841, %v1801
    %v1846 = vmax.f32 %v1842, %v1802
    %v1847 = vmax.f32 %v1843, %v1803
    %v1848 = vmax.f32 %v1844, %v1804
    %v1849 = vmax.f32 %v1845, %v1805
    %v1850 = vmax.f32 %v1846, %v1806
    %v1851 = vmax.f32 %v1847, %v1807
    %v1852 = vmax.f32 %v1848, %v1808
    %v1853 = vmax.f32 %v1849, %v1809
    %v1854 = vmax.f32 %v1850, %v1810
    %v1855 = vmax.f32 %v1851, %v1811
    %v1856 = vld [vmem:[%s6] sm:$0x3]
    %v1858 = vperm.slane %v1856, 0
    %v1859 = vperm.slane %v1856, 1
    %v1862 = vadd.f32 %v1852, %v1858
    %v1863 = vadd.f32 %v1853, %v1859
    %v1864 = vadd.f32 %v1854, %v1858
    %v1865 = vadd.f32 %v1855, %v1859
    %v1866 = vmax.f32 %v1862, 0.0
    %v1867 = vmax.f32 %v1863, 0.0
    %v1868 = vmax.f32 %v1864, 0.0
    %v1869 = vmax.f32 %v1865, 0.0
    %v1870 = vpack.c.bf16 %v1868, %v1866
    %v1871 = vpack.c.bf16 %v1869, %v1867
    %v1872 = vld [vmem:[#allocation13] sm:$0xf]
    %v1873 = vld [vmem:[#allocation13 + $0x4] sm:$0xf]
    %v1874 = vld [vmem:[#allocation13 + $0x8] sm:$0xf]
    %v1875 = vld [vmem:[#allocation13 + $0xc] sm:$0xf]
    %v1876 = vld [vmem:[#allocation13 + $0x10] sm:$0xf]
    %v1877 = vld [vmem:[#allocation13 + $0x14] sm:$0xf]
    %v1878 = vld [vmem:[#allocation13 + $0x18] sm:$0xf]
    %v1879 = vld [vmem:[#allocation13 + $0x1c] sm:$0xf]
    %v1880 = vld [vmem:[#allocation13 + $0x20] sm:$0xf]
    %v1881 = vld [vmem:[#allocation13 + $0x24] sm:$0xf]
    %v1882 = vld [vmem:[#allocation13 + $0x28] sm:$0xf]
    %v1883 = vld [vmem:[#allocation13 + $0x2c] sm:$0xf]
    %v1884 = vld [vmem:[#allocation13 + $0x30] sm:$0xf]
    %v1885 = vld [vmem:[#allocation13 + $0x34] sm:$0xf]
    %v1886 = vld [vmem:[#allocation13 + $0x38] sm:$0xf]
    %v1887 = vld [vmem:[#allocation13 + $0x3c] sm:$0xf]
    %v1888 = vld [vmem:[#allocation13 + $0x40] sm:$0xf]
    %v1889 = vld [vmem:[#allocation13 + $0x44] sm:$0xf]
    %v1890 = vld [vmem:[#allocation13 + $0x48] sm:$0xf]
    %v1891 = vld [vmem:[#allocation13 + $0x4c] sm:$0xf]
    %v1892 = vld [vmem:[#allocation13 + $0x50] sm:$0xf]
    %v1893 = vld [vmem:[#allocation13 + $0x54] sm:$0xf]
    %v1894 = vld [vmem:[#allocation13 + $0x58] sm:$0xf]
    %v1895 = vld [vmem:[#allocation13 + $0x5c] sm:$0xf]
    %v1896 = vld [vmem:[#allocation13 + $0x60] sm:$0xf]
    %v1897 = vld [vmem:[#allocation13 + $0x64] sm:$0xf]
    %v1898 = vld [vmem:[#allocation13 + $0x68] sm:$0xf]
    %v1899 = vld [vmem:[#allocation13 + $0x6c] sm:$0xf]
    %v1900 = vld [vmem:[#allocation13 + $0x70] sm:$0xf]
    %v1901 = vld [vmem:[#allocation13 + $0x74] sm:$0xf]
    %v1902 = vld [vmem:[#allocation13 + $0x78] sm:$0xf]
    %v1903 = vld [vmem:[#allocation13 + $0x7c] sm:$0xf]
    %v1936 = vunpack.c.l.b16 %v1872
    %v1937 = vunpack.c.l.b16 %v1873
    %v1938 = vunpack.c.l.b16 %v1874
    %v1939 = vunpack.c.l.b16 %v1875
    %v1940 = vunpack.c.l.b16 %v1876
    %v1941 = vunpack.c.l.b16 %v1877
    %v1942 = vunpack.c.l.b16 %v1878
    %v1943 = vunpack.c.l.b16 %v1879
    %v1944 = vunpack.c.l.b16 %v1880
    %v1945 = vunpack.c.l.b16 %v1881
    %v1946 = vunpack.c.l.b16 %v1882
    %v1947 = vunpack.c.l.b16 %v1883
    %v1948 = vunpack.c.l.b16 %v1884
    %v1949 = vunpack.c.l.b16 %v1885
    %v1950 = vunpack.c.l.b16 %v1886
    %v1951 = vunpack.c.l.b16 %v1887
    %v1952 = vunpack.c.l.b16 %v1888
    %v1953 = vunpack.c.l.b16 %v1889
    %v1954 = vunpack.c.l.b16 %v1890
    %v1955 = vunpack.c.l.b16 %v1891
    %v1956 = vunpack.c.l.b16 %v1892
    %v1957 = vunpack.c.l.b16 %v1893
    %v1958 = vunpack.c.l.b16 %v1894
    %v1959 = vunpack.c.l.b16 %v1895
    %v1960 = vunpack.c.l.b16 %v1896
    %v1961 = vunpack.c.l.b16 %v1897
    %v1962 = vunpack.c.l.b16 %v1898
    %v1963 = vunpack.c.l.b16 %v1899
    %v1964 = vunpack.c.l.b16 %v1900
    %v1965 = vunpack.c.l.b16 %v1901
    %v1966 = vunpack.c.l.b16 %v1902
    %v1967 = vunpack.c.l.b16 %v1903
    %v1968 = vpack.c.b16 %v1937, %v1936
    %v1969 = vpack.c.b16 %v1939, %v1938
    %v1970 = vpack.c.b16 %v1941, %v1940
    %v1971 = vpack.c.b16 %v1943, %v1942
    %v1972 = vpack.c.b16 %v1945, %v1944
    %v1973 = vpack.c.b16 %v1947, %v1946
    %v1974 = vpack.c.b16 %v1949, %v1948
    %v1975 = vpack.c.b16 %v1951, %v1950
    %v1976 = vpack.c.b16 %v1953, %v1952
    %v1977 = vpack.c.b16 %v1955, %v1954
    %v1978 = vpack.c.b16 %v1957, %v1956
    %v1979 = vpack.c.b16 %v1959, %v1958
    %v1980 = vpack.c.b16 %v1961, %v1960
    %v1981 = vpack.c.b16 %v1963, %v1962
    %v1982 = vpack.c.b16 %v1965, %v1964
    %v1983 = vpack.c.b16 %v1967, %v1966
    %2000 = vmatpush.bf16.msra.mxu0 %v1975
    %2001 = vmatpush.bf16.msra.mxu0 %v1974
    %2002 = vmatpush.bf16.msra.mxu0 %v1973
    %2003 = vmatpush.bf16.msra.mxu0 %v1972
    %2004 = vmatpush.bf16.msra.mxu0 %v1971
    %2005 = vmatpush.bf16.msra.mxu0 %v1970
    %2006 = vmatpush.bf16.msra.mxu0 %v1969
    %2007 = vmatpush.bf16.msra.mxu0 %v1968
    %2008 = vmatmul.bf16.gmra.mxu0 %v1870
    %v2009 = vpop.f32.mrf.mxu0
    %v2010 = vadd.f32 0.0, %v2009
    %v2011 = vpop.f32.mrf.mxu0
    %v2012 = vadd.f32 0.0, %v2011
    %2013 = vdwg.mxu0
    %2014 = vmatpush.bf16.msra.mxu0 %v1983
    %2015 = vmatpush.bf16.msra.mxu0 %v1982
    %2016 = vmatpush.bf16.msra.mxu0 %v1981
    %2017 = vmatpush.bf16.msra.mxu0 %v1980
    %2018 = vmatpush.bf16.msra.mxu0 %v1979
    %2019 = vmatpush.bf16.msra.mxu0 %v1978
    %2020 = vmatpush.bf16.msra.mxu0 %v1977
    %2021 = vmatpush.bf16.msra.mxu0 %v1976
    %2022 = vmatmul.bf16.gmra.mxu0 %v1871
    %v2023 = vpop.f32.mrf.mxu0
    %v2024 = vadd.f32 %v2010, %v2023
    %v2025 = vpop.f32.mrf.mxu0
    %v2026 = vadd.f32 %v2012, %v2025
    %2027 = vdwg.mxu0
    %v2028 = vadd.f32 %v960, %v2024
    %v2029 = vadd.f32 %v962, %v2026
    %v2030 = vld [vmem:[#allocation2] sm:$0xf]
    %v2031 = vld [vmem:[#allocation2 + $0x4] sm:$0xf]
    %v2032 = vld [vmem:[#allocation2 + $0x8] sm:$0xf]
    %v2033 = vld [vmem:[#allocation2 + $0xc] sm:$0xf]
    %v2034 = vld [vmem:[#allocation2 + $0x10] sm:$0xf]
    %v2035 = vld [vmem:[#allocation2 + $0x14] sm:$0xf]
    %v2036 = vld [vmem:[#allocation2 + $0x18] sm:$0xf]
    %v2037 = vld [vmem:[#allocation2 + $0x1c] sm:$0xf]
    %v2038 = vld [vmem:[#allocation2 + $0x20] sm:$0xf]
    %v2039 = vld [vmem:[#allocation2 + $0x24] sm:$0xf]
    %v2040 = vld [vmem:[#allocation2 + $0x28] sm:$0xf]
    %v2041 = vld [vmem:[#allocation2 + $0x2c] sm:$0xf]
    %v2042 = vld [vmem:[#allocation2 + $0x30] sm:$0xf]
    %v2043 = vld [vmem:[#allocation2 + $0x34] sm:$0xf]
    %v2044 = vld [vmem:[#allocation2 + $0x38] sm:$0xf]
    %v2045 = vld [vmem:[#allocation2 + $0x3c] sm:$0xf]
    %v2046 = vld [vmem:[#allocation2 + $0x40] sm:$0xf]
    %v2047 = vld [vmem:[#allocation2 + $0x44] sm:$0xf]
    %v2048 = vld [vmem:[#allocation2 + $0x48] sm:$0xf]
    %v2049 = vld [vmem:[#allocation2 + $0x4c] sm:$0xf]
    %v2050 = vld [vmem:[#allocation14] sm:$0xff]
    %v2051 = vld [vmem:[#allocation14 + $0x8] sm:$0xff]
    %v2052 = vld [vmem:[#allocation14 + $0x10] sm:$0xff]
    %v2053 = vld [vmem:[#allocation14 + $0x18] sm:$0xff]
    %v2054 = vld [vmem:[#allocation14 + $0x20] sm:$0xff]
    %v2055 = vld [vmem:[#allocation14 + $0x28] sm:$0xff]
    %v2056 = vld [vmem:[#allocation14 + $0x30] sm:$0xff]
    %v2057 = vld [vmem:[#allocation14 + $0x38] sm:$0xff]
    %v2058 = vld [vmem:[#allocation14 + $0x40] sm:$0xff]
    %v2059 = vld [vmem:[#allocation14 + $0x48] sm:$0xff]
    %v2060 = vld [vmem:[#allocation14 + $0x50] sm:$0xff]
    %v2061 = vld [vmem:[#allocation14 + $0x58] sm:$0xff]
    %v2062 = vld [vmem:[#allocation14 + $0x60] sm:$0xff]
    %v2063 = vld [vmem:[#allocation14 + $0x68] sm:$0xff]
    %v2064 = vld [vmem:[#allocation14 + $0x70] sm:$0xff]
    %v2065 = vld [vmem:[#allocation14 + $0x78] sm:$0xff]
    %s2066 = scalar_lea.vmem [#allocation14], 128
    %v2067 = vld [vmem:[%s2066] sm:$0xff]
    %v2068 = vld [vmem:[%s2066 + $0x8] sm:$0xff]
    %v2069 = vld [vmem:[%s2066 + $0x10] sm:$0xff]
    %v2070 = vld [vmem:[%s2066 + $0x18] sm:$0xff]
    %v2071 = vld [vmem:[%s2066 + $0x20] sm:$0xff]
    %v2072 = vld [vmem:[%s2066 + $0x28] sm:$0xff]
    %v2073 = vld [vmem:[%s2066 + $0x30] sm:$0xff]
    %v2074 = vld [vmem:[%s2066 + $0x38] sm:$0xff]
    %v2075 = vld [vmem:[%s2066 + $0x40] sm:$0xff]
    %v2076 = vld [vmem:[%s2066 + $0x48] sm:$0xff]
    %v2077 = vld [vmem:[%s2066 + $0x50] sm:$0xff]
    %v2078 = vld [vmem:[%s2066 + $0x58] sm:$0xff]
    %v2079 = vld [vmem:[%s2066 + $0x60] sm:$0xff]
    %v2080 = vld [vmem:[%s2066 + $0x68] sm:$0xff]
    %v2081 = vld [vmem:[%s2066 + $0x70] sm:$0xff]
    %v2082 = vld [vmem:[%s2066 + $0x78] sm:$0xff]
    %v2099 = vunpack.c.l.b16 %v2067
    %v2100 = vunpack.c.h.b16 %v2067
    %v2101 = vunpack.c.l.b16 %v2068
    %v2102 = vunpack.c.h.b16 %v2068
    %v2103 = vunpack.c.l.b16 %v2069
    %v2104 = vunpack.c.h.b16 %v2069
    %v2105 = vunpack.c.l.b16 %v2070
    %v2106 = vunpack.c.h.b16 %v2070
    %v2107 = vunpack.c.l.b16 %v2071
    %v2108 = vunpack.c.h.b16 %v2071
    %v2109 = vunpack.c.l.b16 %v2072
    %v2110 = vunpack.c.h.b16 %v2072
    %v2111 = vunpack.c.l.b16 %v2073
    %v2112 = vunpack.c.h.b16 %v2073
    %v2113 = vunpack.c.l.b16 %v2074
    %v2114 = vunpack.c.h.b16 %v2074
    %v2115 = vunpack.c.l.b16 %v2075
    %v2116 = vunpack.c.h.b16 %v2075
    %v2117 = vunpack.c.l.b16 %v2076
    %v2118 = vunpack.c.h.b16 %v2076
    %v2119 = vunpack.c.l.b16 %v2077
    %v2120 = vunpack.c.h.b16 %v2077
    %v2121 = vunpack.c.l.b16 %v2078
    %v2122 = vunpack.c.h.b16 %v2078
    %v2123 = vunpack.c.l.b16 %v2079
    %v2124 = vunpack.c.h.b16 %v2079
    %v2125 = vunpack.c.l.b16 %v2080
    %v2126 = vunpack.c.h.b16 %v2080
    %v2127 = vunpack.c.l.b16 %v2081
    %v2128 = vunpack.c.h.b16 %v2081
    %v2129 = vunpack.c.l.b16 %v2082
    %v2130 = vunpack.c.h.b16 %v2082
    %v2131 = vpack.c.b16 %v2101, %v2099
    %v2132 = vpack.c.b16 %v2102, %v2100
    %v2133 = vpack.c.b16 %v2105, %v2103
    %v2134 = vpack.c.b16 %v2106, %v2104
    %v2135 = vpack.c.b16 %v2109, %v2107
    %v2136 = vpack.c.b16 %v2110, %v2108
    %v2137 = vpack.c.b16 %v2113, %v2111
    %v2138 = vpack.c.b16 %v2114, %v2112
    %v2139 = vpack.c.b16 %v2117, %v2115
    %v2140 = vpack.c.b16 %v2118, %v2116
    %v2141 = vpack.c.b16 %v2121, %v2119
    %v2142 = vpack.c.b16 %v2122, %v2120
    %v2143 = vpack.c.b16 %v2125, %v2123
    %v2144 = vpack.c.b16 %v2126, %v2124
    %v2145 = vpack.c.b16 %v2129, %v2127
    %v2146 = vpack.c.b16 %v2130, %v2128
    %2163 = vmatpush.bf16.msra.mxu0 %v2145
    %2164 = vmatpush.bf16.msra.mxu0 %v2143
    %2165 = vmatpush.bf16.msra.mxu0 %v2141
    %2166 = vmatpush.bf16.msra.mxu0 %v2139
    %2167 = vmatpush.bf16.msra.mxu0 %v2137
    %2168 = vmatpush.bf16.msra.mxu0 %v2135
    %2169 = vmatpush.bf16.msra.mxu0 %v2133
    %2170 = vmatpush.bf16.msra.mxu0 %v2131
    %2171 = vmatmul.bf16.gmra.mxu0 %v1289
    %v2172 = vpop.f32.mrf.mxu0
    %v2173 = vadd.f32 0.0, %v2172
    %v2174 = vpop.f32.mrf.mxu0
    %v2175 = vadd.f32 0.0, %v2174
    %2176 = vmatmul.bf16.gmra.mxu0 %v1290
    %v2177 = vpop.f32.mrf.mxu0
    %v2178 = vadd.f32 0.0, %v2177
    %v2179 = vpop.f32.mrf.mxu0
    %v2180 = vadd.f32 0.0, %v2179
    %2181 = vmatmul.bf16.gmra.mxu0 %v1291
    %v2182 = vpop.f32.mrf.mxu0
    %v2183 = vadd.f32 0.0, %v2182
    %v2184 = vpop.f32.mrf.mxu0
    %v2185 = vadd.f32 0.0, %v2184
    %2186 = vmatmul.bf16.gmra.mxu0 %v1292
    %v2187 = vpop.f32.mrf.mxu0
    %v2188 = vadd.f32 0.0, %v2187
    %v2189 = vpop.f32.mrf.mxu0
    %v2190 = vadd.f32 0.0, %v2189
    %2191 = vmatmul.bf16.gmra.mxu0 %v1293
    %v2192 = vpop.f32.mrf.mxu0
    %v2193 = vadd.f32 0.0, %v2192
    %v2194 = vpop.f32.mrf.mxu0
    %v2195 = vadd.f32 0.0, %v2194
    %2196 = vmatmul.bf16.gmra.mxu0 %v1294
    %v2197 = vpop.f32.mrf.mxu0
    %v2198 = vadd.f32 0.0, %v2197
    %v2199 = vpop.f32.mrf.mxu0
    %v2200 = vadd.f32 0.0, %v2199
    %2201 = vmatmul.bf16.gmra.mxu0 %v1295
    %v2202 = vpop.f32.mrf.mxu0
    %v2203 = vadd.f32 0.0, %v2202
    %v2204 = vpop.f32.mrf.mxu0
    %v2205 = vadd.f32 0.0, %v2204
    %2206 = vmatmul.bf16.gmra.mxu0 %v1296
    %v2207 = vpop.f32.mrf.mxu0
    %v2208 = vadd.f32 0.0, %v2207
    %v2209 = vpop.f32.mrf.mxu0
    %v2210 = vadd.f32 0.0, %v2209
    %2211 = vmatmul.bf16.gmra.mxu0 %v1297
    %v2212 = vpop.f32.mrf.mxu0
    %v2213 = vadd.f32 0.0, %v2212
    %v2214 = vpop.f32.mrf.mxu0
    %v2215 = vadd.f32 0.0, %v2214
    %2216 = vmatmul.bf16.gmra.mxu0 %v1298
    %v2217 = vpop.f32.mrf.mxu0
    %v2218 = vadd.f32 0.0, %v2217
    %v2219 = vpop.f32.mrf.mxu0
    %v2220 = vadd.f32 0.0, %v2219
    %2221 = vdwg.mxu0
    %2222 = vmatpush.bf16.msra.mxu0 %v2146
    %2223 = vmatpush.bf16.msra.mxu0 %v2144
    %2224 = vmatpush.bf16.msra.mxu0 %v2142
    %2225 = vmatpush.bf16.msra.mxu0 %v2140
    %2226 = vmatpush.bf16.msra.mxu0 %v2138
    %2227 = vmatpush.bf16.msra.mxu0 %v2136
    %2228 = vmatpush.bf16.msra.mxu0 %v2134
    %2229 = vmatpush.bf16.msra.mxu0 %v2132
    %2230 = vmatmul.bf16.gmra.mxu0 %v1289
    %v2231 = vpop.f32.mrf.mxu0
    %v2232 = vadd.f32 0.0, %v2231
    %v2233 = vpop.f32.mrf.mxu0
    %v2234 = vadd.f32 0.0, %v2233
    %2235 = vmatmul.bf16.gmra.mxu0 %v1290
    %v2236 = vpop.f32.mrf.mxu0
    %v2237 = vadd.f32 0.0, %v2236
    %v2238 = vpop.f32.mrf.mxu0
    %v2239 = vadd.f32 0.0, %v2238
    %2240 = vmatmul.bf16.gmra.mxu0 %v1291
    %v2241 = vpop.f32.mrf.mxu0
    %v2242 = vadd.f32 0.0, %v2241
    %v2243 = vpop.f32.mrf.mxu0
    %v2244 = vadd.f32 0.0, %v2243
    %2245 = vmatmul.bf16.gmra.mxu0 %v1292
    %v2246 = vpop.f32.mrf.mxu0
    %v2247 = vadd.f32 0.0, %v2246
    %v2248 = vpop.f32.mrf.mxu0
    %v2249 = vadd.f32 0.0, %v2248
    %2250 = vmatmul.bf16.gmra.mxu0 %v1293
    %v2251 = vpop.f32.mrf.mxu0
    %v2252 = vadd.f32 0.0, %v2251
    %v2253 = vpop.f32.mrf.mxu0
    %v2254 = vadd.f32 0.0, %v2253
    %2255 = vmatmul.bf16.gmra.mxu0 %v1294
    %v2256 = vpop.f32.mrf.mxu0
    %v2257 = vadd.f32 0.0, %v2256
    %v2258 = vpop.f32.mrf.mxu0
    %v2259 = vadd.f32 0.0, %v2258
    %2260 = vmatmul.bf16.gmra.mxu0 %v1295
    %v2261 = vpop.f32.mrf.mxu0
    %v2262 = vadd.f32 0.0, %v2261
    %v2263 = vpop.f32.mrf.mxu0
    %v2264 = vadd.f32 0.0, %v2263
    %2265 = vmatmul.bf16.gmra.mxu0 %v1296
    %v2266 = vpop.f32.mrf.mxu0
    %v2267 = vadd.f32 0.0, %v2266
    %v2268 = vpop.f32.mrf.mxu0
    %v2269 = vadd.f32 0.0, %v2268
    %2270 = vmatmul.bf16.gmra.mxu0 %v1297
    %v2271 = vpop.f32.mrf.mxu0
    %v2272 = vadd.f32 0.0, %v2271
    %v2273 = vpop.f32.mrf.mxu0
    %v2274 = vadd.f32 0.0, %v2273
    %2275 = vmatmul.bf16.gmra.mxu0 %v1298
    %v2276 = vpop.f32.mrf.mxu0
    %v2277 = vadd.f32 0.0, %v2276
    %v2278 = vpop.f32.mrf.mxu0
    %v2279 = vadd.f32 0.0, %v2278
    %2280 = vdwg.mxu0
    %v2301 = vunpack.c.l.b16 %v2030
    %v2302 = vunpack.c.l.b16 %v2031
    %v2303 = vunpack.c.l.b16 %v2032
    %v2304 = vunpack.c.l.b16 %v2033
    %v2305 = vunpack.c.l.b16 %v2034
    %v2306 = vunpack.c.l.b16 %v2035
    %v2307 = vunpack.c.l.b16 %v2036
    %v2308 = vunpack.c.l.b16 %v2037
    %v2309 = vunpack.c.l.b16 %v2038
    %v2310 = vunpack.c.l.b16 %v2039
    %v2311 = vunpack.c.l.b16 %v2040
    %v2312 = vunpack.c.l.b16 %v2041
    %v2313 = vunpack.c.l.b16 %v2042
    %v2314 = vunpack.c.l.b16 %v2043
    %v2315 = vunpack.c.l.b16 %v2044
    %v2316 = vunpack.c.l.b16 %v2045
    %v2317 = vunpack.c.l.b16 %v2046
    %v2318 = vunpack.c.l.b16 %v2047
    %v2319 = vunpack.c.l.b16 %v2048
    %v2320 = vunpack.c.l.b16 %v2049
    %v2321 = vpack.c.b16 %v2302, %v2301
    %v2322 = vpack.c.b16 %v2304, %v2303
    %v2323 = vpack.c.b16 %v2306, %v2305
    %v2324 = vpack.c.b16 %v2308, %v2307
    %v2325 = vpack.c.b16 %v2310, %v2309
    %v2326 = vpack.c.b16 %v2312, %v2311
    %v2327 = vpack.c.b16 %v2314, %v2313
    %v2328 = vpack.c.b16 %v2316, %v2315
    %v2329 = vpack.c.b16 %v2318, %v2317
    %v2330 = vpack.c.b16 %v2320, %v2319
    %v2357 = vunpack.c.l.b16 %v2050
    %v2358 = vunpack.c.h.b16 %v2050
    %v2359 = vunpack.c.l.b16 %v2051
    %v2360 = vunpack.c.h.b16 %v2051
    %v2361 = vunpack.c.l.b16 %v2052
    %v2362 = vunpack.c.h.b16 %v2052
    %v2363 = vunpack.c.l.b16 %v2053
    %v2364 = vunpack.c.h.b16 %v2053
    %v2365 = vunpack.c.l.b16 %v2054
    %v2366 = vunpack.c.h.b16 %v2054
    %v2367 = vunpack.c.l.b16 %v2055
    %v2368 = vunpack.c.h.b16 %v2055
    %v2369 = vunpack.c.l.b16 %v2056
    %v2370 = vunpack.c.h.b16 %v2056
    %v2371 = vunpack.c.l.b16 %v2057
    %v2372 = vunpack.c.h.b16 %v2057
    %v2373 = vunpack.c.l.b16 %v2058
    %v2374 = vunpack.c.h.b16 %v2058
    %v2375 = vunpack.c.l.b16 %v2059
    %v2376 = vunpack.c.h.b16 %v2059
    %v2377 = vunpack.c.l.b16 %v2060
    %v2378 = vunpack.c.h.b16 %v2060
    %v2379 = vunpack.c.l.b16 %v2061
    %v2380 = vunpack.c.h.b16 %v2061
    %v2381 = vunpack.c.l.b16 %v2062
    %v2382 = vunpack.c.h.b16 %v2062
    %v2383 = vunpack.c.l.b16 %v2063
    %v2384 = vunpack.c.h.b16 %v2063
    %v2385 = vunpack.c.l.b16 %v2064
    %v2386 = vunpack.c.h.b16 %v2064
    %v2387 = vunpack.c.l.b16 %v2065
    %v2388 = vunpack.c.h.b16 %v2065
    %v2389 = vpack.c.b16 %v2359, %v2357
    %v2390 = vpack.c.b16 %v2360, %v2358
    %v2391 = vpack.c.b16 %v2363, %v2361
    %v2392 = vpack.c.b16 %v2364, %v2362
    %v2393 = vpack.c.b16 %v2367, %v2365
    %v2394 = vpack.c.b16 %v2368, %v2366
    %v2395 = vpack.c.b16 %v2371, %v2369
    %v2396 = vpack.c.b16 %v2372, %v2370
    %v2397 = vpack.c.b16 %v2375, %v2373
    %v2398 = vpack.c.b16 %v2376, %v2374
    %v2399 = vpack.c.b16 %v2379, %v2377
    %v2400 = vpack.c.b16 %v2380, %v2378
    %v2401 = vpack.c.b16 %v2383, %v2381
    %v2402 = vpack.c.b16 %v2384, %v2382
    %v2403 = vpack.c.b16 %v2387, %v2385
    %v2404 = vpack.c.b16 %v2388, %v2386
    %2421 = vmatpush.bf16.msra.mxu0 %v2403
    %2422 = vmatpush.bf16.msra.mxu0 %v2401
    %2423 = vmatpush.bf16.msra.mxu0 %v2399
    %2424 = vmatpush.bf16.msra.mxu0 %v2397
    %2425 = vmatpush.bf16.msra.mxu0 %v2395
    %2426 = vmatpush.bf16.msra.mxu0 %v2393
    %2427 = vmatpush.bf16.msra.mxu0 %v2391
    %2428 = vmatpush.bf16.msra.mxu0 %v2389
    %2429 = vmatmul.bf16.gmra.mxu0 %v2321
    %v2430 = vpop.f32.mrf.mxu0
    %v2431 = vadd.f32 %v2173, %v2430
    %v2432 = vpop.f32.mrf.mxu0
    %v2433 = vadd.f32 %v2175, %v2432
    %2434 = vmatmul.bf16.gmra.mxu0 %v2322
    %v2435 = vpop.f32.mrf.mxu0
    %v2436 = vadd.f32 %v2178, %v2435
    %v2437 = vpop.f32.mrf.mxu0
    %v2438 = vadd.f32 %v2180, %v2437
    %2439 = vmatmul.bf16.gmra.mxu0 %v2323
    %v2440 = vpop.f32.mrf.mxu0
    %v2441 = vadd.f32 %v2183, %v2440
    %v2442 = vpop.f32.mrf.mxu0
    %v2443 = vadd.f32 %v2185, %v2442
    %2444 = vmatmul.bf16.gmra.mxu0 %v2324
    %v2445 = vpop.f32.mrf.mxu0
    %v2446 = vadd.f32 %v2188, %v2445
    %v2447 = vpop.f32.mrf.mxu0
    %v2448 = vadd.f32 %v2190, %v2447
    %2449 = vmatmul.bf16.gmra.mxu0 %v2325
    %v2450 = vpop.f32.mrf.mxu0
    %v2451 = vadd.f32 %v2193, %v2450
    %v2452 = vpop.f32.mrf.mxu0
    %v2453 = vadd.f32 %v2195, %v2452
    %2454 = vmatmul.bf16.gmra.mxu0 %v2326
    %v2455 = vpop.f32.mrf.mxu0
    %v2456 = vadd.f32 %v2198, %v2455
    %v2457 = vpop.f32.mrf.mxu0
    %v2458 = vadd.f32 %v2200, %v2457
    %2459 = vmatmul.bf16.gmra.mxu0 %v2327
    %v2460 = vpop.f32.mrf.mxu0
    %v2461 = vadd.f32 %v2203, %v2460
    %v2462 = vpop.f32.mrf.mxu0
    %v2463 = vadd.f32 %v2205, %v2462
    %2464 = vmatmul.bf16.gmra.mxu0 %v2328
    %v2465 = vpop.f32.mrf.mxu0
    %v2466 = vadd.f32 %v2208, %v2465
    %v2467 = vpop.f32.mrf.mxu0
    %v2468 = vadd.f32 %v2210, %v2467
    %2469 = vmatmul.bf16.gmra.mxu0 %v2329
    %v2470 = vpop.f32.mrf.mxu0
    %v2471 = vadd.f32 %v2213, %v2470
    %v2472 = vpop.f32.mrf.mxu0
    %v2473 = vadd.f32 %v2215, %v2472
    %2474 = vmatmul.bf16.gmra.mxu0 %v2330
    %v2475 = vpop.f32.mrf.mxu0
    %v2476 = vadd.f32 %v2218, %v2475
    %v2477 = vpop.f32.mrf.mxu0
    %v2478 = vadd.f32 %v2220, %v2477
    %2479 = vdwg.mxu0
    %2480 = vmatpush.bf16.msra.mxu0 %v2404
    %2481 = vmatpush.bf16.msra.mxu0 %v2402
    %2482 = vmatpush.bf16.msra.mxu0 %v2400
    %2483 = vmatpush.bf16.msra.mxu0 %v2398
    %2484 = vmatpush.bf16.msra.mxu0 %v2396
    %2485 = vmatpush.bf16.msra.mxu0 %v2394
    %2486 = vmatpush.bf16.msra.mxu0 %v2392
    %2487 = vmatpush.bf16.msra.mxu0 %v2390
    %2488 = vmatmul.bf16.gmra.mxu0 %v2321
    %v2489 = vpop.f32.mrf.mxu0
    %v2490 = vadd.f32 %v2232, %v2489
    %v2491 = vpop.f32.mrf.mxu0
    %v2492 = vadd.f32 %v2234, %v2491
    %2493 = vmatmul.bf16.gmra.mxu0 %v2322
    %v2494 = vpop.f32.mrf.mxu0
    %v2495 = vadd.f32 %v2237, %v2494
    %v2496 = vpop.f32.mrf.mxu0
    %v2497 = vadd.f32 %v2239, %v2496
    %2498 = vmatmul.bf16.gmra.mxu0 %v2323
    %v2499 = vpop.f32.mrf.mxu0
    %v2500 = vadd.f32 %v2242, %v2499
    %v2501 = vpop.f32.mrf.mxu0
    %v2502 = vadd.f32 %v2244, %v2501
    %2503 = vmatmul.bf16.gmra.mxu0 %v2324
    %v2504 = vpop.f32.mrf.mxu0
    %v2505 = vadd.f32 %v2247, %v2504
    %v2506 = vpop.f32.mrf.mxu0
    %v2507 = vadd.f32 %v2249, %v2506
    %2508 = vmatmul.bf16.gmra.mxu0 %v2325
    %v2509 = vpop.f32.mrf.mxu0
    %v2510 = vadd.f32 %v2252, %v2509
    %v2511 = vpop.f32.mrf.mxu0
    %v2512 = vadd.f32 %v2254, %v2511
    %2513 = vmatmul.bf16.gmra.mxu0 %v2326
    %v2514 = vpop.f32.mrf.mxu0
    %v2515 = vadd.f32 %v2257, %v2514
    %v2516 = vpop.f32.mrf.mxu0
    %v2517 = vadd.f32 %v2259, %v2516
    %2518 = vmatmul.bf16.gmra.mxu0 %v2327
    %v2519 = vpop.f32.mrf.mxu0
    %v2520 = vadd.f32 %v2262, %v2519
    %v2521 = vpop.f32.mrf.mxu0
    %v2522 = vadd.f32 %v2264, %v2521
    %2523 = vmatmul.bf16.gmra.mxu0 %v2328
    %v2524 = vpop.f32.mrf.mxu0
    %v2525 = vadd.f32 %v2267, %v2524
    %v2526 = vpop.f32.mrf.mxu0
    %v2527 = vadd.f32 %v2269, %v2526
    %2528 = vmatmul.bf16.gmra.mxu0 %v2329
    %v2529 = vpop.f32.mrf.mxu0
    %v2530 = vadd.f32 %v2272, %v2529
    %v2531 = vpop.f32.mrf.mxu0
    %v2532 = vadd.f32 %v2274, %v2531
    %2533 = vmatmul.bf16.gmra.mxu0 %v2330
    %v2534 = vpop.f32.mrf.mxu0
    %v2535 = vadd.f32 %v2277, %v2534
    %v2536 = vpop.f32.mrf.mxu0
    %v2537 = vadd.f32 %v2279, %v2536
    %2538 = vdwg.mxu0
    %s2539 = scalar_lea.vmem [#allocation14], 256
    %v2540 = vld [vmem:[%s2539] sm:$0xff]
    %v2541 = vld [vmem:[%s2539 + $0x8] sm:$0xff]
    %v2542 = vld [vmem:[%s2539 + $0x10] sm:$0xff]
    %v2543 = vld [vmem:[%s2539 + $0x18] sm:$0xff]
    %v2544 = vld [vmem:[%s2539 + $0x20] sm:$0xff]
    %v2545 = vld [vmem:[%s2539 + $0x28] sm:$0xff]
    %v2546 = vld [vmem:[%s2539 + $0x30] sm:$0xff]
    %v2547 = vld [vmem:[%s2539 + $0x38] sm:$0xff]
    %v2548 = vld [vmem:[%s2539 + $0x40] sm:$0xff]
    %v2549 = vld [vmem:[%s2539 + $0x48] sm:$0xff]
    %v2550 = vld [vmem:[%s2539 + $0x50] sm:$0xff]
    %v2551 = vld [vmem:[%s2539 + $0x58] sm:$0xff]
    %v2552 = vld [vmem:[%s2539 + $0x60] sm:$0xff]
    %v2553 = vld [vmem:[%s2539 + $0x68] sm:$0xff]
    %v2554 = vld [vmem:[%s2539 + $0x70] sm:$0xff]
    %v2555 = vld [vmem:[%s2539 + $0x78] sm:$0xff]
    %v2572 = vunpack.c.l.b16 %v2540
    %v2573 = vunpack.c.h.b16 %v2540
    %v2574 = vunpack.c.l.b16 %v2541
    %v2575 = vunpack.c.h.b16 %v2541
    %v2576 = vunpack.c.l.b16 %v2542
    %v2577 = vunpack.c.h.b16 %v2542
    %v2578 = vunpack.c.l.b16 %v2543
    %v2579 = vunpack.c.h.b16 %v2543
    %v2580 = vunpack.c.l.b16 %v2544
    %v2581 = vunpack.c.h.b16 %v2544
    %v2582 = vunpack.c.l.b16 %v2545
    %v2583 = vunpack.c.h.b16 %v2545
    %v2584 = vunpack.c.l.b16 %v2546
    %v2585 = vunpack.c.h.b16 %v2546
    %v2586 = vunpack.c.l.b16 %v2547
    %v2587 = vunpack.c.h.b16 %v2547
    %v2588 = vunpack.c.l.b16 %v2548
    %v2589 = vunpack.c.h.b16 %v2548
    %v2590 = vunpack.c.l.b16 %v2549
    %v2591 = vunpack.c.h.b16 %v2549
    %v2592 = vunpack.c.l.b16 %v2550
    %v2593 = vunpack.c.h.b16 %v2550
    %v2594 = vunpack.c.l.b16 %v2551
    %v2595 = vunpack.c.h.b16 %v2551
    %v2596 = vunpack.c.l.b16 %v2552
    %v2597 = vunpack.c.h.b16 %v2552
    %v2598 = vunpack.c.l.b16 %v2553
    %v2599 = vunpack.c.h.b16 %v2553
    %v2600 = vunpack.c.l.b16 %v2554
    %v2601 = vunpack.c.h.b16 %v2554
    %v2602 = vunpack.c.l.b16 %v2555
    %v2603 = vunpack.c.h.b16 %v2555
    %v2604 = vpack.c.b16 %v2574, %v2572
    %v2605 = vpack.c.b16 %v2575, %v2573
    %v2606 = vpack.c.b16 %v2578, %v2576
    %v2607 = vpack.c.b16 %v2579, %v2577
    %v2608 = vpack.c.b16 %v2582, %v2580
    %v2609 = vpack.c.b16 %v2583, %v2581
    %v2610 = vpack.c.b16 %v2586, %v2584
    %v2611 = vpack.c.b16 %v2587, %v2585
    %v2612 = vpack.c.b16 %v2590, %v2588
    %v2613 = vpack.c.b16 %v2591, %v2589
    %v2614 = vpack.c.b16 %v2594, %v2592
    %v2615 = vpack.c.b16 %v2595, %v2593
    %v2616 = vpack.c.b16 %v2598, %v2596
    %v2617 = vpack.c.b16 %v2599, %v2597
    %v2618 = vpack.c.b16 %v2602, %v2600
    %v2619 = vpack.c.b16 %v2603, %v2601
    %2636 = vmatpush.bf16.msra.mxu0 %v2618
    %2637 = vmatpush.bf16.msra.mxu0 %v2616
    %2638 = vmatpush.bf16.msra.mxu0 %v2614
    %2639 = vmatpush.bf16.msra.mxu0 %v2612
    %2640 = vmatpush.bf16.msra.mxu0 %v2610
    %2641 = vmatpush.bf16.msra.mxu0 %v2608
    %2642 = vmatpush.bf16.msra.mxu0 %v2606
    %2643 = vmatpush.bf16.msra.mxu0 %v2604
    %2644 = vmatmul.bf16.gmra.mxu0 %v653
    %v2645 = vpop.f32.mrf.mxu0
    %v2646 = vadd.f32 0.0, %v2645
    %v2647 = vpop.f32.mrf.mxu0
    %v2648 = vadd.f32 0.0, %v2647
    %2649 = vmatmul.bf16.gmra.mxu0 %v654
    %v2650 = vpop.f32.mrf.mxu0
    %v2651 = vadd.f32 0.0, %v2650
    %v2652 = vpop.f32.mrf.mxu0
    %v2653 = vadd.f32 0.0, %v2652
    %2654 = vmatmul.bf16.gmra.mxu0 %v655
    %v2655 = vpop.f32.mrf.mxu0
    %v2656 = vadd.f32 0.0, %v2655
    %v2657 = vpop.f32.mrf.mxu0
    %v2658 = vadd.f32 0.0, %v2657
    %2659 = vmatmul.bf16.gmra.mxu0 %v656
    %v2660 = vpop.f32.mrf.mxu0
    %v2661 = vadd.f32 0.0, %v2660
    %v2662 = vpop.f32.mrf.mxu0
    %v2663 = vadd.f32 0.0, %v2662
    %2664 = vmatmul.bf16.gmra.mxu0 %v657
    %v2665 = vpop.f32.mrf.mxu0
    %v2666 = vadd.f32 0.0, %v2665
    %v2667 = vpop.f32.mrf.mxu0
    %v2668 = vadd.f32 0.0, %v2667
    %2669 = vmatmul.bf16.gmra.mxu0 %v658
    %v2670 = vpop.f32.mrf.mxu0
    %v2671 = vadd.f32 0.0, %v2670
    %v2672 = vpop.f32.mrf.mxu0
    %v2673 = vadd.f32 0.0, %v2672
    %2674 = vmatmul.bf16.gmra.mxu0 %v659
    %v2675 = vpop.f32.mrf.mxu0
    %v2676 = vadd.f32 0.0, %v2675
    %v2677 = vpop.f32.mrf.mxu0
    %v2678 = vadd.f32 0.0, %v2677
    %2679 = vmatmul.bf16.gmra.mxu0 %v660
    %v2680 = vpop.f32.mrf.mxu0
    %v2681 = vadd.f32 0.0, %v2680
    %v2682 = vpop.f32.mrf.mxu0
    %v2683 = vadd.f32 0.0, %v2682
    %2684 = vmatmul.bf16.gmra.mxu0 %v661
    %v2685 = vpop.f32.mrf.mxu0
    %v2686 = vadd.f32 0.0, %v2685
    %v2687 = vpop.f32.mrf.mxu0
    %v2688 = vadd.f32 0.0, %v2687
    %2689 = vmatmul.bf16.gmra.mxu0 %v662
    %v2690 = vpop.f32.mrf.mxu0
    %v2691 = vadd.f32 0.0, %v2690
    %v2692 = vpop.f32.mrf.mxu0
    %v2693 = vadd.f32 0.0, %v2692
    %2694 = vdwg.mxu0
    %2695 = vmatpush.bf16.msra.mxu0 %v2619
    %2696 = vmatpush.bf16.msra.mxu0 %v2617
    %2697 = vmatpush.bf16.msra.mxu0 %v2615
    %2698 = vmatpush.bf16.msra.mxu0 %v2613
    %2699 = vmatpush.bf16.msra.mxu0 %v2611
    %2700 = vmatpush.bf16.msra.mxu0 %v2609
    %2701 = vmatpush.bf16.msra.mxu0 %v2607
    %2702 = vmatpush.bf16.msra.mxu0 %v2605
    %2703 = vmatmul.bf16.gmra.mxu0 %v653
    %v2704 = vpop.f32.mrf.mxu0
    %v2705 = vadd.f32 0.0, %v2704
    %v2706 = vpop.f32.mrf.mxu0
    %v2707 = vadd.f32 0.0, %v2706
    %2708 = vmatmul.bf16.gmra.mxu0 %v654
    %v2709 = vpop.f32.mrf.mxu0
    %v2710 = vadd.f32 0.0, %v2709
    %v2711 = vpop.f32.mrf.mxu0
    %v2712 = vadd.f32 0.0, %v2711
    %2713 = vmatmul.bf16.gmra.mxu0 %v655
    %v2714 = vpop.f32.mrf.mxu0
    %v2715 = vadd.f32 0.0, %v2714
    %v2716 = vpop.f32.mrf.mxu0
    %v2717 = vadd.f32 0.0, %v2716
    %2718 = vmatmul.bf16.gmra.mxu0 %v656
    %v2719 = vpop.f32.mrf.mxu0
    %v2720 = vadd.f32 0.0, %v2719
    %v2721 = vpop.f32.mrf.mxu0
    %v2722 = vadd.f32 0.0, %v2721
    %2723 = vmatmul.bf16.gmra.mxu0 %v657
    %v2724 = vpop.f32.mrf.mxu0
    %v2725 = vadd.f32 0.0, %v2724
    %v2726 = vpop.f32.mrf.mxu0
    %v2727 = vadd.f32 0.0, %v2726
    %2728 = vmatmul.bf16.gmra.mxu0 %v658
    %v2729 = vpop.f32.mrf.mxu0
    %v2730 = vadd.f32 0.0, %v2729
    %v2731 = vpop.f32.mrf.mxu0
    %v2732 = vadd.f32 0.0, %v2731
    %2733 = vmatmul.bf16.gmra.mxu0 %v659
    %v2734 = vpop.f32.mrf.mxu0
    %v2735 = vadd.f32 0.0, %v2734
    %v2736 = vpop.f32.mrf.mxu0
    %v2737 = vadd.f32 0.0, %v2736
    %2738 = vmatmul.bf16.gmra.mxu0 %v660
    %v2739 = vpop.f32.mrf.mxu0
    %v2740 = vadd.f32 0.0, %v2739
    %v2741 = vpop.f32.mrf.mxu0
    %v2742 = vadd.f32 0.0, %v2741
    %2743 = vmatmul.bf16.gmra.mxu0 %v661
    %v2744 = vpop.f32.mrf.mxu0
    %v2745 = vadd.f32 0.0, %v2744
    %v2746 = vpop.f32.mrf.mxu0
    %v2747 = vadd.f32 0.0, %v2746
    %2748 = vmatmul.bf16.gmra.mxu0 %v662
    %v2749 = vpop.f32.mrf.mxu0
    %v2750 = vadd.f32 0.0, %v2749
    %v2751 = vpop.f32.mrf.mxu0
    %v2752 = vadd.f32 0.0, %v2751
    %2753 = vdwg.mxu0
    %v2754 = vadd.f32 %v2431, %v2646
    %v2755 = vadd.f32 %v2490, %v2705
    %v2756 = vadd.f32 %v2433, %v2648
    %v2757 = vadd.f32 %v2492, %v2707
    %v2758 = vadd.f32 %v2436, %v2651
    %v2759 = vadd.f32 %v2495, %v2710
    %v2760 = vadd.f32 %v2438, %v2653
    %v2761 = vadd.f32 %v2497, %v2712
    %v2762 = vadd.f32 %v2441, %v2656
    %v2763 = vadd.f32 %v2500, %v2715
    %v2764 = vadd.f32 %v2443, %v2658
    %v2765 = vadd.f32 %v2502, %v2717
    %v2766 = vadd.f32 %v2446, %v2661
    %v2767 = vadd.f32 %v2505, %v2720
    %v2768 = vadd.f32 %v2448, %v2663
    %v2769 = vadd.f32 %v2507, %v2722
    %v2770 = vadd.f32 %v2451, %v2666
    %v2771 = vadd.f32 %v2510, %v2725
    %v2772 = vadd.f32 %v2453, %v2668
    %v2773 = vadd.f32 %v2512, %v2727
    %v2774 = vadd.f32 %v2456, %v2671
    %v2775 = vadd.f32 %v2515, %v2730
    %v2776 = vadd.f32 %v2458, %v2673
    %v2777 = vadd.f32 %v2517, %v2732
    %v2778 = vadd.f32 %v2461, %v2676
    %v2779 = vadd.f32 %v2520, %v2735
    %v2780 = vadd.f32 %v2463, %v2678
    %v2781 = vadd.f32 %v2522, %v2737
    %v2782 = vadd.f32 %v2466, %v2681
    %v2783 = vadd.f32 %v2525, %v2740
    %v2784 = vadd.f32 %v2468, %v2683
    %v2785 = vadd.f32 %v2527, %v2742
    %v2786 = vadd.f32 %v2471, %v2686
    %v2787 = vadd.f32 %v2530, %v2745
    %v2788 = vadd.f32 %v2473, %v2688
    %v2789 = vadd.f32 %v2532, %v2747
    %v2790 = vadd.f32 %v2476, %v2691
    %v2791 = vadd.f32 %v2535, %v2750
    %v2792 = vadd.f32 %v2478, %v2693
    %v2793 = vadd.f32 %v2537, %v2752
    %s2794 = scalar_lea.vmem [#allocation14], 384
    %v2795 = vld [vmem:[%s2794] sm:$0xff]
    %v2796 = vld [vmem:[%s2794 + $0x8] sm:$0xff]
    %v2797 = vld [vmem:[%s2794 + $0x10] sm:$0xff]
    %v2798 = vld [vmem:[%s2794 + $0x18] sm:$0xff]
    %v2799 = vld [vmem:[%s2794 + $0x20] sm:$0xff]
    %v2800 = vld [vmem:[%s2794 + $0x28] sm:$0xff]
    %v2801 = vld [vmem:[%s2794 + $0x30] sm:$0xff]
    %v2802 = vld [vmem:[%s2794 + $0x38] sm:$0xff]
    %v2803 = vld [vmem:[%s2794 + $0x40] sm:$0xff]
    %v2804 = vld [vmem:[%s2794 + $0x48] sm:$0xff]
    %v2805 = vld [vmem:[%s2794 + $0x50] sm:$0xff]
    %v2806 = vld [vmem:[%s2794 + $0x58] sm:$0xff]
    %v2807 = vld [vmem:[%s2794 + $0x60] sm:$0xff]
    %v2808 = vld [vmem:[%s2794 + $0x68] sm:$0xff]
    %v2809 = vld [vmem:[%s2794 + $0x70] sm:$0xff]
    %v2810 = vld [vmem:[%s2794 + $0x78] sm:$0xff]
    %v2827 = vunpack.c.l.b16 %v2795
    %v2828 = vunpack.c.h.b16 %v2795
    %v2829 = vunpack.c.l.b16 %v2796
    %v2830 = vunpack.c.h.b16 %v2796
    %v2831 = vunpack.c.l.b16 %v2797
    %v2832 = vunpack.c.h.b16 %v2797
    %v2833 = vunpack.c.l.b16 %v2798
    %v2834 = vunpack.c.h.b16 %v2798
    %v2835 = vunpack.c.l.b16 %v2799
    %v2836 = vunpack.c.h.b16 %v2799
    %v2837 = vunpack.c.l.b16 %v2800
    %v2838 = vunpack.c.h.b16 %v2800
    %v2839 = vunpack.c.l.b16 %v2801
    %v2840 = vunpack.c.h.b16 %v2801
    %v2841 = vunpack.c.l.b16 %v2802
    %v2842 = vunpack.c.h.b16 %v2802
    %v2843 = vunpack.c.l.b16 %v2803
    %v2844 = vunpack.c.h.b16 %v2803
    %v2845 = vunpack.c.l.b16 %v2804
    %v2846 = vunpack.c.h.b16 %v2804
    %v2847 = vunpack.c.l.b16 %v2805
    %v2848 = vunpack.c.h.b16 %v2805
    %v2849 = vunpack.c.l.b16 %v2806
    %v2850 = vunpack.c.h.b16 %v2806
    %v2851 = vunpack.c.l.b16 %v2807
    %v2852 = vunpack.c.h.b16 %v2807
    %v2853 = vunpack.c.l.b16 %v2808
    %v2854 = vunpack.c.h.b16 %v2808
    %v2855 = vunpack.c.l.b16 %v2809
    %v2856 = vunpack.c.h.b16 %v2809
    %v2857 = vunpack.c.l.b16 %v2810
    %v2858 = vunpack.c.h.b16 %v2810
    %v2859 = vpack.c.b16 %v2829, %v2827
    %v2860 = vpack.c.b16 %v2830, %v2828
    %v2861 = vpack.c.b16 %v2833, %v2831
    %v2862 = vpack.c.b16 %v2834, %v2832
    %v2863 = vpack.c.b16 %v2837, %v2835
    %v2864 = vpack.c.b16 %v2838, %v2836
    %v2865 = vpack.c.b16 %v2841, %v2839
    %v2866 = vpack.c.b16 %v2842, %v2840
    %v2867 = vpack.c.b16 %v2845, %v2843
    %v2868 = vpack.c.b16 %v2846, %v2844
    %v2869 = vpack.c.b16 %v2849, %v2847
    %v2870 = vpack.c.b16 %v2850, %v2848
    %v2871 = vpack.c.b16 %v2853, %v2851
    %v2872 = vpack.c.b16 %v2854, %v2852
    %v2873 = vpack.c.b16 %v2857, %v2855
    %v2874 = vpack.c.b16 %v2858, %v2856
    %2891 = vmatpush.bf16.msra.mxu0 %v2873
    %2892 = vmatpush.bf16.msra.mxu0 %v2871
    %2893 = vmatpush.bf16.msra.mxu0 %v2869
    %2894 = vmatpush.bf16.msra.mxu0 %v2867
    %2895 = vmatpush.bf16.msra.mxu0 %v2865
    %2896 = vmatpush.bf16.msra.mxu0 %v2863
    %2897 = vmatpush.bf16.msra.mxu0 %v2861
    %2898 = vmatpush.bf16.msra.mxu0 %v2859
    %2899 = vmatmul.bf16.gmra.mxu0 %v442
    %v2900 = vpop.f32.mrf.mxu0
    %v2901 = vadd.f32 0.0, %v2900
    %v2902 = vpop.f32.mrf.mxu0
    %v2903 = vadd.f32 0.0, %v2902
    %2904 = vmatmul.bf16.gmra.mxu0 %v443
    %v2905 = vpop.f32.mrf.mxu0
    %v2906 = vadd.f32 0.0, %v2905
    %v2907 = vpop.f32.mrf.mxu0
    %v2908 = vadd.f32 0.0, %v2907
    %2909 = vmatmul.bf16.gmra.mxu0 %v444
    %v2910 = vpop.f32.mrf.mxu0
    %v2911 = vadd.f32 0.0, %v2910
    %v2912 = vpop.f32.mrf.mxu0
    %v2913 = vadd.f32 0.0, %v2912
    %2914 = vmatmul.bf16.gmra.mxu0 %v445
    %v2915 = vpop.f32.mrf.mxu0
    %v2916 = vadd.f32 0.0, %v2915
    %v2917 = vpop.f32.mrf.mxu0
    %v2918 = vadd.f32 0.0, %v2917
    %2919 = vmatmul.bf16.gmra.mxu0 %v446
    %v2920 = vpop.f32.mrf.mxu0
    %v2921 = vadd.f32 0.0, %v2920
    %v2922 = vpop.f32.mrf.mxu0
    %v2923 = vadd.f32 0.0, %v2922
    %2924 = vmatmul.bf16.gmra.mxu0 %v447
    %v2925 = vpop.f32.mrf.mxu0
    %v2926 = vadd.f32 0.0, %v2925
    %v2927 = vpop.f32.mrf.mxu0
    %v2928 = vadd.f32 0.0, %v2927
    %2929 = vmatmul.bf16.gmra.mxu0 %v448
    %v2930 = vpop.f32.mrf.mxu0
    %v2931 = vadd.f32 0.0, %v2930
    %v2932 = vpop.f32.mrf.mxu0
    %v2933 = vadd.f32 0.0, %v2932
    %2934 = vmatmul.bf16.gmra.mxu0 %v449
    %v2935 = vpop.f32.mrf.mxu0
    %v2936 = vadd.f32 0.0, %v2935
    %v2937 = vpop.f32.mrf.mxu0
    %v2938 = vadd.f32 0.0, %v2937
    %2939 = vmatmul.bf16.gmra.mxu0 %v450
    %v2940 = vpop.f32.mrf.mxu0
    %v2941 = vadd.f32 0.0, %v2940
    %v2942 = vpop.f32.mrf.mxu0
    %v2943 = vadd.f32 0.0, %v2942
    %2944 = vmatmul.bf16.gmra.mxu0 %v451
    %v2945 = vpop.f32.mrf.mxu0
    %v2946 = vadd.f32 0.0, %v2945
    %v2947 = vpop.f32.mrf.mxu0
    %v2948 = vadd.f32 0.0, %v2947
    %2949 = vdwg.mxu0
    %2950 = vmatpush.bf16.msra.mxu0 %v2874
    %2951 = vmatpush.bf16.msra.mxu0 %v2872
    %2952 = vmatpush.bf16.msra.mxu0 %v2870
    %2953 = vmatpush.bf16.msra.mxu0 %v2868
    %2954 = vmatpush.bf16.msra.mxu0 %v2866
    %2955 = vmatpush.bf16.msra.mxu0 %v2864
    %2956 = vmatpush.bf16.msra.mxu0 %v2862
    %2957 = vmatpush.bf16.msra.mxu0 %v2860
    %2958 = vmatmul.bf16.gmra.mxu0 %v442
    %v2959 = vpop.f32.mrf.mxu0
    %v2960 = vadd.f32 0.0, %v2959
    %v2961 = vpop.f32.mrf.mxu0
    %v2962 = vadd.f32 0.0, %v2961
    %2963 = vmatmul.bf16.gmra.mxu0 %v443
    %v2964 = vpop.f32.mrf.mxu0
    %v2965 = vadd.f32 0.0, %v2964
    %v2966 = vpop.f32.mrf.mxu0
    %v2967 = vadd.f32 0.0, %v2966
    %2968 = vmatmul.bf16.gmra.mxu0 %v444
    %v2969 = vpop.f32.mrf.mxu0
    %v2970 = vadd.f32 0.0, %v2969
    %v2971 = vpop.f32.mrf.mxu0
    %v2972 = vadd.f32 0.0, %v2971
    %2973 = vmatmul.bf16.gmra.mxu0 %v445
    %v2974 = vpop.f32.mrf.mxu0
    %v2975 = vadd.f32 0.0, %v2974
    %v2976 = vpop.f32.mrf.mxu0
    %v2977 = vadd.f32 0.0, %v2976
    %2978 = vmatmul.bf16.gmra.mxu0 %v446
    %v2979 = vpop.f32.mrf.mxu0
    %v2980 = vadd.f32 0.0, %v2979
    %v2981 = vpop.f32.mrf.mxu0
    %v2982 = vadd.f32 0.0, %v2981
    %2983 = vmatmul.bf16.gmra.mxu0 %v447
    %v2984 = vpop.f32.mrf.mxu0
    %v2985 = vadd.f32 0.0, %v2984
    %v2986 = vpop.f32.mrf.mxu0
    %v2987 = vadd.f32 0.0, %v2986
    %2988 = vmatmul.bf16.gmra.mxu0 %v448
    %v2989 = vpop.f32.mrf.mxu0
    %v2990 = vadd.f32 0.0, %v2989
    %v2991 = vpop.f32.mrf.mxu0
    %v2992 = vadd.f32 0.0, %v2991
    %2993 = vmatmul.bf16.gmra.mxu0 %v449
    %v2994 = vpop.f32.mrf.mxu0
    %v2995 = vadd.f32 0.0, %v2994
    %v2996 = vpop.f32.mrf.mxu0
    %v2997 = vadd.f32 0.0, %v2996
    %2998 = vmatmul.bf16.gmra.mxu0 %v450
    %v2999 = vpop.f32.mrf.mxu0
    %v3000 = vadd.f32 0.0, %v2999
    %v3001 = vpop.f32.mrf.mxu0
    %v3002 = vadd.f32 0.0, %v3001
    %3003 = vmatmul.bf16.gmra.mxu0 %v451
    %v3004 = vpop.f32.mrf.mxu0
    %v3005 = vadd.f32 0.0, %v3004
    %v3006 = vpop.f32.mrf.mxu0
    %v3007 = vadd.f32 0.0, %v3006
    %3008 = vdwg.mxu0
    %v3009 = vadd.f32 %v2754, %v2901
    %v3010 = vadd.f32 %v2755, %v2960
    %v3011 = vadd.f32 %v2756, %v2903
    %v3012 = vadd.f32 %v2757, %v2962
    %v3013 = vadd.f32 %v2758, %v2906
    %v3014 = vadd.f32 %v2759, %v2965
    %v3015 = vadd.f32 %v2760, %v2908
    %v3016 = vadd.f32 %v2761, %v2967
    %v3017 = vadd.f32 %v2762, %v2911
    %v3018 = vadd.f32 %v2763, %v2970
    %v3019 = vadd.f32 %v2764, %v2913
    %v3020 = vadd.f32 %v2765, %v2972
    %v3021 = vadd.f32 %v2766, %v2916
    %v3022 = vadd.f32 %v2767, %v2975
    %v3023 = vadd.f32 %v2768, %v2918
    %v3024 = vadd.f32 %v2769, %v2977
    %v3025 = vadd.f32 %v2770, %v2921
    %v3026 = vadd.f32 %v2771, %v2980
    %v3027 = vadd.f32 %v2772, %v2923
    %v3028 = vadd.f32 %v2773, %v2982
    %v3029 = vadd.f32 %v2774, %v2926
    %v3030 = vadd.f32 %v2775, %v2985
    %v3031 = vadd.f32 %v2776, %v2928
    %v3032 = vadd.f32 %v2777, %v2987
    %v3033 = vadd.f32 %v2778, %v2931
    %v3034 = vadd.f32 %v2779, %v2990
    %v3035 = vadd.f32 %v2780, %v2933
    %v3036 = vadd.f32 %v2781, %v2992
    %v3037 = vadd.f32 %v2782, %v2936
    %v3038 = vadd.f32 %v2783, %v2995
    %v3039 = vadd.f32 %v2784, %v2938
    %v3040 = vadd.f32 %v2785, %v2997
    %v3041 = vadd.f32 %v2786, %v2941
    %v3042 = vadd.f32 %v2787, %v3000
    %v3043 = vadd.f32 %v2788, %v2943
    %v3044 = vadd.f32 %v2789, %v3002
    %v3045 = vadd.f32 %v2790, %v2946
    %v3046 = vadd.f32 %v2791, %v3005
    %v3047 = vadd.f32 %v2792, %v2948
    %v3048 = vadd.f32 %v2793, %v3007
    %v3049 = vmax.f32 %v3009, %v3013
    %v3050 = vmax.f32 %v3010, %v3014
    %v3051 = vmax.f32 %v3011, %v3015
    %v3052 = vmax.f32 %v3012, %v3016
    %v3053 = vmax.f32 %v3049, %v3017
    %v3054 = vmax.f32 %v3050, %v3018
    %v3055 = vmax.f32 %v3051, %v3019
    %v3056 = vmax.f32 %v3052, %v3020
    %v3057 = vmax.f32 %v3053, %v3021
    %v3058 = vmax.f32 %v3054, %v3022
    %v3059 = vmax.f32 %v3055, %v3023
    %v3060 = vmax.f32 %v3056, %v3024
    %v3061 = vmax.f32 %v3057, %v3025
    %v3062 = vmax.f32 %v3058, %v3026
    %v3063 = vmax.f32 %v3059, %v3027
    %v3064 = vmax.f32 %v3060, %v3028
    %v3065 = vmax.f32 %v3061, %v3029
    %v3066 = vmax.f32 %v3062, %v3030
    %v3067 = vmax.f32 %v3063, %v3031
    %v3068 = vmax.f32 %v3064, %v3032
    %v3069 = vmax.f32 %v3065, %v3033
    %v3070 = vmax.f32 %v3066, %v3034
    %v3071 = vmax.f32 %v3067, %v3035
    %v3072 = vmax.f32 %v3068, %v3036
    %v3073 = vmax.f32 %v3069, %v3037
    %v3074 = vmax.f32 %v3070, %v3038
    %v3075 = vmax.f32 %v3071, %v3039
    %v3076 = vmax.f32 %v3072, %v3040
    %v3077 = vmax.f32 %v3073, %v3041
    %v3078 = vmax.f32 %v3074, %v3042
    %v3079 = vmax.f32 %v3075, %v3043
    %v3080 = vmax.f32 %v3076, %v3044
    %v3081 = vmax.f32 %v3077, %v3045
    %v3082 = vmax.f32 %v3078, %v3046
    %v3083 = vmax.f32 %v3079, %v3047
    %v3084 = vmax.f32 %v3080, %v3048
    %v3085 = vld [vmem:[%s9] sm:$0x3]
    %v3087 = vperm.slane %v3085, 0
    %v3088 = vperm.slane %v3085, 1
    %v3091 = vadd.f32 %v3081, %v3087
    %v3092 = vadd.f32 %v3082, %v3088
    %v3093 = vadd.f32 %v3083, %v3087
    %v3094 = vadd.f32 %v3084, %v3088
    %v3095 = vmax.f32 %v3091, 0.0
    %v3096 = vmax.f32 %v3092, 0.0
    %v3097 = vmax.f32 %v3093, 0.0
    %v3098 = vmax.f32 %v3094, 0.0
    %v3099 = vpack.c.bf16 %v3097, %v3095
    %v3100 = vpack.c.bf16 %v3098, %v3096
    %v3101 = vld [vmem:[#allocation16] sm:$0xf]
    %v3102 = vld [vmem:[#allocation16 + $0x4] sm:$0xf]
    %v3103 = vld [vmem:[#allocation16 + $0x8] sm:$0xf]
    %v3104 = vld [vmem:[#allocation16 + $0xc] sm:$0xf]
    %v3105 = vld [vmem:[#allocation16 + $0x10] sm:$0xf]
    %v3106 = vld [vmem:[#allocation16 + $0x14] sm:$0xf]
    %v3107 = vld [vmem:[#allocation16 + $0x18] sm:$0xf]
    %v3108 = vld [vmem:[#allocation16 + $0x1c] sm:$0xf]
    %v3109 = vld [vmem:[#allocation16 + $0x20] sm:$0xf]
    %v3110 = vld [vmem:[#allocation16 + $0x24] sm:$0xf]
    %v3111 = vld [vmem:[#allocation16 + $0x28] sm:$0xf]
    %v3112 = vld [vmem:[#allocation16 + $0x2c] sm:$0xf]
    %v3113 = vld [vmem:[#allocation16 + $0x30] sm:$0xf]
    %v3114 = vld [vmem:[#allocation16 + $0x34] sm:$0xf]
    %v3115 = vld [vmem:[#allocation16 + $0x38] sm:$0xf]
    %v3116 = vld [vmem:[#allocation16 + $0x3c] sm:$0xf]
    %v3117 = vld [vmem:[#allocation16 + $0x40] sm:$0xf]
    %v3118 = vld [vmem:[#allocation16 + $0x44] sm:$0xf]
    %v3119 = vld [vmem:[#allocation16 + $0x48] sm:$0xf]
    %v3120 = vld [vmem:[#allocation16 + $0x4c] sm:$0xf]
    %v3121 = vld [vmem:[#allocation16 + $0x50] sm:$0xf]
    %v3122 = vld [vmem:[#allocation16 + $0x54] sm:$0xf]
    %v3123 = vld [vmem:[#allocation16 + $0x58] sm:$0xf]
    %v3124 = vld [vmem:[#allocation16 + $0x5c] sm:$0xf]
    %v3125 = vld [vmem:[#allocation16 + $0x60] sm:$0xf]
    %v3126 = vld [vmem:[#allocation16 + $0x64] sm:$0xf]
    %v3127 = vld [vmem:[#allocation16 + $0x68] sm:$0xf]
    %v3128 = vld [vmem:[#allocation16 + $0x6c] sm:$0xf]
    %v3129 = vld [vmem:[#allocation16 + $0x70] sm:$0xf]
    %v3130 = vld [vmem:[#allocation16 + $0x74] sm:$0xf]
    %v3131 = vld [vmem:[#allocation16 + $0x78] sm:$0xf]
    %v3132 = vld [vmem:[#allocation16 + $0x7c] sm:$0xf]
    %v3165 = vunpack.c.l.b16 %v3101
    %v3166 = vunpack.c.l.b16 %v3102
    %v3167 = vunpack.c.l.b16 %v3103
    %v3168 = vunpack.c.l.b16 %v3104
    %v3169 = vunpack.c.l.b16 %v3105
    %v3170 = vunpack.c.l.b16 %v3106
    %v3171 = vunpack.c.l.b16 %v3107
    %v3172 = vunpack.c.l.b16 %v3108
    %v3173 = vunpack.c.l.b16 %v3109
    %v3174 = vunpack.c.l.b16 %v3110
    %v3175 = vunpack.c.l.b16 %v3111
    %v3176 = vunpack.c.l.b16 %v3112
    %v3177 = vunpack.c.l.b16 %v3113
    %v3178 = vunpack.c.l.b16 %v3114
    %v3179 = vunpack.c.l.b16 %v3115
    %v3180 = vunpack.c.l.b16 %v3116
    %v3181 = vunpack.c.l.b16 %v3117
    %v3182 = vunpack.c.l.b16 %v3118
    %v3183 = vunpack.c.l.b16 %v3119
    %v3184 = vunpack.c.l.b16 %v3120
    %v3185 = vunpack.c.l.b16 %v3121
    %v3186 = vunpack.c.l.b16 %v3122
    %v3187 = vunpack.c.l.b16 %v3123
    %v3188 = vunpack.c.l.b16 %v3124
    %v3189 = vunpack.c.l.b16 %v3125
    %v3190 = vunpack.c.l.b16 %v3126
    %v3191 = vunpack.c.l.b16 %v3127
    %v3192 = vunpack.c.l.b16 %v3128
    %v3193 = vunpack.c.l.b16 %v3129
    %v3194 = vunpack.c.l.b16 %v3130
    %v3195 = vunpack.c.l.b16 %v3131
    %v3196 = vunpack.c.l.b16 %v3132
    %v3197 = vpack.c.b16 %v3166, %v3165
    %v3198 = vpack.c.b16 %v3168, %v3167
    %v3199 = vpack.c.b16 %v3170, %v3169
    %v3200 = vpack.c.b16 %v3172, %v3171
    %v3201 = vpack.c.b16 %v3174, %v3173
    %v3202 = vpack.c.b16 %v3176, %v3175
    %v3203 = vpack.c.b16 %v3178, %v3177
    %v3204 = vpack.c.b16 %v3180, %v3179
    %v3205 = vpack.c.b16 %v3182, %v3181
    %v3206 = vpack.c.b16 %v3184, %v3183
    %v3207 = vpack.c.b16 %v3186, %v3185
    %v3208 = vpack.c.b16 %v3188, %v3187
    %v3209 = vpack.c.b16 %v3190, %v3189
    %v3210 = vpack.c.b16 %v3192, %v3191
    %v3211 = vpack.c.b16 %v3194, %v3193
    %v3212 = vpack.c.b16 %v3196, %v3195
    %3229 = vmatpush.bf16.msra.mxu0 %v3204
    %3230 = vmatpush.bf16.msra.mxu0 %v3203
    %3231 = vmatpush.bf16.msra.mxu0 %v3202
    %3232 = vmatpush.bf16.msra.mxu0 %v3201
    %3233 = vmatpush.bf16.msra.mxu0 %v3200
    %3234 = vmatpush.bf16.msra.mxu0 %v3199
    %3235 = vmatpush.bf16.msra.mxu0 %v3198
    %3236 = vmatpush.bf16.msra.mxu0 %v3197
    %3237 = vmatmul.bf16.gmra.mxu0 %v3099
    %v3238 = vpop.f32.mrf.mxu0
    %v3239 = vadd.f32 0.0, %v3238
    %v3240 = vpop.f32.mrf.mxu0
    %v3241 = vadd.f32 0.0, %v3240
    %3242 = vdwg.mxu0
    %3243 = vmatpush.bf16.msra.mxu0 %v3212
    %3244 = vmatpush.bf16.msra.mxu0 %v3211
    %3245 = vmatpush.bf16.msra.mxu0 %v3210
    %3246 = vmatpush.bf16.msra.mxu0 %v3209
    %3247 = vmatpush.bf16.msra.mxu0 %v3208
    %3248 = vmatpush.bf16.msra.mxu0 %v3207
    %3249 = vmatpush.bf16.msra.mxu0 %v3206
    %3250 = vmatpush.bf16.msra.mxu0 %v3205
    %3251 = vmatmul.bf16.gmra.mxu0 %v3100
    %v3252 = vpop.f32.mrf.mxu0
    %v3253 = vadd.f32 %v3239, %v3252
    %v3254 = vpop.f32.mrf.mxu0
    %v3255 = vadd.f32 %v3241, %v3254
    %3256 = vdwg.mxu0
    %v3257 = vadd.f32 %v2028, %v3253
    %v3258 = vadd.f32 %v2029, %v3255
    %v3259 = vpack.c.bf16 %v3258, %v3257
    %v3260 = vld [vmem:[#allocation19] sm:$0xf]
    %v3261 = vld [vmem:[#allocation19 + $0x4] sm:$0xf]
    %v3262 = vld [vmem:[#allocation19 + $0x8] sm:$0xf]
    %v3263 = vld [vmem:[#allocation19 + $0xc] sm:$0xf]
    %v3264 = vld [vmem:[#allocation19 + $0x10] sm:$0xf]
    %v3265 = vld [vmem:[#allocation19 + $0x14] sm:$0xf]
    %v3266 = vld [vmem:[#allocation19 + $0x18] sm:$0xf]
    %v3267 = vld [vmem:[#allocation19 + $0x1c] sm:$0xf]
    %v3268 = vld [vmem:[#allocation19 + $0x20] sm:$0xf]
    %v3269 = vld [vmem:[#allocation19 + $0x24] sm:$0xf]
    %v3270 = vld [vmem:[#allocation19 + $0x28] sm:$0xf]
    %v3271 = vld [vmem:[#allocation19 + $0x2c] sm:$0xf]
    %v3272 = vld [vmem:[#allocation19 + $0x30] sm:$0xf]
    %v3273 = vld [vmem:[#allocation19 + $0x34] sm:$0xf]
    %v3274 = vld [vmem:[#allocation19 + $0x38] sm:$0xf]
    %v3275 = vld [vmem:[#allocation19 + $0x3c] sm:$0xf]
    %v3276 = vld [vmem:[%s13] sm:$0x1]
    %v3278 = vperm.slane %v3276, 0
    %v3296 = vunpack.c.l.b16 %v3260
    %v3297 = vunpack.c.l.b16 %v3261
    %v3298 = vunpack.c.l.b16 %v3262
    %v3299 = vunpack.c.l.b16 %v3263
    %v3300 = vunpack.c.l.b16 %v3264
    %v3301 = vunpack.c.l.b16 %v3265
    %v3302 = vunpack.c.l.b16 %v3266
    %v3303 = vunpack.c.l.b16 %v3267
    %v3304 = vunpack.c.l.b16 %v3268
    %v3305 = vunpack.c.l.b16 %v3269
    %v3306 = vunpack.c.l.b16 %v3270
    %v3307 = vunpack.c.l.b16 %v3271
    %v3308 = vunpack.c.l.b16 %v3272
    %v3309 = vunpack.c.l.b16 %v3273
    %v3310 = vunpack.c.l.b16 %v3274
    %v3311 = vunpack.c.l.b16 %v3275
    %v3312 = vpack.c.b16 %v3297, %v3296
    %v3313 = vpack.c.b16 %v3299, %v3298
    %v3314 = vpack.c.b16 %v3301, %v3300
    %v3315 = vpack.c.b16 %v3303, %v3302
    %v3316 = vpack.c.b16 %v3305, %v3304
    %v3317 = vpack.c.b16 %v3307, %v3306
    %v3318 = vpack.c.b16 %v3309, %v3308
    %v3319 = vpack.c.b16 %v3311, %v3310
    %3328 = vmatpush.bf16.msra.mxu0 %v3319
    %3329 = vmatpush.bf16.msra.mxu0 %v3318
    %3330 = vmatpush.bf16.msra.mxu0 %v3317
    %3331 = vmatpush.bf16.msra.mxu0 %v3316
    %3332 = vmatpush.bf16.msra.mxu0 %v3315
    %3333 = vmatpush.bf16.msra.mxu0 %v3314
    %3334 = vmatpush.bf16.msra.mxu0 %v3313
    %3335 = vmatpush.bf16.msra.mxu0 %v3312
    %3336 = vmatmul.bf16.gmra.mxu0 %v3259
    %v3337 = vpop.f32.mrf.mxu0
    %v3338 = vadd.f32 %v3278, %v3337
    %v3339 = vpop.f32.mrf.mxu0
    %v3340 = vadd.f32 %v3278, %v3339
    %3341 = vdwg.mxu0
    %v3342 = vmul.f32 %v3338, 0.5
    %v3343 = vmul.f32 %v3340, 0.5
    %v3344 = vtanh.pop %v3342
    %v3345 = vtanh.pop %v3343
    %v3346 = vadd.f32 %v3344, 1.0
    %v3347 = vadd.f32 %v3345, 1.0
    %v3348 = vmul.f32 %v3346, 0.5
    %v3349 = vmul.f32 %v3347, 0.5
    %v3350 = vld [vmem:[#allocation20] sm:$0xf]
    %v3351 = vld [vmem:[#allocation20 + $0x4] sm:$0xf]
    %v3352 = vld [vmem:[#allocation20 + $0x8] sm:$0xf]
    %v3353 = vld [vmem:[#allocation20 + $0xc] sm:$0xf]
    %v3354 = vld [vmem:[#allocation20 + $0x10] sm:$0xf]
    %v3355 = vld [vmem:[#allocation20 + $0x14] sm:$0xf]
    %v3356 = vld [vmem:[#allocation20 + $0x18] sm:$0xf]
    %v3357 = vld [vmem:[#allocation20 + $0x1c] sm:$0xf]
    %v3358 = vld [vmem:[#allocation20 + $0x20] sm:$0xf]
    %v3359 = vld [vmem:[#allocation20 + $0x24] sm:$0xf]
    %v3360 = vld [vmem:[#allocation20 + $0x28] sm:$0xf]
    %v3361 = vld [vmem:[#allocation20 + $0x2c] sm:$0xf]
    %v3362 = vld [vmem:[#allocation20 + $0x30] sm:$0xf]
    %v3363 = vld [vmem:[#allocation20 + $0x34] sm:$0xf]
    %v3364 = vld [vmem:[#allocation20 + $0x38] sm:$0xf]
    %v3365 = vld [vmem:[#allocation20 + $0x3c] sm:$0xf]
    %v3366 = vld [vmem:[%s15] sm:$0x1]
    %v3368 = vperm.slane %v3366, 0
    %v3386 = vunpack.c.l.b16 %v3350
    %v3387 = vunpack.c.l.b16 %v3351
    %v3388 = vunpack.c.l.b16 %v3352
    %v3389 = vunpack.c.l.b16 %v3353
    %v3390 = vunpack.c.l.b16 %v3354
    %v3391 = vunpack.c.l.b16 %v3355
    %v3392 = vunpack.c.l.b16 %v3356
    %v3393 = vunpack.c.l.b16 %v3357
    %v3394 = vunpack.c.l.b16 %v3358
    %v3395 = vunpack.c.l.b16 %v3359
    %v3396 = vunpack.c.l.b16 %v3360
    %v3397 = vunpack.c.l.b16 %v3361
    %v3398 = vunpack.c.l.b16 %v3362
    %v3399 = vunpack.c.l.b16 %v3363
    %v3400 = vunpack.c.l.b16 %v3364
    %v3401 = vunpack.c.l.b16 %v3365
    %v3402 = vpack.c.b16 %v3387, %v3386
    %v3403 = vpack.c.b16 %v3389, %v3388
    %v3404 = vpack.c.b16 %v3391, %v3390
    %v3405 = vpack.c.b16 %v3393, %v3392
    %v3406 = vpack.c.b16 %v3395, %v3394
    %v3407 = vpack.c.b16 %v3397, %v3396
    %v3408 = vpack.c.b16 %v3399, %v3398
    %v3409 = vpack.c.b16 %v3401, %v3400
    %3418 = vmatpush.bf16.msra.mxu0 %v3409
    %3419 = vmatpush.bf16.msra.mxu0 %v3408
    %3420 = vmatpush.bf16.msra.mxu0 %v3407
    %3421 = vmatpush.bf16.msra.mxu0 %v3406
    %3422 = vmatpush.bf16.msra.mxu0 %v3405
    %3423 = vmatpush.bf16.msra.mxu0 %v3404
    %3424 = vmatpush.bf16.msra.mxu0 %v3403
    %3425 = vmatpush.bf16.msra.mxu0 %v3402
    %3426 = vmatmul.bf16.gmra.mxu0 %v3259
    %v3427 = vpop.f32.mrf.mxu0
    %v3428 = vadd.f32 %v3368, %v3427
    %v3429 = vpop.f32.mrf.mxu0
    %v3430 = vadd.f32 %v3368, %v3429
    %3431 = vdwg.mxu0
    %v3432 = vmax.f32 %v3428, 0.0
    %v3433 = vmax.f32 %v3430, 0.0
    %v3434 = vsub.f32 %v3432, %v3257
    %v3435 = vsub.f32 %v3433, %v3258
    %v3436 = vmul.f32 %v3348, %v3434
    %v3437 = vmul.f32 %v3349, %v3435
    %v3438 = vadd.f32 %v3257, %v3436
    %v3439 = vadd.f32 %v3258, %v3437
    %v3440 = vpack.c.bf16 %v3439, %v3438
    %v3441 = vld [vmem:[#allocation22] sm:$0xf]
    %v3442 = vld [vmem:[#allocation22 + $0x4] sm:$0xf]
    %v3443 = vld [vmem:[#allocation22 + $0x8] sm:$0xf]
    %v3444 = vld [vmem:[#allocation22 + $0xc] sm:$0xf]
    %v3445 = vld [vmem:[#allocation22 + $0x10] sm:$0xf]
    %v3446 = vld [vmem:[#allocation22 + $0x14] sm:$0xf]
    %v3447 = vld [vmem:[#allocation22 + $0x18] sm:$0xf]
    %v3448 = vld [vmem:[#allocation22 + $0x1c] sm:$0xf]
    %v3449 = vld [vmem:[#allocation22 + $0x20] sm:$0xf]
    %v3450 = vld [vmem:[#allocation22 + $0x24] sm:$0xf]
    %v3451 = vld [vmem:[#allocation22 + $0x28] sm:$0xf]
    %v3452 = vld [vmem:[#allocation22 + $0x2c] sm:$0xf]
    %v3453 = vld [vmem:[#allocation22 + $0x30] sm:$0xf]
    %v3454 = vld [vmem:[#allocation22 + $0x34] sm:$0xf]
    %v3455 = vld [vmem:[#allocation22 + $0x38] sm:$0xf]
    %v3456 = vld [vmem:[#allocation22 + $0x3c] sm:$0xf]
    %v3457 = vld [vmem:[%s17] sm:$0x1]
    %v3459 = vperm.slane %v3457, 0
    %v3477 = vunpack.c.l.b16 %v3441
    %v3478 = vunpack.c.l.b16 %v3442
    %v3479 = vunpack.c.l.b16 %v3443
    %v3480 = vunpack.c.l.b16 %v3444
    %v3481 = vunpack.c.l.b16 %v3445
    %v3482 = vunpack.c.l.b16 %v3446
    %v3483 = vunpack.c.l.b16 %v3447
    %v3484 = vunpack.c.l.b16 %v3448
    %v3485 = vunpack.c.l.b16 %v3449
    %v3486 = vunpack.c.l.b16 %v3450
    %v3487 = vunpack.c.l.b16 %v3451
    %v3488 = vunpack.c.l.b16 %v3452
    %v3489 = vunpack.c.l.b16 %v3453
    %v3490 = vunpack.c.l.b16 %v3454
    %v3491 = vunpack.c.l.b16 %v3455
    %v3492 = vunpack.c.l.b16 %v3456
    %v3493 = vpack.c.b16 %v3478, %v3477
    %v3494 = vpack.c.b16 %v3480, %v3479
    %v3495 = vpack.c.b16 %v3482, %v3481
    %v3496 = vpack.c.b16 %v3484, %v3483
    %v3497 = vpack.c.b16 %v3486, %v3485
    %v3498 = vpack.c.b16 %v3488, %v3487
    %v3499 = vpack.c.b16 %v3490, %v3489
    %v3500 = vpack.c.b16 %v3492, %v3491
    %3509 = vmatpush.bf16.msra.mxu0 %v3500
    %3510 = vmatpush.bf16.msra.mxu0 %v3499
    %3511 = vmatpush.bf16.msra.mxu0 %v3498
    %3512 = vmatpush.bf16.msra.mxu0 %v3497
    %3513 = vmatpush.bf16.msra.mxu0 %v3496
    %3514 = vmatpush.bf16.msra.mxu0 %v3495
    %3515 = vmatpush.bf16.msra.mxu0 %v3494
    %3516 = vmatpush.bf16.msra.mxu0 %v3493
    %3517 = vmatmul.bf16.gmra.mxu0 %v3440
    %v3518 = vpop.f32.mrf.mxu0
    %v3519 = vadd.f32 %v3459, %v3518
    %v3520 = vpop.f32.mrf.mxu0
    %v3521 = vadd.f32 %v3459, %v3520
    %3522 = vdwg.mxu0
    %v3523 = vmul.f32 %v3519, 0.5
    %v3524 = vmul.f32 %v3521, 0.5
    %v3525 = vtanh.pop %v3523
    %v3526 = vtanh.pop %v3524
    %v3527 = vadd.f32 %v3525, 1.0
    %v3528 = vadd.f32 %v3526, 1.0
    %v3529 = vmul.f32 %v3527, 0.5
    %v3530 = vmul.f32 %v3528, 0.5
    %v3531 = vld [vmem:[#allocation23] sm:$0xf]
    %v3532 = vld [vmem:[#allocation23 + $0x4] sm:$0xf]
    %v3533 = vld [vmem:[#allocation23 + $0x8] sm:$0xf]
    %v3534 = vld [vmem:[#allocation23 + $0xc] sm:$0xf]
    %v3535 = vld [vmem:[#allocation23 + $0x10] sm:$0xf]
    %v3536 = vld [vmem:[#allocation23 + $0x14] sm:$0xf]
    %v3537 = vld [vmem:[#allocation23 + $0x18] sm:$0xf]
    %v3538 = vld [vmem:[#allocation23 + $0x1c] sm:$0xf]
    %v3539 = vld [vmem:[#allocation23 + $0x20] sm:$0xf]
    %v3540 = vld [vmem:[#allocation23 + $0x24] sm:$0xf]
    %v3541 = vld [vmem:[#allocation23 + $0x28] sm:$0xf]
    %v3542 = vld [vmem:[#allocation23 + $0x2c] sm:$0xf]
    %v3543 = vld [vmem:[#allocation23 + $0x30] sm:$0xf]
    %v3544 = vld [vmem:[#allocation23 + $0x34] sm:$0xf]
    %v3545 = vld [vmem:[#allocation23 + $0x38] sm:$0xf]
    %v3546 = vld [vmem:[#allocation23 + $0x3c] sm:$0xf]
    %v3547 = vld [vmem:[%s19] sm:$0x1]
    %v3549 = vperm.slane %v3547, 0
    %v3567 = vunpack.c.l.b16 %v3531
    %v3568 = vunpack.c.l.b16 %v3532
    %v3569 = vunpack.c.l.b16 %v3533
    %v3570 = vunpack.c.l.b16 %v3534
    %v3571 = vunpack.c.l.b16 %v3535
    %v3572 = vunpack.c.l.b16 %v3536
    %v3573 = vunpack.c.l.b16 %v3537
    %v3574 = vunpack.c.l.b16 %v3538
    %v3575 = vunpack.c.l.b16 %v3539
    %v3576 = vunpack.c.l.b16 %v3540
    %v3577 = vunpack.c.l.b16 %v3541
    %v3578 = vunpack.c.l.b16 %v3542
    %v3579 = vunpack.c.l.b16 %v3543
    %v3580 = vunpack.c.l.b16 %v3544
    %v3581 = vunpack.c.l.b16 %v3545
    %v3582 = vunpack.c.l.b16 %v3546
    %v3583 = vpack.c.b16 %v3568, %v3567
    %v3584 = vpack.c.b16 %v3570, %v3569
    %v3585 = vpack.c.b16 %v3572, %v3571
    %v3586 = vpack.c.b16 %v3574, %v3573
    %v3587 = vpack.c.b16 %v3576, %v3575
    %v3588 = vpack.c.b16 %v3578, %v3577
    %v3589 = vpack.c.b16 %v3580, %v3579
    %v3590 = vpack.c.b16 %v3582, %v3581
    %3599 = vmatpush.bf16.msra.mxu0 %v3590
    %3600 = vmatpush.bf16.msra.mxu0 %v3589
    %3601 = vmatpush.bf16.msra.mxu0 %v3588
    %3602 = vmatpush.bf16.msra.mxu0 %v3587
    %3603 = vmatpush.bf16.msra.mxu0 %v3586
    %3604 = vmatpush.bf16.msra.mxu0 %v3585
    %3605 = vmatpush.bf16.msra.mxu0 %v3584
    %3606 = vmatpush.bf16.msra.mxu0 %v3583
    %3607 = vmatmul.bf16.gmra.mxu0 %v3440
    %v3608 = vpop.f32.mrf.mxu0
    %v3609 = vadd.f32 %v3549, %v3608
    %v3610 = vpop.f32.mrf.mxu0
    %v3611 = vadd.f32 %v3549, %v3610
    %3612 = vdwg.mxu0
    %v3613 = vmax.f32 %v3609, 0.0
    %v3614 = vmax.f32 %v3611, 0.0
    %v3615 = vsub.f32 %v3613, %v3438
    %v3616 = vsub.f32 %v3614, %v3439
    %v3617 = vmul.f32 %v3529, %v3615
    %v3618 = vmul.f32 %v3530, %v3616
    %v3619 = vadd.f32 %v3438, %v3617
    %v3620 = vadd.f32 %v3439, %v3618
    %v3621 = vpack.c.bf16 %v3619, %v3619
    %v3622 = vpack.c.bf16 %v3620, %v3620
    %3623 = vst [vmem:[#allocation25] sm:$0xf] %v3621
    %3624 = vst [vmem:[#allocation25 + $0x4] sm:$0xf] %v3622
    // Predicated region
    $region138: #{tpu_custom_call.1} parent=1 // pred_check
      _
    $region139: #{tpu_custom_call.1} parent=1 // pred_check_branch
      %3626 = sbr.rel (0) target = $region141
    $region140: #{tpu_custom_call.1} parent=1 // pred_region
      %3628 = vsyncadd [#allocation4], 0
      %s3629 = sshll.u32 [#allocation25], 4
      %s3630 = int_to_ptr.vmem [resolvable:$true] %s3629
      %s3631 = sshll.u32 %s20, 4
      %s3632 = int_to_ptr.hbm [resolvable:$true] %s3631
      %3637 = dma.vmem_to_hbm [thread:$0]  %s3630, 128, %s3632, [#allocation4], 64, 64, 4
    $region141: #{tpu_custom_call.1} parent=1 // pred_fallthru
      _
    // Predicated region
    $region142: #{tpu_custom_call.1} parent=1 // pred_check
      _
    $region143: #{tpu_custom_call.1} parent=1 // pred_check_branch
      %3639 = sbr.rel (0) target = $region145
    $region144: #{tpu_custom_call.1} parent=1 // pred_region
      %3641 = dma.done [#allocation4], 128
    $region145: #{tpu_custom_call.1} parent=1 // pred_fallthru
      _
    %3642 = vsyncpa [#allocation3], 1
    %3643 = vsyncpa [#allocation6], 1
    %3644 = vsyncpa [#allocation9], 1
    %3645 = vsyncpa [#allocation12], 1
    %3646 = vsyncpa [#allocation15], 1
    %3647 = vsyncpa [#allocation18], 1
    %3648 = vsyncpa [#allocation21], 1
    %3649 = vsyncpa [#allocation24], 1
    %3650 = vsyncpa [#allocation4], 1

</llo_original>
